<compile_context>
chip_gen: v7x
topology: tpu7x:2x2x1
jax: 0.10.0
libtpu: 0.0.40
codegen_flags: <defaults>
</compile_context>

<pallas_src>
import functools

import jax
import jax.numpy as jnp
from jax.experimental import pallas as pl
from jax.experimental.pallas import tpu as pltpu

_EPS = 1e-5


def _basic_block_kernel(x_ref, w1_ref, b1_ref, w2_ref, b2_ref, *rest,
                        stride, has_proj):
    """Fused conv3x3(stride)+BN+ReLU -> conv3x3+BN -> +skip -> ReLU.

    Per grid step (one batch image):
      x_ref   : (1, H, W, Cin) bf16       unpadded input tile
      w1_ref  : (3, 3*Cin, Cout) bf16     conv1 taps, BN1 scale folded in,
                                          grouped by kh, (kw, Cin)-major
      b1_ref  : (1, Cout) f32             folded BN1 bias
      w2_ref  : (3, 3*Cout, Cout) bf16    conv2 taps, BN2 scale folded in
      b2_ref  : (1, Cout) f32             folded BN2 bias
      wsk_ref : (Cin, Cout) bf16          1x1 projection (only if has_proj)
      bsk_ref : (1, Cout) f32             folded skip-BN bias (only if has_proj)
      out_ref : (1, Hout, Wout, Cout) bf16
      xpad_ref: (H+2, W+2, Cin) f32       VMEM scratch: zero-padded input
      mid_ref : (Hout+2, Wout+2, Cout) f32 VMEM scratch: padded intermediate
    """
    if has_proj:
        wsk_ref, bsk_ref, out_ref, xpad_ref, mid_ref = rest
    else:
        wsk_ref = bsk_ref = None
        out_ref, xpad_ref, mid_ref = rest

    _, H, W, Cin = x_ref.shape
    _, Hout, Wout, Cout = out_ref.shape
    M = Hout * Wout

    # ---- stage the input tile into a zero-padded VMEM scratch (replaces the
    # old wrapper-side XLA pad -> one less HBM pass over the activations).
    # Only the 1-wide border strips are zeroed; the interior is written once.
    xz_row = jnp.zeros((1, W + 2, Cin), xpad_ref.dtype)
    xz_col = jnp.zeros((H, 1, Cin), xpad_ref.dtype)
    xpad_ref[0:1, :, :] = xz_row
    xpad_ref[H + 1:H + 2, :, :] = xz_row
    xpad_ref[1:H + 1, 0:1, :] = xz_col
    xpad_ref[1:H + 1, W + 1:W + 2, :] = xz_col
    xpad_ref[1:H + 1, 1:W + 1, :] = x_ref[0].astype(xpad_ref.dtype)

    def x_tap(kh, kw):
        # (Hout, Wout, Cin) window of the padded input at tap (kh, kw).
        if stride == 1:
            return xpad_ref[kh:kh + Hout, kw:kw + Wout, :]
        # TODO(synk): for stride > 1, pre-deinterleave even/odd phases in the
        # wrapper to avoid sublane-strided loads (perf only; still correct).
        return xpad_ref[pl.ds(kh, Hout, stride=stride),
                        pl.ds(kw, Wout, stride=stride), :]

    # ---- conv1 (3x3, stride, pad=1, no bias): 3 accumulating MXU matmuls,
    # one per kernel row, K = 3*Cin (im2col materialization cut 3x vs 9*Cin).
    acc1 = None
    for kh in range(3):
        cols = jnp.concatenate(
            [x_tap(kh, kw).reshape(M, Cin) for kw in range(3)],
            axis=-1).astype(jnp.bfloat16)
        part = jnp.dot(cols, w1_ref[kh], preferred_element_type=jnp.float32)
        acc1 = part if acc1 is None else acc1 + part
    y1 = jnp.maximum(acc1 + b1_ref[...], 0.0)            # folded bn1 + relu

    # ---- stage the conv1 output in the padded VMEM scratch ----
    mz_row = jnp.zeros((1, Wout + 2, Cout), mid_ref.dtype)
    mz_col = jnp.zeros((Hout, 1, Cout), mid_ref.dtype)
    mid_ref[0:1, :, :] = mz_row
    mid_ref[Hout + 1:Hout + 2, :, :] = mz_row
    mid_ref[1:Hout + 1, 0:1, :] = mz_col
    mid_ref[1:Hout + 1, Wout + 1:Wout + 2, :] = mz_col
    mid_ref[1:Hout + 1, 1:Wout + 1, :] = y1.reshape(Hout, Wout, Cout)

    # ---- conv2 (3x3, stride 1, pad=1, no bias): 3 matmuls, K = 3*Cout ----
    acc2 = None
    for kh in range(3):
        cols = jnp.concatenate(
            [mid_ref[kh:kh + Hout, kw:kw + Wout, :].reshape(M, Cout)
             for kw in range(3)],
            axis=-1).astype(jnp.bfloat16)
        part = jnp.dot(cols, w2_ref[kh], preferred_element_type=jnp.float32)
        acc2 = part if acc2 is None else acc2 + part
    y2 = acc2 + b2_ref[...]                               # folded bn2

    # ---- skip path: Identity, or 1x1 conv(stride) + BN (scale folded) ----
    center = x_tap(1, 1).reshape(M, Cin)
    if has_proj:
        res = jnp.dot(center.astype(jnp.bfloat16), wsk_ref[...],
                      preferred_element_type=jnp.float32) + bsk_ref[...]
    else:
        res = center                 # identity: stride == 1 and Cin == Cout

    out = jnp.maximum(y2 + res, 0.0)
    out_ref[...] = out.reshape(1, Hout, Wout, Cout).astype(out_ref.dtype)


def _fold_bn(gamma, beta, mean, var):
    scale = (gamma / jnp.sqrt(var + _EPS)).astype(jnp.float32)      # (C,)
    bias = (beta - mean * scale).astype(jnp.float32).reshape(1, -1)  # (1, C)
    return scale, bias


def _vmem_limit_bytes(H, W, Cin, Hout, Wout, Cout, has_proj):
    """Rough per-step VMEM need (double-buffered operands + scratch + temps)
    with 2x headroom, clamped to v7x's 64 MiB/TC physical VMEM."""
    bf, f32 = 2, 4
    x_tile = H * W * Cin * bf
    out_tile = Hout * Wout * Cout * bf
    weights = (9 * Cin * Cout + 9 * Cout * Cout) * bf + 2 * Cout * f32
    if has_proj:
        weights += Cin * Cout * bf + Cout * f32
    scratch = ((H + 2) * (W + 2) * Cin + (Hout + 2) * (Wout + 2) * Cout) * f32
    M = Hout * Wout
    temps = M * 3 * max(Cin, Cout) * (bf + f32) + 3 * M * Cout * f32
    need = 2 * (x_tile + out_tile + weights) + scratch + temps
    return int(min(max(2 * need + (4 << 20), 8 << 20), 64 << 20))


def basic_block_forward(x_nchw, params, stride):
    """NCHW f32 in / NCHW bf16 out, mirroring PyTorch BasicBlock.forward with
    eval-mode BatchNorm (running stats folded into the conv weights/bias)."""
    has_proj = "w_skip" in params
    x = jnp.transpose(x_nchw, (0, 2, 3, 1)).astype(jnp.bfloat16)   # NHWC bf16
    N, H, W, Cin = x.shape
    Cout = params["w1"].shape[-1]
    if not has_proj:
        assert stride == 1 and Cin == Cout, (
            "identity skip requires stride == 1 and in_channels == out_channels")
    Hout = (H - 1) // stride + 1
    Wout = (W - 1) // stride + 1

    # Fold BN scales into the conv weights (eval-mode BN); only the bias add
    # (+ReLU) is left in the kernel.  Weights grouped by kernel row kh.
    s1, b1 = _fold_bn(params["g1"], params["be1"], params["m1"], params["v1"])
    s2, b2 = _fold_bn(params["g2"], params["be2"], params["m2"], params["v2"])
    w1 = (params["w1"].astype(jnp.float32) * s1
          ).reshape(3, 3 * Cin, Cout).astype(jnp.bfloat16)
    w2 = (params["w2"].astype(jnp.float32) * s2
          ).reshape(3, 3 * Cout, Cout).astype(jnp.bfloat16)

    def whole(shape):
        return pl.BlockSpec(shape, lambda n, _s=shape: tuple(0 for _ in _s))

    in_specs = [
        pl.BlockSpec((1, H, W, Cin), lambda n: (n, 0, 0, 0)),
        whole((3, 3 * Cin, Cout)),
        whole((1, Cout)),
        whole((3, 3 * Cout, Cout)),
        whole((1, Cout)),
    ]
    args = [x, w1, b1, w2, b2]
    if has_proj:
        ssk, bsk = _fold_bn(params["g_skip"], params["be_skip"],
                            params["m_skip"], params["v_skip"])
        wsk = (params["w_skip"].astype(jnp.float32) * ssk).astype(jnp.bfloat16)
        in_specs += [whole((Cin, Cout)), whole((1, Cout))]
        args += [wsk, bsk]

    kernel = functools.partial(_basic_block_kernel, stride=stride,
                               has_proj=has_proj)
    grid_spec = pltpu.PrefetchScalarGridSpec(
        num_scalar_prefetch=0,
        grid=(N,),
        in_specs=in_specs,
        out_specs=pl.BlockSpec((1, Hout, Wout, Cout), lambda n: (n, 0, 0, 0)),
        scratch_shapes=[
            pltpu.VMEM((H + 2, W + 2, Cin), jnp.float32),
            pltpu.VMEM((Hout + 2, Wout + 2, Cout), jnp.float32),
        ],
    )
    out = pl.pallas_call(
        kernel,
        out_shape=jax.ShapeDtypeStruct((N, Hout, Wout, Cout), jnp.bfloat16),
        grid_spec=grid_spec,
        compiler_params=pltpu.CompilerParams(
            dimension_semantics=("parallel",),
            vmem_limit_bytes=_vmem_limit_bytes(H, W, Cin, Hout, Wout, Cout,
                                               has_proj),
        ),
    )(*args)
    return jnp.transpose(out, (0, 3, 1, 2))   # back to NCHW (bf16)


def reference_forward(x_nchw, params, stride, quantize_intermediate=False):
    """Pure-JAX f32 reference faithful to the PyTorch module (eval-mode BN)."""
    x = jnp.transpose(x_nchw, (0, 2, 3, 1)).astype(jnp.float32)

    def bn(y, g, be, m, v):
        return (y - m) / jnp.sqrt(v + _EPS) * g + be

    def conv(xx, w, s, pad):
        return jax.lax.conv_general_dilated(
            xx, w, (s, s), pad,
            dimension_numbers=("NHWC", "HWIO", "NHWC"),
            precision=jax.lax.Precision.HIGHEST)

    out = conv(x, params["w1"], stride, ((1, 1), (1, 1)))
    out = jax.nn.relu(bn(out, params["g1"], params["be1"],
                         params["m1"], params["v1"]))
    if quantize_intermediate:
        out = out.astype(jnp.bfloat16).astype(jnp.float32)
    out = conv(out, params["w2"], 1, ((1, 1), (1, 1)))
    out = bn(out, params["g2"], params["be2"], params["m2"], params["v2"])
    if "w_skip" in params:
        wsk = params["w_skip"].reshape(1, 1, *params["w_skip"].shape)
        res = conv(x, wsk, stride, ((0, 0), (0, 0)))
        res = bn(res, params["g_skip"], params["be_skip"],
                 params["m_skip"], params["v_skip"])
    else:
        res = x
    out = jax.nn.relu(out + res)
    return jnp.transpose(out, (0, 3, 1, 2))


if __name__ == "__main__":
    key = jax.random.PRNGKey(0)

    def bn_params(k, c):
        k1, k2, k3, k4 = jax.random.split(k, 4)
        return (1.0 + 0.1 * jax.random.normal(k1, (c,), jnp.float32),   # gamma
                0.1 * jax.random.normal(k2, (c,), jnp.float32),         # beta
                0.1 * jax.random.normal(k3, (c,), jnp.float32),         # mean
                jax.random.uniform(k4, (c,), jnp.float32, 0.5, 1.5))    # var

    def make_params(k, cin, cout, stride):
        ks = jax.random.split(k, 6)
        p = {}
        p["w1"] = jax.random.normal(ks[0], (3, 3, cin, cout), jnp.float32) * (2.0 / (9 * cin)) ** 0.5
        p["g1"], p["be1"], p["m1"], p["v1"] = bn_params(ks[1], cout)
        p["w2"] = jax.random.normal(ks[2], (3, 3, cout, cout), jnp.float32) * (2.0 / (9 * cout)) ** 0.5
        p["g2"], p["be2"], p["m2"], p["v2"] = bn_params(ks[3], cout)
        if stride != 1 or cin != cout:
            p["w_skip"] = jax.random.normal(ks[4], (cin, cout), jnp.float32) * (2.0 / cin) ** 0.5
            p["g_skip"], p["be_skip"], p["m_skip"], p["v_skip"] = bn_params(ks[5], cout)
        return p

    def q(a):
        return a.astype(jnp.bfloat16).astype(jnp.float32)

    def match_kernel_quantization(params):
        # Round-trip the conv weights through the same quantization the kernel
        # applies (BN scale folded *before* the bf16 cast) so the reference
        # check isolates kernel structure rather than bf16 rounding noise.
        rp = dict(params)
        s1, _ = _fold_bn(params["g1"], params["be1"], params["m1"], params["v1"])
        s2, _ = _fold_bn(params["g2"], params["be2"], params["m2"], params["v2"])
        rp["w1"] = q(params["w1"] * s1) / s1
        rp["w2"] = q(params["w2"] * s2) / s2
        if "w_skip" in params:
            ss, _ = _fold_bn(params["g_skip"], params["be_skip"],
                             params["m_skip"], params["v_skip"])
            rp["w_skip"] = q(params["w_skip"] * ss) / ss
        return rp

    def run_case(k, n, cin, cout, h, w, stride):
        kp, kx = jax.random.split(k)
        params = make_params(kp, cin, cout, stride)
        x = jax.random.normal(kx, (n, cin, h, w), jnp.float32)
        out = jax.block_until_ready(basic_block_forward(x, params, stride))
        out = out.astype(jnp.float32)
        ref = reference_forward(q(x), match_kernel_quantization(params),
                                stride, quantize_intermediate=True)
        assert out.shape == ref.shape, (out.shape, ref.shape)
        max_err = float(jnp.max(jnp.abs(out - ref)))
        assert jnp.allclose(out, ref, atol=2e-2, rtol=2e-2), \
            f"max abs err = {max_err}"

    run_case(jax.random.fold_in(key, 0), 2, 4, 8, 16, 16, 1)   # 1x1-projection skip
    run_case(jax.random.fold_in(key, 1), 2, 8, 8, 16, 16, 1)   # identity skip
    print("KERNEL_OK")
</pallas_src>

<mosaic_0001>
module attributes {stable_mosaic.version = 11 : i64} {
  func.func @_basic_block_kernel(%arg0: i32, %arg1: memref<1x16x16x4xbf16, #tpu.memory_space<vmem>>, %arg2: memref<3x12x8xbf16, #tpu.memory_space<vmem>>, %arg3: memref<1x8xf32, #tpu.memory_space<vmem>>, %arg4: memref<3x24x8xbf16, #tpu.memory_space<vmem>>, %arg5: memref<1x8xf32, #tpu.memory_space<vmem>>, %arg6: memref<4x8xbf16, #tpu.memory_space<vmem>>, %arg7: memref<1x8xf32, #tpu.memory_space<vmem>>, %arg8: memref<1x16x16x8xbf16, #tpu.memory_space<vmem>>, %arg9: memref<18x18x4xf32, #tpu.memory_space<vmem>>, %arg10: memref<18x18x8xf32, #tpu.memory_space<vmem>>) attributes {dimension_semantics = [#tpu.dimension_semantics<parallel>], iteration_bounds = array<i64: 2>, scalar_prefetch = 0 : i64, scratch_operands = 2 : i64, tpu.core_type = #tpu.core_type<tc>, window_params = [{transform_indices = @transform_0, window_bounds = array<i64: 1, 16, 16, 4>}, {pipeline_mode = #tpu.pipeline_mode<synchronous>, transform_indices = @transform_1, window_bounds = array<i64: 3, 12, 8>}, {pipeline_mode = #tpu.pipeline_mode<synchronous>, transform_indices = @transform_2, window_bounds = array<i64: 1, 8>}, {pipeline_mode = #tpu.pipeline_mode<synchronous>, transform_indices = @transform_3, window_bounds = array<i64: 3, 24, 8>}, {pipeline_mode = #tpu.pipeline_mode<synchronous>, transform_indices = @transform_4, window_bounds = array<i64: 1, 8>}, {pipeline_mode = #tpu.pipeline_mode<synchronous>, transform_indices = @transform_5, window_bounds = array<i64: 4, 8>}, {pipeline_mode = #tpu.pipeline_mode<synchronous>, transform_indices = @transform_6, window_bounds = array<i64: 1, 8>}, {transform_indices = @transform_7, window_bounds = array<i64: 1, 16, 16, 8>}]} {
    %cst = arith.constant 0.000000e+00 : f32
    %0 = vector.broadcast %cst : f32 to vector<1x18x4xf32>
    %cst_0 = arith.constant 0.000000e+00 : f32
    %1 = vector.broadcast %cst_0 : f32 to vector<16x1x4xf32>
    %c0 = arith.constant 0 : index
    %c0_1 = arith.constant 0 : index
    %c0_2 = arith.constant 0 : index
    %2 = vector.load %arg9[%c0, %c0_1, %c0_2] : memref<18x18x4xf32, #tpu.memory_space<vmem>>, vector<1x18x4xf32>
    tpu.vector_store %arg9[%c0, %c0_1, %c0_2], %0 {strides = array<i32>} : memref<18x18x4xf32, #tpu.memory_space<vmem>>, vector<1x18x4xf32>,
    %c17 = arith.constant 17 : index
    %c0_3 = arith.constant 0 : index
    %c0_4 = arith.constant 0 : index
    %3 = vector.load %arg9[%c17, %c0_3, %c0_4] : memref<18x18x4xf32, #tpu.memory_space<vmem>>, vector<1x18x4xf32>
    tpu.vector_store %arg9[%c17, %c0_3, %c0_4], %0 {strides = array<i32>} : memref<18x18x4xf32, #tpu.memory_space<vmem>>, vector<1x18x4xf32>,
    %c1 = arith.constant 1 : index
    %c0_5 = arith.constant 0 : index
    %c0_6 = arith.constant 0 : index
    %4 = vector.load %arg9[%c1, %c0_5, %c0_6] : memref<18x18x4xf32, #tpu.memory_space<vmem>>, vector<16x1x4xf32>
    tpu.vector_store %arg9[%c1, %c0_5, %c0_6], %1 {strides = array<i32>} : memref<18x18x4xf32, #tpu.memory_space<vmem>>, vector<16x1x4xf32>,
    %c1_7 = arith.constant 1 : index
    %c17_8 = arith.constant 17 : index
    %c0_9 = arith.constant 0 : index
    %5 = vector.load %arg9[%c1_7, %c17_8, %c0_9] : memref<18x18x4xf32, #tpu.memory_space<vmem>>, vector<16x1x4xf32>
    tpu.vector_store %arg9[%c1_7, %c17_8, %c0_9], %1 {strides = array<i32>} : memref<18x18x4xf32, #tpu.memory_space<vmem>>, vector<16x1x4xf32>,
    %c0_10 = arith.constant 0 : index
    %c0_11 = arith.constant 0 : index
    %c0_12 = arith.constant 0 : index
    %c0_13 = arith.constant 0 : index
    %6 = vector.load %arg1[%c0_10, %c0_11, %c0_12, %c0_13] : memref<1x16x16x4xbf16, #tpu.memory_space<vmem>>, vector<1x16x16x4xbf16>
    %7 = vector.shape_cast %6 : vector<1x16x16x4xbf16> to vector<16x16x4xbf16>
    %8 = arith.extf %7 : vector<16x16x4xbf16> to vector<16x16x4xf32>
    %c1_14 = arith.constant 1 : index
    %c1_15 = arith.constant 1 : index
    %c0_16 = arith.constant 0 : index
    %9 = vector.load %arg9[%c1_14, %c1_15, %c0_16] : memref<18x18x4xf32, #tpu.memory_space<vmem>>, vector<16x16x4xf32>
    tpu.vector_store %arg9[%c1_14, %c1_15, %c0_16], %8 {strides = array<i32>} : memref<18x18x4xf32, #tpu.memory_space<vmem>>, vector<16x16x4xf32>,
    %c0_17 = arith.constant 0 : index
    %c0_18 = arith.constant 0 : index
    %c0_19 = arith.constant 0 : index
    %10 = vector.load %arg9[%c0_17, %c0_18, %c0_19] : memref<18x18x4xf32, #tpu.memory_space<vmem>>, vector<16x16x4xf32>
    %11 = vector.shape_cast %10 : vector<16x16x4xf32> to vector<256x4xf32>
    %c0_20 = arith.constant 0 : index
    %c1_21 = arith.constant 1 : index
    %c0_22 = arith.constant 0 : index
    %12 = vector.load %arg9[%c0_20, %c1_21, %c0_22] : memref<18x18x4xf32, #tpu.memory_space<vmem>>, vector<16x16x4xf32>
    %13 = vector.shape_cast %12 : vector<16x16x4xf32> to vector<256x4xf32>
    %c0_23 = arith.constant 0 : index
    %c2 = arith.constant 2 : index
    %c0_24 = arith.constant 0 : index
    %14 = vector.load %arg9[%c0_23, %c2, %c0_24] : memref<18x18x4xf32, #tpu.memory_space<vmem>>, vector<16x16x4xf32>
    %15 = vector.shape_cast %14 : vector<16x16x4xf32> to vector<256x4xf32>
    %16 = tpu.concatenate %11, %13, %15 in 1 : vector<256x4xf32>, vector<256x4xf32>, vector<256x4xf32> -> vector<256x12xf32>
    %17 = arith.truncf %16 : vector<256x12xf32> to vector<256x12xbf16>
    %c0_25 = arith.constant 0 : index
    %c0_26 = arith.constant 0 : index
    %c0_27 = arith.constant 0 : index
    %18 = vector.load %arg2[%c0_25, %c0_26, %c0_27] : memref<3x12x8xbf16, #tpu.memory_space<vmem>>, vector<1x12x8xbf16>
    %19 = vector.shape_cast %18 : vector<1x12x8xbf16> to vector<12x8xbf16>
    %cst_28 = arith.constant dense<0.000000e+00> : vector<256x8xf32>
    %20 = tpu.matmul %17, %19, %cst_28 {dimension_numbers = #tpu.dot_dimension_numbers<[1], [0], [0], [1], [0, 0, 1, 1], [], []>} : vector<256x12xbf16>, vector<12x8xbf16>, vector<256x8xf32> -> vector<256x8xf32>
    %c1_29 = arith.constant 1 : index
    %c0_30 = arith.constant 0 : index
    %c0_31 = arith.constant 0 : index
    %21 = vector.load %arg9[%c1_29, %c0_30, %c0_31] : memref<18x18x4xf32, #tpu.memory_space<vmem>>, vector<16x16x4xf32>
    %22 = vector.shape_cast %21 : vector<16x16x4xf32> to vector<256x4xf32>
    %c1_32 = arith.constant 1 : index
    %c1_33 = arith.constant 1 : index
    %c0_34 = arith.constant 0 : index
    %23 = vector.load %arg9[%c1_32, %c1_33, %c0_34] : memref<18x18x4xf32, #tpu.memory_space<vmem>>, vector<16x16x4xf32>
    %24 = vector.shape_cast %23 : vector<16x16x4xf32> to vector<256x4xf32>
    %c1_35 = arith.constant 1 : index
    %c2_36 = arith.constant 2 : index
    %c0_37 = arith.constant 0 : index
    %25 = vector.load %arg9[%c1_35, %c2_36, %c0_37] : memref<18x18x4xf32, #tpu.memory_space<vmem>>, vector<16x16x4xf32>
    %26 = vector.shape_cast %25 : vector<16x16x4xf32> to vector<256x4xf32>
    %27 = tpu.concatenate %22, %24, %26 in 1 : vector<256x4xf32>, vector<256x4xf32>, vector<256x4xf32> -> vector<256x12xf32>
    %28 = arith.truncf %27 : vector<256x12xf32> to vector<256x12xbf16>
    %c1_38 = arith.constant 1 : index
    %c0_39 = arith.constant 0 : index
    %c0_40 = arith.constant 0 : index
    %29 = vector.load %arg2[%c1_38, %c0_39, %c0_40] : memref<3x12x8xbf16, #tpu.memory_space<vmem>>, vector<1x12x8xbf16>
    %30 = vector.shape_cast %29 : vector<1x12x8xbf16> to vector<12x8xbf16>
    %cst_41 = arith.constant dense<0.000000e+00> : vector<256x8xf32>
    %31 = tpu.matmul %28, %30, %cst_41 {dimension_numbers = #tpu.dot_dimension_numbers<[1], [0], [0], [1], [0, 0, 1, 1], [], []>} : vector<256x12xbf16>, vector<12x8xbf16>, vector<256x8xf32> -> vector<256x8xf32>
    %32 = arith.addf %20, %31 : vector<256x8xf32>
    %c2_42 = arith.constant 2 : index
    %c0_43 = arith.constant 0 : index
    %c0_44 = arith.constant 0 : index
    %33 = vector.load %arg9[%c2_42, %c0_43, %c0_44] : memref<18x18x4xf32, #tpu.memory_space<vmem>>, vector<16x16x4xf32>
    %34 = vector.shape_cast %33 : vector<16x16x4xf32> to vector<256x4xf32>
    %c2_45 = arith.constant 2 : index
    %c1_46 = arith.constant 1 : index
    %c0_47 = arith.constant 0 : index
    %35 = vector.load %arg9[%c2_45, %c1_46, %c0_47] : memref<18x18x4xf32, #tpu.memory_space<vmem>>, vector<16x16x4xf32>
    %36 = vector.shape_cast %35 : vector<16x16x4xf32> to vector<256x4xf32>
    %c2_48 = arith.constant 2 : index
    %c2_49 = arith.constant 2 : index
    %c0_50 = arith.constant 0 : index
    %37 = vector.load %arg9[%c2_48, %c2_49, %c0_50] : memref<18x18x4xf32, #tpu.memory_space<vmem>>, vector<16x16x4xf32>
    %38 = vector.shape_cast %37 : vector<16x16x4xf32> to vector<256x4xf32>
    %39 = tpu.concatenate %34, %36, %38 in 1 : vector<256x4xf32>, vector<256x4xf32>, vector<256x4xf32> -> vector<256x12xf32>
    %40 = arith.truncf %39 : vector<256x12xf32> to vector<256x12xbf16>
    %c2_51 = arith.constant 2 : index
    %c0_52 = arith.constant 0 : index
    %c0_53 = arith.constant 0 : index
    %41 = vector.load %arg2[%c2_51, %c0_52, %c0_53] : memref<3x12x8xbf16, #tpu.memory_space<vmem>>, vector<1x12x8xbf16>
    %42 = vector.shape_cast %41 : vector<1x12x8xbf16> to vector<12x8xbf16>
    %cst_54 = arith.constant dense<0.000000e+00> : vector<256x8xf32>
    %43 = tpu.matmul %40, %42, %cst_54 {dimension_numbers = #tpu.dot_dimension_numbers<[1], [0], [0], [1], [0, 0, 1, 1], [], []>} : vector<256x12xbf16>, vector<12x8xbf16>, vector<256x8xf32> -> vector<256x8xf32>
    %44 = arith.addf %32, %43 : vector<256x8xf32>
    %c0_55 = arith.constant 0 : index
    %c0_56 = arith.constant 0 : index
    %45 = vector.load %arg3[%c0_55, %c0_56] : memref<1x8xf32, #tpu.memory_space<vmem>>, vector<1x8xf32>
    %46 = vector.broadcast %45 : vector<1x8xf32> to vector<256x8xf32>
    %47 = arith.addf %44, %46 : vector<256x8xf32>
    %cst_57 = arith.constant 0.000000e+00 : f32
    %48 = vector.broadcast %cst_57 : f32 to vector<256x8xf32>
    %49 = arith.maximumf %47, %48 : vector<256x8xf32>
    %cst_58 = arith.constant 0.000000e+00 : f32
    %50 = vector.broadcast %cst_58 : f32 to vector<1x18x8xf32>
    %cst_59 = arith.constant 0.000000e+00 : f32
    %51 = vector.broadcast %cst_59 : f32 to vector<16x1x8xf32>
    %c0_60 = arith.constant 0 : index
    %c0_61 = arith.constant 0 : index
    %c0_62 = arith.constant 0 : index
    %52 = vector.load %arg10[%c0_60, %c0_61, %c0_62] : memref<18x18x8xf32, #tpu.memory_space<vmem>>, vector<1x18x8xf32>
    tpu.vector_store %arg10[%c0_60, %c0_61, %c0_62], %50 {strides = array<i32>} : memref<18x18x8xf32, #tpu.memory_space<vmem>>, vector<1x18x8xf32>,
    %c17_63 = arith.constant 17 : index
    %c0_64 = arith.constant 0 : index
    %c0_65 = arith.constant 0 : index
    %53 = vector.load %arg10[%c17_63, %c0_64, %c0_65] : memref<18x18x8xf32, #tpu.memory_space<vmem>>, vector<1x18x8xf32>
    tpu.vector_store %arg10[%c17_63, %c0_64, %c0_65], %50 {strides = array<i32>} : memref<18x18x8xf32, #tpu.memory_space<vmem>>, vector<1x18x8xf32>,
    %c1_66 = arith.constant 1 : index
    %c0_67 = arith.constant 0 : index
    %c0_68 = arith.constant 0 : index
    %54 = vector.load %arg10[%c1_66, %c0_67, %c0_68] : memref<18x18x8xf32, #tpu.memory_space<vmem>>, vector<16x1x8xf32>
    tpu.vector_store %arg10[%c1_66, %c0_67, %c0_68], %51 {strides = array<i32>} : memref<18x18x8xf32, #tpu.memory_space<vmem>>, vector<16x1x8xf32>,
    %c1_69 = arith.constant 1 : index
    %c17_70 = arith.constant 17 : index
    %c0_71 = arith.constant 0 : index
    %55 = vector.load %arg10[%c1_69, %c17_70, %c0_71] : memref<18x18x8xf32, #tpu.memory_space<vmem>>, vector<16x1x8xf32>
    tpu.vector_store %arg10[%c1_69, %c17_70, %c0_71], %51 {strides = array<i32>} : memref<18x18x8xf32, #tpu.memory_space<vmem>>, vector<16x1x8xf32>,
    %56 = vector.shape_cast %49 : vector<256x8xf32> to vector<16x16x8xf32>
    %c1_72 = arith.constant 1 : index
    %c1_73 = arith.constant 1 : index
    %c0_74 = arith.constant 0 : index
    %57 = vector.load %arg10[%c1_72, %c1_73, %c0_74] : memref<18x18x8xf32, #tpu.memory_space<vmem>>, vector<16x16x8xf32>
    tpu.vector_store %arg10[%c1_72, %c1_73, %c0_74], %56 {strides = array<i32>} : memref<18x18x8xf32, #tpu.memory_space<vmem>>, vector<16x16x8xf32>,
    %c0_75 = arith.constant 0 : index
    %c0_76 = arith.constant 0 : index
    %c0_77 = arith.constant 0 : index
    %58 = vector.load %arg10[%c0_75, %c0_76, %c0_77] : memref<18x18x8xf32, #tpu.memory_space<vmem>>, vector<16x16x8xf32>
    %59 = vector.shape_cast %58 : vector<16x16x8xf32> to vector<256x8xf32>
    %c0_78 = arith.constant 0 : index
    %c1_79 = arith.constant 1 : index
    %c0_80 = arith.constant 0 : index
    %60 = vector.load %arg10[%c0_78, %c1_79, %c0_80] : memref<18x18x8xf32, #tpu.memory_space<vmem>>, vector<16x16x8xf32>
    %61 = vector.shape_cast %60 : vector<16x16x8xf32> to vector<256x8xf32>
    %c0_81 = arith.constant 0 : index
    %c2_82 = arith.constant 2 : index
    %c0_83 = arith.constant 0 : index
    %62 = vector.load %arg10[%c0_81, %c2_82, %c0_83] : memref<18x18x8xf32, #tpu.memory_space<vmem>>, vector<16x16x8xf32>
    %63 = vector.shape_cast %62 : vector<16x16x8xf32> to vector<256x8xf32>
    %64 = tpu.concatenate %59, %61, %63 in 1 : vector<256x8xf32>, vector<256x8xf32>, vector<256x8xf32> -> vector<256x24xf32>
    %65 = arith.truncf %64 : vector<256x24xf32> to vector<256x24xbf16>
    %c0_84 = arith.constant 0 : index
    %c0_85 = arith.constant 0 : index
    %c0_86 = arith.constant 0 : index
    %66 = vector.load %arg4[%c0_84, %c0_85, %c0_86] : memref<3x24x8xbf16, #tpu.memory_space<vmem>>, vector<1x24x8xbf16>
    %67 = vector.shape_cast %66 : vector<1x24x8xbf16> to vector<24x8xbf16>
    %cst_87 = arith.constant dense<0.000000e+00> : vector<256x8xf32>
    %68 = tpu.matmul %65, %67, %cst_87 {dimension_numbers = #tpu.dot_dimension_numbers<[1], [0], [0], [1], [0, 0, 1, 1], [], []>} : vector<256x24xbf16>, vector<24x8xbf16>, vector<256x8xf32> -> vector<256x8xf32>
    %c1_88 = arith.constant 1 : index
    %c0_89 = arith.constant 0 : index
    %c0_90 = arith.constant 0 : index
    %69 = vector.load %arg10[%c1_88, %c0_89, %c0_90] : memref<18x18x8xf32, #tpu.memory_space<vmem>>, vector<16x16x8xf32>
    %70 = vector.shape_cast %69 : vector<16x16x8xf32> to vector<256x8xf32>
    %c1_91 = arith.constant 1 : index
    %c1_92 = arith.constant 1 : index
    %c0_93 = arith.constant 0 : index
    %71 = vector.load %arg10[%c1_91, %c1_92, %c0_93] : memref<18x18x8xf32, #tpu.memory_space<vmem>>, vector<16x16x8xf32>
    %72 = vector.shape_cast %71 : vector<16x16x8xf32> to vector<256x8xf32>
    %c1_94 = arith.constant 1 : index
    %c2_95 = arith.constant 2 : index
    %c0_96 = arith.constant 0 : index
    %73 = vector.load %arg10[%c1_94, %c2_95, %c0_96] : memref<18x18x8xf32, #tpu.memory_space<vmem>>, vector<16x16x8xf32>
    %74 = vector.shape_cast %73 : vector<16x16x8xf32> to vector<256x8xf32>
    %75 = tpu.concatenate %70, %72, %74 in 1 : vector<256x8xf32>, vector<256x8xf32>, vector<256x8xf32> -> vector<256x24xf32>
    %76 = arith.truncf %75 : vector<256x24xf32> to vector<256x24xbf16>
    %c1_97 = arith.constant 1 : index
    %c0_98 = arith.constant 0 : index
    %c0_99 = arith.constant 0 : index
    %77 = vector.load %arg4[%c1_97, %c0_98, %c0_99] : memref<3x24x8xbf16, #tpu.memory_space<vmem>>, vector<1x24x8xbf16>
    %78 = vector.shape_cast %77 : vector<1x24x8xbf16> to vector<24x8xbf16>
    %cst_100 = arith.constant dense<0.000000e+00> : vector<256x8xf32>
    %79 = tpu.matmul %76, %78, %cst_100 {dimension_numbers = #tpu.dot_dimension_numbers<[1], [0], [0], [1], [0, 0, 1, 1], [], []>} : vector<256x24xbf16>, vector<24x8xbf16>, vector<256x8xf32> -> vector<256x8xf32>
    %80 = arith.addf %68, %79 : vector<256x8xf32>
    %c2_101 = arith.constant 2 : index
    %c0_102 = arith.constant 0 : index
    %c0_103 = arith.constant 0 : index
    %81 = vector.load %arg10[%c2_101, %c0_102, %c0_103] : memref<18x18x8xf32, #tpu.memory_space<vmem>>, vector<16x16x8xf32>
    %82 = vector.shape_cast %81 : vector<16x16x8xf32> to vector<256x8xf32>
    %c2_104 = arith.constant 2 : index
    %c1_105 = arith.constant 1 : index
    %c0_106 = arith.constant 0 : index
    %83 = vector.load %arg10[%c2_104, %c1_105, %c0_106] : memref<18x18x8xf32, #tpu.memory_space<vmem>>, vector<16x16x8xf32>
    %84 = vector.shape_cast %83 : vector<16x16x8xf32> to vector<256x8xf32>
    %c2_107 = arith.constant 2 : index
    %c2_108 = arith.constant 2 : index
    %c0_109 = arith.constant 0 : index
    %85 = vector.load %arg10[%c2_107, %c2_108, %c0_109] : memref<18x18x8xf32, #tpu.memory_space<vmem>>, vector<16x16x8xf32>
    %86 = vector.shape_cast %85 : vector<16x16x8xf32> to vector<256x8xf32>
    %87 = tpu.concatenate %82, %84, %86 in 1 : vector<256x8xf32>, vector<256x8xf32>, vector<256x8xf32> -> vector<256x24xf32>
    %88 = arith.truncf %87 : vector<256x24xf32> to vector<256x24xbf16>
    %c2_110 = arith.constant 2 : index
    %c0_111 = arith.constant 0 : index
    %c0_112 = arith.constant 0 : index
    %89 = vector.load %arg4[%c2_110, %c0_111, %c0_112] : memref<3x24x8xbf16, #tpu.memory_space<vmem>>, vector<1x24x8xbf16>
    %90 = vector.shape_cast %89 : vector<1x24x8xbf16> to vector<24x8xbf16>
    %cst_113 = arith.constant dense<0.000000e+00> : vector<256x8xf32>
    %91 = tpu.matmul %88, %90, %cst_113 {dimension_numbers = #tpu.dot_dimension_numbers<[1], [0], [0], [1], [0, 0, 1, 1], [], []>} : vector<256x24xbf16>, vector<24x8xbf16>, vector<256x8xf32> -> vector<256x8xf32>
    %92 = arith.addf %80, %91 : vector<256x8xf32>
    %c0_114 = arith.constant 0 : index
    %c0_115 = arith.constant 0 : index
    %93 = vector.load %arg5[%c0_114, %c0_115] : memref<1x8xf32, #tpu.memory_space<vmem>>, vector<1x8xf32>
    %94 = vector.broadcast %93 : vector<1x8xf32> to vector<256x8xf32>
    %95 = arith.addf %92, %94 : vector<256x8xf32>
    %c1_116 = arith.constant 1 : index
    %c1_117 = arith.constant 1 : index
    %c0_118 = arith.constant 0 : index
    %96 = vector.load %arg9[%c1_116, %c1_117, %c0_118] : memref<18x18x4xf32, #tpu.memory_space<vmem>>, vector<16x16x4xf32>
    %97 = vector.shape_cast %96 : vector<16x16x4xf32> to vector<256x4xf32>
    %98 = arith.truncf %97 : vector<256x4xf32> to vector<256x4xbf16>
    %c0_119 = arith.constant 0 : index
    %c0_120 = arith.constant 0 : index
    %99 = vector.load %arg6[%c0_119, %c0_120] : memref<4x8xbf16, #tpu.memory_space<vmem>>, vector<4x8xbf16>
    %cst_121 = arith.constant dense<0.000000e+00> : vector<256x8xf32>
    %100 = tpu.matmul %98, %99, %cst_121 {dimension_numbers = #tpu.dot_dimension_numbers<[1], [0], [0], [1], [0, 0, 1, 1], [], []>} : vector<256x4xbf16>, vector<4x8xbf16>, vector<256x8xf32> -> vector<256x8xf32>
    %c0_122 = arith.constant 0 : index
    %c0_123 = arith.constant 0 : index
    %101 = vector.load %arg7[%c0_122, %c0_123] : memref<1x8xf32, #tpu.memory_space<vmem>>, vector<1x8xf32>
    %102 = vector.broadcast %101 : vector<1x8xf32> to vector<256x8xf32>
    %103 = arith.addf %100, %102 : vector<256x8xf32>
    %104 = arith.addf %95, %103 : vector<256x8xf32>
    %cst_124 = arith.constant 0.000000e+00 : f32
    %105 = vector.broadcast %cst_124 : f32 to vector<256x8xf32>
    %106 = arith.maximumf %104, %105 : vector<256x8xf32>
    %107 = vector.shape_cast %106 : vector<256x8xf32> to vector<1x16x16x8xf32>
    %108 = arith.truncf %107 : vector<1x16x16x8xf32> to vector<1x16x16x8xbf16>
    %c0_125 = arith.constant 0 : index
    %c0_126 = arith.constant 0 : index
    %c0_127 = arith.constant 0 : index
    %c0_128 = arith.constant 0 : index
    %109 = vector.load %arg8[%c0_125, %c0_126, %c0_127, %c0_128] : memref<1x16x16x8xbf16, #tpu.memory_space<vmem>>, vector<1x16x16x8xbf16>
    tpu.vector_store %arg8[%c0_125, %c0_126, %c0_127, %c0_128], %108 {strides = array<i32>} : memref<1x16x16x8xbf16, #tpu.memory_space<vmem>>, vector<1x16x16x8xbf16>,
    return
  }
  func.func @transform_0(%arg0: i32) -> (i32, i32, i32, i32) {
    %c0_i32 = arith.constant 0 : i32
    %c0_i32_0 = arith.constant 0 : i32
    %c0_i32_1 = arith.constant 0 : i32
    %c0_i32_2 = arith.constant 0 : i32
    return %arg0, %c0_i32, %c0_i32_0, %c0_i32_1 : i32, i32, i32, i32
  }
  func.func @transform_1(%arg0: i32) -> (i32, i32, i32) {
    %c0_i32 = arith.constant 0 : i32
    %c0_i32_0 = arith.constant 0 : i32
    %c0_i32_1 = arith.constant 0 : i32
    %c0_i32_2 = arith.constant 0 : i32
    return %c0_i32, %c0_i32_0, %c0_i32_1 : i32, i32, i32
  }
  func.func @transform_2(%arg0: i32) -> (i32, i32) {
    %c0_i32 = arith.constant 0 : i32
    %c0_i32_0 = arith.constant 0 : i32
    %c0_i32_1 = arith.constant 0 : i32
    return %c0_i32, %c0_i32_0 : i32, i32
  }
  func.func @transform_3(%arg0: i32) -> (i32, i32, i32) {
    %c0_i32 = arith.constant 0 : i32
    %c0_i32_0 = arith.constant 0 : i32
    %c0_i32_1 = arith.constant 0 : i32
    %c0_i32_2 = arith.constant 0 : i32
    return %c0_i32, %c0_i32_0, %c0_i32_1 : i32, i32, i32
  }
  func.func @transform_4(%arg0: i32) -> (i32, i32) {
    %c0_i32 = arith.constant 0 : i32
    %c0_i32_0 = arith.constant 0 : i32
    %c0_i32_1 = arith.constant 0 : i32
    return %c0_i32, %c0_i32_0 : i32, i32
  }
  func.func @transform_5(%arg0: i32) -> (i32, i32) {
    %c0_i32 = arith.constant 0 : i32
    %c0_i32_0 = arith.constant 0 : i32
    %c0_i32_1 = arith.constant 0 : i32
    return %c0_i32, %c0_i32_0 : i32, i32
  }
  func.func @transform_6(%arg0: i32) -> (i32, i32) {
    %c0_i32 = arith.constant 0 : i32
    %c0_i32_0 = arith.constant 0 : i32
    %c0_i32_1 = arith.constant 0 : i32
    return %c0_i32, %c0_i32_0 : i32, i32
  }
  func.func @transform_7(%arg0: i32) -> (i32, i32, i32, i32) {
    %c0_i32 = arith.constant 0 : i32
    %c0_i32_0 = arith.constant 0 : i32
    %c0_i32_1 = arith.constant 0 : i32
    %c0_i32_2 = arith.constant 0 : i32
    return %arg0, %c0_i32, %c0_i32_0, %c0_i32_1 : i32, i32, i32, i32
  }
}

</mosaic_0001>

<llo_original>
// kernel: tpu_custom_call.1
$region0: #{tpu_custom_call.1}
  #allocation0 [shape = 'u32[]', space=smem, size = 0x4, offset = 0x4, fixed_abs, tag = 'smem constant byte address 0x4 - core index']
  #allocation1 [shape = 'u32[144,128]{1,0:T(1,128)}', space=vmem, size = 0x12000, scoped, tag = 'internal scratch']
  #allocation2 [shape = 'f32[18,18,4]{2,1,0:T(8,128)}', space=vmem, size = 0x36000, scoped, tag = 'scratch operand']
  #allocation3 [shape = 'f32[18,18,8]{2,1,0:T(8,128)}', space=vmem, size = 0x36000, scoped, tag = 'scratch operand']
  %s0 = inlined_call_operand.vmem [shape: bf16[2,16,16,4], index: 0, kind: input, shape index: {}]
  %s1 = inlined_call_operand.vmem [shape: bf16[3,12,8], index: 1, kind: input, shape index: {}]
  %s2 = inlined_call_operand.vmem [shape: f32[1,8], index: 2, kind: input, shape index: {}]
  %s3 = inlined_call_operand.vmem [shape: bf16[3,24,8], index: 3, kind: input, shape index: {}]
  %s4 = inlined_call_operand.vmem [shape: f32[1,8], index: 4, kind: input, shape index: {}]
  %s5 = inlined_call_operand.vmem [shape: bf16[4,8], index: 5, kind: input, shape index: {}]
  %s6 = inlined_call_operand.vmem [shape: f32[1,8], index: 6, kind: input, shape index: {}]
  %s7 = inlined_call_operand.vmem [shape: bf16[2,16,16,8], index: 7, kind: output, shape index: {}]
  %s8 = sld [smem:[#allocation0]]
  $region61: #{tpu_custom_call.1} parent=0
    _
  %s10 = ssub.s32 1, %s8
  %s11 = scalar_select 0, %s10, %s8
  loop: start=0, step=1, limit=4
  $region2: #{tpu_custom_call.1} parent=0 // loop_pre_header
    _
  $region3: #{tpu_custom_call.1} parent=0 // loop_header
    %s13 = sphi 0, %s17
    %p14 = scmp.ge.s32.totalorder %s13, 4
    %s23 = sphi 0, %s25
    %s26 = sphi 0, %s23
    %s27 = sphi 0, %s26
    %s43 = sphi 0, %s27
    %s47 = sphi 0, %s47
    %s49 = sphi 0, %s47
    %s50 = sphi 0, %s49
    %s64 = sphi 0, %s50
    %s68 = sphi 0, %s68
    %s70 = sphi 0, %s68
    %s71 = sphi 0, %s70
    %s85 = sphi 0, %s71
    %s89 = sphi 0, %s89
    %s91 = sphi 0, %s89
    %s92 = sphi 0, %s91
    %s106 = sphi 0, %s92
    %s110 = sphi 0, %s110
    %s112 = sphi 0, %s110
    %s113 = sphi 0, %s112
    %s127 = sphi 0, %s113
    %s131 = sphi 0, %s131
    %s133 = sphi 0, %s131
    %s134 = sphi 0, %s133
    %s148 = sphi 0, %s134
    %s152 = sphi 0, %s152
    %s154 = sphi 0, %s152
    %s155 = sphi 0, %s154
    %s169 = sphi 0, %s155
    %s175 = sphi 0, %s177
    %s178 = sphi 0, %s175
    %s179 = sphi 0, %s178
    %s195 = sphi 0, %s179
  $region4: #{tpu_custom_call.1} parent=0 // loop_header_branch
    %16 = sbr.rel (%p14) target = $region8
  $region5: #{tpu_custom_call.1} parent=0 // loop_body
    %s18 = ssub.s32 %s13, 1
    %s19 = ssub.s32 %s13, 2
    %s20 = sadd.s32 %s13, 1
    %s21 = ssub.s32 %s13, %s20
    %p22 = scmp.eq.s32.totalorder %s21, 0
    %s24 = sadd.s32 %s23, 1
    %s25 = scalar_select %p22, %s23, %s24
    %p28 = pneg %p22
    %p29 = scmp.eq.s32.totalorder %s13, 1
    %p30 = por %p28, %p29
    %p31 = scmp.ne.s32.totalorder %s23, %s26
    %p32 = scmp.eq.s32.totalorder %s13, 0
    %p33 = por %p31, %p32
    %p34 = scmp.ne.s32.totalorder %s23, %s26
    %p35 = scmp.eq.s32.totalorder %s18, 1
    %p36 = por %p34, %p35
    %p37 = scmp.ne.s32.totalorder %s26, %s27
    %p38 = scmp.eq.s32.totalorder %s18, 0
    %p39 = por %p37, %p38
    %p40 = scmp.ne.s32.totalorder %s26, %s27
    %p41 = scmp.eq.s32.totalorder %s19, 1
    %p42 = por %p40, %p41
    %p44 = scmp.ne.s32.totalorder %s27, %s43
    %p45 = scmp.eq.s32.totalorder %s19, 0
    %p46 = por %p44, %p45
    %s48 = sadd.s32 %s47, 1
    %p51 = scmp.eq.s32.totalorder %s13, 1
    %p52 = scmp.ne.s32.totalorder %s47, %s49
    %p53 = scmp.eq.s32.totalorder %s13, 0
    %p54 = por %p52, %p53
    %p55 = scmp.ne.s32.totalorder %s47, %s49
    %p56 = scmp.eq.s32.totalorder %s18, 1
    %p57 = por %p55, %p56
    %p58 = scmp.ne.s32.totalorder %s49, %s50
    %p59 = scmp.eq.s32.totalorder %s18, 0
    %p60 = por %p58, %p59
    %p61 = scmp.ne.s32.totalorder %s49, %s50
    %p62 = scmp.eq.s32.totalorder %s19, 1
    %p63 = por %p61, %p62
    %p65 = scmp.ne.s32.totalorder %s50, %s64
    %p66 = scmp.eq.s32.totalorder %s19, 0
    %p67 = por %p65, %p66
    %s69 = sadd.s32 %s68, 1
    %p72 = scmp.eq.s32.totalorder %s13, 1
    %p73 = scmp.ne.s32.totalorder %s68, %s70
    %p74 = scmp.eq.s32.totalorder %s13, 0
    %p75 = por %p73, %p74
    %p76 = scmp.ne.s32.totalorder %s68, %s70
    %p77 = scmp.eq.s32.totalorder %s18, 1
    %p78 = por %p76, %p77
    %p79 = scmp.ne.s32.totalorder %s70, %s71
    %p80 = scmp.eq.s32.totalorder %s18, 0
    %p81 = por %p79, %p80
    %p82 = scmp.ne.s32.totalorder %s70, %s71
    %p83 = scmp.eq.s32.totalorder %s19, 1
    %p84 = por %p82, %p83
    %p86 = scmp.ne.s32.totalorder %s71, %s85
    %p87 = scmp.eq.s32.totalorder %s19, 0
    %p88 = por %p86, %p87
    %s90 = sadd.s32 %s89, 1
    %p93 = scmp.eq.s32.totalorder %s13, 1
    %p94 = scmp.ne.s32.totalorder %s89, %s91
    %p95 = scmp.eq.s32.totalorder %s13, 0
    %p96 = por %p94, %p95
    %p97 = scmp.ne.s32.totalorder %s89, %s91
    %p98 = scmp.eq.s32.totalorder %s18, 1
    %p99 = por %p97, %p98
    %p100 = scmp.ne.s32.totalorder %s91, %s92
    %p101 = scmp.eq.s32.totalorder %s18, 0
    %p102 = por %p100, %p101
    %p103 = scmp.ne.s32.totalorder %s91, %s92
    %p104 = scmp.eq.s32.totalorder %s19, 1
    %p105 = por %p103, %p104
    %p107 = scmp.ne.s32.totalorder %s92, %s106
    %p108 = scmp.eq.s32.totalorder %s19, 0
    %p109 = por %p107, %p108
    %s111 = sadd.s32 %s110, 1
    %p114 = scmp.eq.s32.totalorder %s13, 1
    %p115 = scmp.ne.s32.totalorder %s110, %s112
    %p116 = scmp.eq.s32.totalorder %s13, 0
    %p117 = por %p115, %p116
    %p118 = scmp.ne.s32.totalorder %s110, %s112
    %p119 = scmp.eq.s32.totalorder %s18, 1
    %p120 = por %p118, %p119
    %p121 = scmp.ne.s32.totalorder %s112, %s113
    %p122 = scmp.eq.s32.totalorder %s18, 0
    %p123 = por %p121, %p122
    %p124 = scmp.ne.s32.totalorder %s112, %s113
    %p125 = scmp.eq.s32.totalorder %s19, 1
    %p126 = por %p124, %p125
    %p128 = scmp.ne.s32.totalorder %s113, %s127
    %p129 = scmp.eq.s32.totalorder %s19, 0
    %p130 = por %p128, %p129
    %s132 = sadd.s32 %s131, 1
    %p135 = scmp.eq.s32.totalorder %s13, 1
    %p136 = scmp.ne.s32.totalorder %s131, %s133
    %p137 = scmp.eq.s32.totalorder %s13, 0
    %p138 = por %p136, %p137
    %p139 = scmp.ne.s32.totalorder %s131, %s133
    %p140 = scmp.eq.s32.totalorder %s18, 1
    %p141 = por %p139, %p140
    %p142 = scmp.ne.s32.totalorder %s133, %s134
    %p143 = scmp.eq.s32.totalorder %s18, 0
    %p144 = por %p142, %p143
    %p145 = scmp.ne.s32.totalorder %s133, %s134
    %p146 = scmp.eq.s32.totalorder %s19, 1
    %p147 = por %p145, %p146
    %p149 = scmp.ne.s32.totalorder %s134, %s148
    %p150 = scmp.eq.s32.totalorder %s19, 0
    %p151 = por %p149, %p150
    %s153 = sadd.s32 %s152, 1
    %p156 = scmp.eq.s32.totalorder %s13, 1
    %p157 = scmp.ne.s32.totalorder %s152, %s154
    %p158 = scmp.eq.s32.totalorder %s13, 0
    %p159 = por %p157, %p158
    %p160 = scmp.ne.s32.totalorder %s152, %s154
    %p161 = scmp.eq.s32.totalorder %s18, 1
    %p162 = por %p160, %p161
    %p163 = scmp.ne.s32.totalorder %s154, %s155
    %p164 = scmp.eq.s32.totalorder %s18, 0
    %p165 = por %p163, %p164
    %p166 = scmp.ne.s32.totalorder %s154, %s155
    %p167 = scmp.eq.s32.totalorder %s19, 1
    %p168 = por %p166, %p167
    %p170 = scmp.ne.s32.totalorder %s155, %s169
    %p171 = scmp.eq.s32.totalorder %s19, 0
    %p172 = por %p170, %p171
    %s173 = ssub.s32 %s13, %s20
    %p174 = scmp.eq.s32.totalorder %s173, 0
    %s176 = sadd.s32 %s175, 1
    %s177 = scalar_select %p174, %s175, %s176
    %p180 = pneg %p174
    %p181 = scmp.eq.s32.totalorder %s13, 1
    %p182 = por %p180, %p181
    %p183 = scmp.ne.s32.totalorder %s175, %s178
    %p184 = scmp.eq.s32.totalorder %s13, 0
    %p185 = por %p183, %p184
    %p186 = scmp.ne.s32.totalorder %s175, %s178
    %p187 = scmp.eq.s32.totalorder %s18, 1
    %p188 = por %p186, %p187
    %p189 = scmp.ne.s32.totalorder %s178, %s179
    %p190 = scmp.eq.s32.totalorder %s18, 0
    %p191 = por %p189, %p190
    %p192 = scmp.ne.s32.totalorder %s178, %s179
    %p193 = scmp.eq.s32.totalorder %s19, 1
    %p194 = por %p192, %p193
    %p196 = scmp.ne.s32.totalorder %s179, %s195
    %p197 = scmp.eq.s32.totalorder %s19, 0
    %p198 = por %p196, %p197
    %p199 = scmp.le.s32.totalorder 1, %s13
    %p200 = scmp.lt.s32.totalorder %s13, 3
    %p201 = pnand %p199, %p200
    %p202 = pneg %p201
    // Predicated region
    $region9: #{tpu_custom_call.1} parent=5 // pred_check
      _
    $region10: #{tpu_custom_call.1} parent=5 // pred_check_branch
      %204 = sbr.rel (%p201) target = $region12
    $region11: #{tpu_custom_call.1} parent=5 // pred_region
      %s205 = ssub.s32 %s13, 1
      // Predicated region
      $region13: #{tpu_custom_call.1} parent=11 // pred_check
        %p206 = pneg %p60
      $region14: #{tpu_custom_call.1} parent=11 // pred_check_branch
        %208 = sbr.rel (%p206) target = $region16
      $region15: #{tpu_custom_call.1} parent=11 // pred_region
        _
      $region16: #{tpu_custom_call.1} parent=11 // pred_fallthru
        _
      // Predicated region
      $region17: #{tpu_custom_call.1} parent=11 // pred_check
        %p209 = pneg %p81
      $region18: #{tpu_custom_call.1} parent=11 // pred_check_branch
        %211 = sbr.rel (%p209) target = $region20
      $region19: #{tpu_custom_call.1} parent=11 // pred_region
        _
      $region20: #{tpu_custom_call.1} parent=11 // pred_fallthru
        _
      // Predicated region
      $region21: #{tpu_custom_call.1} parent=11 // pred_check
        %p212 = pneg %p102
      $region22: #{tpu_custom_call.1} parent=11 // pred_check_branch
        %214 = sbr.rel (%p212) target = $region24
      $region23: #{tpu_custom_call.1} parent=11 // pred_region
        _
      $region24: #{tpu_custom_call.1} parent=11 // pred_fallthru
        _
      // Predicated region
      $region25: #{tpu_custom_call.1} parent=11 // pred_check
        %p215 = pneg %p123
      $region26: #{tpu_custom_call.1} parent=11 // pred_check_branch
        %217 = sbr.rel (%p215) target = $region28
      $region27: #{tpu_custom_call.1} parent=11 // pred_region
        _
      $region28: #{tpu_custom_call.1} parent=11 // pred_fallthru
        _
      // Predicated region
      $region29: #{tpu_custom_call.1} parent=11 // pred_check
        %p218 = pneg %p144
      $region30: #{tpu_custom_call.1} parent=11 // pred_check_branch
        %220 = sbr.rel (%p218) target = $region32
      $region31: #{tpu_custom_call.1} parent=11 // pred_region
        _
      $region32: #{tpu_custom_call.1} parent=11 // pred_fallthru
        _
      // Predicated region
      $region33: #{tpu_custom_call.1} parent=11 // pred_check
        %p221 = pneg %p165
      $region34: #{tpu_custom_call.1} parent=11 // pred_check_branch
        %223 = sbr.rel (%p221) target = $region36
      $region35: #{tpu_custom_call.1} parent=11 // pred_region
        _
      $region36: #{tpu_custom_call.1} parent=11 // pred_fallthru
        _
    $region12: #{tpu_custom_call.1} parent=5 // pred_fallthru
      _
    %p224 = scmp.lt.s32.totalorder %s13, 2
    // Predicated region
    $region37: #{tpu_custom_call.1} parent=5 // pred_check
      %p225 = pneg %p224
    $region38: #{tpu_custom_call.1} parent=5 // pred_check_branch
      %227 = sbr.rel (%p225) target = $region40
    $region39: #{tpu_custom_call.1} parent=5 // pred_region
      // Predicated region
      $region41: #{tpu_custom_call.1} parent=39 // pred_check
        %p228 = pneg %p33
      $region42: #{tpu_custom_call.1} parent=39 // pred_check_branch
        %230 = sbr.rel (%p228) target = $region44
      $region43: #{tpu_custom_call.1} parent=39 // pred_region
        %p231 = scmp.lt.s32.totalorder %s13, 1
        %s232 = scalar_select %p231, %s13, 1
        %s233 = smul.addr %s232, 32
        %s234 = smul.addr %s233, 4
        %s235 = scalar_lea.vmem %s0, %s234
      $region44: #{tpu_custom_call.1} parent=39 // pred_fallthru
        _
    $region40: #{tpu_custom_call.1} parent=5 // pred_fallthru
      _
    %p236 = scmp.le.s32.totalorder 1, %s13
    %p237 = scmp.lt.s32.totalorder %s13, 3
    %p238 = pnand %p236, %p237
    %p239 = pneg %p238
    // Predicated region
    $region45: #{tpu_custom_call.1} parent=5 // pred_check
      _
    $region46: #{tpu_custom_call.1} parent=5 // pred_check_branch
      %241 = sbr.rel (%p238) target = $region48
    $region47: #{tpu_custom_call.1} parent=5 // pred_region
      %s242 = ssub.s32 %s13, 1
      %p243 = scmp.lt.s32.totalorder %s18, 1
      %s244 = scalar_select %p243, %s18, 1
      %s245 = smul.addr %s244, 32
      %s246 = smul.addr %s245, 4
      %s247 = scalar_lea.vmem %s0, %s246
      %p248 = pneg %p39
      %p249 = pneg %p36
      %p250 = pneg %p60
      %p251 = pneg %p57
      %p252 = pneg %p81
      %p253 = pneg %p78
      %p254 = pneg %p102
      %p255 = pneg %p99
      %p256 = pneg %p123
      %p257 = pneg %p120
      %p258 = pneg %p144
      %p259 = pneg %p141
      %p260 = pneg %p165
      %p261 = pneg %p162
      %p262 = pneg %p191
      %p263 = pneg %p188
      %p264 = scmp.lt.s32.totalorder %s18, 1
      %s265 = scalar_select %p264, %s18, 1
      %s266 = smul.addr %s265, 32
      %s267 = smul.addr %s266, 4
      %s268 = scalar_lea.vmem %s7, %s267
      %p269 = scmp.lt.s32.totalorder %s18, 1
      %s270 = scalar_select %p269, %s18, 1
      %s271 = smul.addr %s270, 32
      %s272 = smul.addr %s271, 4
      %s273 = scalar_lea.vmem %s0, %s272
      %p274 = scmp.lt.s32.totalorder %s18, 1
      %s275 = scalar_select %p274, %s18, 1
      %s276 = smul.addr %s275, 32
      %s277 = smul.addr %s276, 4
      %s278 = scalar_lea.vmem %s7, %s277
      %vm280 = vcmask 31744
      %281 = vst.msk [vmem:[#allocation2] sm:$0xff] %vm280, 0.0
      %282 = vst.msk [vmem:[#allocation2 + $0x8] sm:$0xff] %vm280, 0.0
      %vm283 = vcmask 25600
      %284 = vst.msk [vmem:[#allocation2 + $0x10] sm:$0x3] %vm283, 0.0
      %s285 = scalar_lea.vmem [#allocation2], 408
      %286 = vst.msk [vmem:[%s285] sm:$0xff] %vm280, 0.0
      %287 = vst.msk [vmem:[%s285 + $0x8] sm:$0xff] %vm280, 0.0
      %288 = vst.msk [vmem:[%s285 + $0x10] sm:$0x3] %vm283, 0.0
      %s289 = scalar_lea.vmem [#allocation2], 24
      %vm290 = vcmask 24576
      %291 = vst.msk [vmem:[%s289] sm:$0x1] %vm290, 0.0
      %292 = vst.msk [vmem:[%s289 + $0x18] sm:$0x1] %vm290, 0.0
      %293 = vst.msk [vmem:[%s289 + $0x30] sm:$0x1] %vm290, 0.0
      %294 = vst.msk [vmem:[%s289 + $0x48] sm:$0x1] %vm290, 0.0
      %295 = vst.msk [vmem:[%s289 + $0x60] sm:$0x1] %vm290, 0.0
      %296 = vst.msk [vmem:[%s289 + $0x78] sm:$0x1] %vm290, 0.0
      %297 = vst.msk [vmem:[%s289 + $0x90] sm:$0x1] %vm290, 0.0
      %298 = vst.msk [vmem:[%s289 + $0xa8] sm:$0x1] %vm290, 0.0
      %299 = vst.msk [vmem:[%s289 + $0xc0] sm:$0x1] %vm290, 0.0
      %300 = vst.msk [vmem:[%s289 + $0xd8] sm:$0x1] %vm290, 0.0
      %301 = vst.msk [vmem:[%s289 + $0xf0] sm:$0x1] %vm290, 0.0
      %302 = vst.msk [vmem:[%s289 + $0x108] sm:$0x1] %vm290, 0.0
      %303 = vst.msk [vmem:[%s289 + $0x120] sm:$0x1] %vm290, 0.0
      %304 = vst.msk [vmem:[%s289 + $0x138] sm:$0x1] %vm290, 0.0
      %305 = vst.msk [vmem:[%s289 + $0x150] sm:$0x1] %vm290, 0.0
      %306 = vst.msk [vmem:[%s289 + $0x168] sm:$0x1] %vm290, 0.0
      %307 = vst.msk [vmem:[%s289 + $0x11] sm:$0x1] %vm290, 0.0
      %308 = vst.msk [vmem:[%s289 + $0x29] sm:$0x1] %vm290, 0.0
      %309 = vst.msk [vmem:[%s289 + $0x41] sm:$0x1] %vm290, 0.0
      %310 = vst.msk [vmem:[%s289 + $0x59] sm:$0x1] %vm290, 0.0
      %311 = vst.msk [vmem:[%s289 + $0x71] sm:$0x1] %vm290, 0.0
      %312 = vst.msk [vmem:[%s289 + $0x89] sm:$0x1] %vm290, 0.0
      %313 = vst.msk [vmem:[%s289 + $0xa1] sm:$0x1] %vm290, 0.0
      %314 = vst.msk [vmem:[%s289 + $0xb9] sm:$0x1] %vm290, 0.0
      %315 = vst.msk [vmem:[%s289 + $0xd1] sm:$0x1] %vm290, 0.0
      %316 = vst.msk [vmem:[%s289 + $0xe9] sm:$0x1] %vm290, 0.0
      %317 = vst.msk [vmem:[%s289 + $0x101] sm:$0x1] %vm290, 0.0
      %318 = vst.msk [vmem:[%s289 + $0x119] sm:$0x1] %vm290, 0.0
      %319 = vst.msk [vmem:[%s289 + $0x131] sm:$0x1] %vm290, 0.0
      %320 = vst.msk [vmem:[%s289 + $0x149] sm:$0x1] %vm290, 0.0
      %321 = vst.msk [vmem:[%s289 + $0x161] sm:$0x1] %vm290, 0.0
      %322 = vst.msk [vmem:[%s289 + $0x179] sm:$0x1] %vm290, 0.0
      %v323 = vld [vmem:[%s273] sm:$0xf]
      %v324 = vld [vmem:[%s273 + $0x4] sm:$0xf]
      %v325 = vld [vmem:[%s273 + $0x8] sm:$0xf]
      %v326 = vld [vmem:[%s273 + $0xc] sm:$0xf]
      %v327 = vld [vmem:[%s273 + $0x10] sm:$0xf]
      %v328 = vld [vmem:[%s273 + $0x14] sm:$0xf]
      %v329 = vld [vmem:[%s273 + $0x18] sm:$0xf]
      %v330 = vld [vmem:[%s273 + $0x1c] sm:$0xf]
      %v331 = vld [vmem:[%s273 + $0x20] sm:$0xf]
      %v332 = vld [vmem:[%s273 + $0x24] sm:$0xf]
      %v333 = vld [vmem:[%s273 + $0x28] sm:$0xf]
      %v334 = vld [vmem:[%s273 + $0x2c] sm:$0xf]
      %v335 = vld [vmem:[%s273 + $0x30] sm:$0xf]
      %v336 = vld [vmem:[%s273 + $0x34] sm:$0xf]
      %v337 = vld [vmem:[%s273 + $0x38] sm:$0xf]
      %v338 = vld [vmem:[%s273 + $0x3c] sm:$0xf]
      %v339 = vld [vmem:[%s273 + $0x40] sm:$0xf]
      %v340 = vld [vmem:[%s273 + $0x44] sm:$0xf]
      %v341 = vld [vmem:[%s273 + $0x48] sm:$0xf]
      %v342 = vld [vmem:[%s273 + $0x4c] sm:$0xf]
      %v343 = vld [vmem:[%s273 + $0x50] sm:$0xf]
      %v344 = vld [vmem:[%s273 + $0x54] sm:$0xf]
      %v345 = vld [vmem:[%s273 + $0x58] sm:$0xf]
      %v346 = vld [vmem:[%s273 + $0x5c] sm:$0xf]
      %v347 = vld [vmem:[%s273 + $0x60] sm:$0xf]
      %v348 = vld [vmem:[%s273 + $0x64] sm:$0xf]
      %v349 = vld [vmem:[%s273 + $0x68] sm:$0xf]
      %v350 = vld [vmem:[%s273 + $0x6c] sm:$0xf]
      %v351 = vld [vmem:[%s273 + $0x70] sm:$0xf]
      %v352 = vld [vmem:[%s273 + $0x74] sm:$0xf]
      %v353 = vld [vmem:[%s273 + $0x78] sm:$0xf]
      %v354 = vld [vmem:[%s273 + $0x7c] sm:$0xf]
      %v355 = vunpack.c.l.bf16 %v323
      %v356 = vunpack.c.l.bf16 %v324
      %v357 = vunpack.c.l.bf16 %v325
      %v358 = vunpack.c.l.bf16 %v326
      %v359 = vunpack.c.l.bf16 %v327
      %v360 = vunpack.c.l.bf16 %v328
      %v361 = vunpack.c.l.bf16 %v329
      %v362 = vunpack.c.l.bf16 %v330
      %v363 = vunpack.c.l.bf16 %v331
      %v364 = vunpack.c.l.bf16 %v332
      %v365 = vunpack.c.l.bf16 %v333
      %v366 = vunpack.c.l.bf16 %v334
      %v367 = vunpack.c.l.bf16 %v335
      %v368 = vunpack.c.l.bf16 %v336
      %v369 = vunpack.c.l.bf16 %v337
      %v370 = vunpack.c.l.bf16 %v338
      %v371 = vunpack.c.l.bf16 %v339
      %v372 = vunpack.c.l.bf16 %v340
      %v373 = vunpack.c.l.bf16 %v341
      %v374 = vunpack.c.l.bf16 %v342
      %v375 = vunpack.c.l.bf16 %v343
      %v376 = vunpack.c.l.bf16 %v344
      %v377 = vunpack.c.l.bf16 %v345
      %v378 = vunpack.c.l.bf16 %v346
      %v379 = vunpack.c.l.bf16 %v347
      %v380 = vunpack.c.l.bf16 %v348
      %v381 = vunpack.c.l.bf16 %v349
      %v382 = vunpack.c.l.bf16 %v350
      %v383 = vunpack.c.l.bf16 %v351
      %v384 = vunpack.c.l.bf16 %v352
      %v385 = vunpack.c.l.bf16 %v353
      %v386 = vunpack.c.l.bf16 %v354
      %387 = vst.msk [vmem:[%s289 + $0x1] sm:$0xff] %vm280, %v355
      %388 = vst.msk [vmem:[%s289 + $0x9] sm:$0xff] %vm280, %v356
      %389 = vst.msk [vmem:[%s289 + $0x19] sm:$0xff] %vm280, %v357
      %390 = vst.msk [vmem:[%s289 + $0x21] sm:$0xff] %vm280, %v358
      %391 = vst.msk [vmem:[%s289 + $0x31] sm:$0xff] %vm280, %v359
      %392 = vst.msk [vmem:[%s289 + $0x39] sm:$0xff] %vm280, %v360
      %393 = vst.msk [vmem:[%s289 + $0x49] sm:$0xff] %vm280, %v361
      %394 = vst.msk [vmem:[%s289 + $0x51] sm:$0xff] %vm280, %v362
      %395 = vst.msk [vmem:[%s289 + $0x61] sm:$0xff] %vm280, %v363
      %396 = vst.msk [vmem:[%s289 + $0x69] sm:$0xff] %vm280, %v364
      %397 = vst.msk [vmem:[%s289 + $0x79] sm:$0xff] %vm280, %v365
      %398 = vst.msk [vmem:[%s289 + $0x81] sm:$0xff] %vm280, %v366
      %399 = vst.msk [vmem:[%s289 + $0x91] sm:$0xff] %vm280, %v367
      %400 = vst.msk [vmem:[%s289 + $0x99] sm:$0xff] %vm280, %v368
      %401 = vst.msk [vmem:[%s289 + $0xa9] sm:$0xff] %vm280, %v369
      %402 = vst.msk [vmem:[%s289 + $0xb1] sm:$0xff] %vm280, %v370
      %403 = vst.msk [vmem:[%s289 + $0xc1] sm:$0xff] %vm280, %v371
      %404 = vst.msk [vmem:[%s289 + $0xc9] sm:$0xff] %vm280, %v372
      %405 = vst.msk [vmem:[%s289 + $0xd9] sm:$0xff] %vm280, %v373
      %406 = vst.msk [vmem:[%s289 + $0xe1] sm:$0xff] %vm280, %v374
      %407 = vst.msk [vmem:[%s289 + $0xf1] sm:$0xff] %vm280, %v375
      %408 = vst.msk [vmem:[%s289 + $0xf9] sm:$0xff] %vm280, %v376
      %409 = vst.msk [vmem:[%s289 + $0x109] sm:$0xff] %vm280, %v377
      %410 = vst.msk [vmem:[%s289 + $0x111] sm:$0xff] %vm280, %v378
      %411 = vst.msk [vmem:[%s289 + $0x121] sm:$0xff] %vm280, %v379
      %412 = vst.msk [vmem:[%s289 + $0x129] sm:$0xff] %vm280, %v380
      %413 = vst.msk [vmem:[%s289 + $0x139] sm:$0xff] %vm280, %v381
      %414 = vst.msk [vmem:[%s289 + $0x141] sm:$0xff] %vm280, %v382
      %415 = vst.msk [vmem:[%s289 + $0x151] sm:$0xff] %vm280, %v383
      %416 = vst.msk [vmem:[%s289 + $0x159] sm:$0xff] %vm280, %v384
      %417 = vst.msk [vmem:[%s289 + $0x169] sm:$0xff] %vm280, %v385
      %418 = vst.msk [vmem:[%s289 + $0x171] sm:$0xff] %vm280, %v386
      %v419 = vld [vmem:[#allocation2] sm:$0xff]
      %v420 = vld [vmem:[#allocation2 + $0x8] sm:$0xff]
      %v421 = vld [vmem:[#allocation2 + $0x18] sm:$0xff]
      %v422 = vld [vmem:[#allocation2 + $0x20] sm:$0xff]
      %v423 = vld [vmem:[#allocation2 + $0x30] sm:$0xff]
      %v424 = vld [vmem:[#allocation2 + $0x38] sm:$0xff]
      %v425 = vld [vmem:[#allocation2 + $0x48] sm:$0xff]
      %v426 = vld [vmem:[#allocation2 + $0x50] sm:$0xff]
      %v427 = vld [vmem:[#allocation2 + $0x60] sm:$0xff]
      %v428 = vld [vmem:[#allocation2 + $0x68] sm:$0xff]
      %v429 = vld [vmem:[#allocation2 + $0x78] sm:$0xff]
      %v430 = vld [vmem:[#allocation2 + $0x80] sm:$0xff]
      %v431 = vld [vmem:[#allocation2 + $0x90] sm:$0xff]
      %v432 = vld [vmem:[#allocation2 + $0x98] sm:$0xff]
      %v433 = vld [vmem:[#allocation2 + $0xa8] sm:$0xff]
      %v434 = vld [vmem:[#allocation2 + $0xb0] sm:$0xff]
      %v435 = vld [vmem:[#allocation2 + $0xc0] sm:$0xff]
      %v436 = vld [vmem:[#allocation2 + $0xc8] sm:$0xff]
      %v437 = vld [vmem:[#allocation2 + $0xd8] sm:$0xff]
      %v438 = vld [vmem:[#allocation2 + $0xe0] sm:$0xff]
      %v439 = vld [vmem:[#allocation2 + $0xf0] sm:$0xff]
      %v440 = vld [vmem:[#allocation2 + $0xf8] sm:$0xff]
      %v441 = vld [vmem:[#allocation2 + $0x108] sm:$0xff]
      %v442 = vld [vmem:[#allocation2 + $0x110] sm:$0xff]
      %v443 = vld [vmem:[#allocation2 + $0x120] sm:$0xff]
      %v444 = vld [vmem:[#allocation2 + $0x128] sm:$0xff]
      %v445 = vld [vmem:[#allocation2 + $0x138] sm:$0xff]
      %v446 = vld [vmem:[#allocation2 + $0x140] sm:$0xff]
      %v447 = vld [vmem:[#allocation2 + $0x150] sm:$0xff]
      %v448 = vld [vmem:[#allocation2 + $0x158] sm:$0xff]
      %v449 = vld [vmem:[#allocation2 + $0x168] sm:$0xff]
      %v450 = vld [vmem:[#allocation2 + $0x170] sm:$0xff]
      %v451 = vld [vmem:[#allocation2 + $0x1] sm:$0xff]
      %v452 = vld [vmem:[#allocation2 + $0x9] sm:$0xff]
      %v453 = vld [vmem:[#allocation2 + $0x19] sm:$0xff]
      %v454 = vld [vmem:[#allocation2 + $0x21] sm:$0xff]
      %v455 = vld [vmem:[#allocation2 + $0x31] sm:$0xff]
      %v456 = vld [vmem:[#allocation2 + $0x39] sm:$0xff]
      %v457 = vld [vmem:[#allocation2 + $0x49] sm:$0xff]
      %v458 = vld [vmem:[#allocation2 + $0x51] sm:$0xff]
      %v459 = vld [vmem:[#allocation2 + $0x61] sm:$0xff]
      %v460 = vld [vmem:[#allocation2 + $0x69] sm:$0xff]
      %v461 = vld [vmem:[#allocation2 + $0x79] sm:$0xff]
      %v462 = vld [vmem:[#allocation2 + $0x81] sm:$0xff]
      %v463 = vld [vmem:[#allocation2 + $0x91] sm:$0xff]
      %v464 = vld [vmem:[#allocation2 + $0x99] sm:$0xff]
      %v465 = vld [vmem:[#allocation2 + $0xa9] sm:$0xff]
      %v466 = vld [vmem:[#allocation2 + $0xb1] sm:$0xff]
      %v467 = vld [vmem:[#allocation2 + $0xc1] sm:$0xff]
      %v468 = vld [vmem:[#allocation2 + $0xc9] sm:$0xff]
      %v469 = vld [vmem:[#allocation2 + $0xd9] sm:$0xff]
      %v470 = vld [vmem:[#allocation2 + $0xe1] sm:$0xff]
      %v471 = vld [vmem:[#allocation2 + $0xf1] sm:$0xff]
      %v472 = vld [vmem:[#allocation2 + $0xf9] sm:$0xff]
      %v473 = vld [vmem:[#allocation2 + $0x109] sm:$0xff]
      %v474 = vld [vmem:[#allocation2 + $0x111] sm:$0xff]
      %v475 = vld [vmem:[#allocation2 + $0x121] sm:$0xff]
      %v476 = vld [vmem:[#allocation2 + $0x129] sm:$0xff]
      %v477 = vld [vmem:[#allocation2 + $0x139] sm:$0xff]
      %v478 = vld [vmem:[#allocation2 + $0x141] sm:$0xff]
      %v479 = vld [vmem:[#allocation2 + $0x151] sm:$0xff]
      %v480 = vld [vmem:[#allocation2 + $0x159] sm:$0xff]
      %v481 = vld [vmem:[#allocation2 + $0x169] sm:$0xff]
      %v482 = vld [vmem:[#allocation2 + $0x171] sm:$0xff]
      %v483 = vld [vmem:[#allocation2 + $0x2] sm:$0xff]
      %v484 = vld [vmem:[#allocation2 + $0xa] sm:$0xff]
      %v485 = vld [vmem:[#allocation2 + $0x1a] sm:$0xff]
      %v486 = vld [vmem:[#allocation2 + $0x22] sm:$0xff]
      %v487 = vld [vmem:[#allocation2 + $0x32] sm:$0xff]
      %v488 = vld [vmem:[#allocation2 + $0x3a] sm:$0xff]
      %v489 = vld [vmem:[#allocation2 + $0x4a] sm:$0xff]
      %v490 = vld [vmem:[#allocation2 + $0x52] sm:$0xff]
      %v491 = vld [vmem:[#allocation2 + $0x62] sm:$0xff]
      %v492 = vld [vmem:[#allocation2 + $0x6a] sm:$0xff]
      %v493 = vld [vmem:[#allocation2 + $0x7a] sm:$0xff]
      %v494 = vld [vmem:[#allocation2 + $0x82] sm:$0xff]
      %v495 = vld [vmem:[#allocation2 + $0x92] sm:$0xff]
      %v496 = vld [vmem:[#allocation2 + $0x9a] sm:$0xff]
      %v497 = vld [vmem:[#allocation2 + $0xaa] sm:$0xff]
      %v498 = vld [vmem:[#allocation2 + $0xb2] sm:$0xff]
      %v499 = vld [vmem:[#allocation2 + $0xc2] sm:$0xff]
      %v500 = vld [vmem:[#allocation2 + $0xca] sm:$0xff]
      %v501 = vld [vmem:[#allocation2 + $0xda] sm:$0xff]
      %v502 = vld [vmem:[#allocation2 + $0xe2] sm:$0xff]
      %v503 = vld [vmem:[#allocation2 + $0xf2] sm:$0xff]
      %v504 = vld [vmem:[#allocation2 + $0xfa] sm:$0xff]
      %v505 = vld [vmem:[#allocation2 + $0x10a] sm:$0xff]
      %v506 = vld [vmem:[#allocation2 + $0x112] sm:$0xff]
      %v507 = vld [vmem:[#allocation2 + $0x122] sm:$0xff]
      %v508 = vld [vmem:[#allocation2 + $0x12a] sm:$0xff]
      %v509 = vld [vmem:[#allocation2 + $0x13a] sm:$0xff]
      %v510 = vld [vmem:[#allocation2 + $0x142] sm:$0xff]
      %v511 = vld [vmem:[#allocation2 + $0x152] sm:$0xff]
      %v512 = vld [vmem:[#allocation2 + $0x15a] sm:$0xff]
      %v513 = vld [vmem:[#allocation2 + $0x16a] sm:$0xff]
      %v514 = vld [vmem:[#allocation2 + $0x172] sm:$0xff]
      %547 = vrot.lane.b32.xlu0 %v451, 4
      %v548 = vpop.permute.xlu0 %547
      %549 = vrot.lane.b32.xlu0 %v452, 4
      %v550 = vpop.permute.xlu0 %549
      %551 = vrot.lane.b32.xlu0 %v453, 4
      %v552 = vpop.permute.xlu0 %551
      %553 = vrot.lane.b32.xlu0 %v454, 4
      %v554 = vpop.permute.xlu0 %553
      %555 = vrot.lane.b32.xlu0 %v455, 4
      %v556 = vpop.permute.xlu0 %555
      %557 = vrot.lane.b32.xlu0 %v456, 4
      %v558 = vpop.permute.xlu0 %557
      %559 = vrot.lane.b32.xlu0 %v457, 4
      %v560 = vpop.permute.xlu0 %559
      %561 = vrot.lane.b32.xlu0 %v458, 4
      %v562 = vpop.permute.xlu0 %561
      %563 = vrot.lane.b32.xlu0 %v459, 4
      %v564 = vpop.permute.xlu0 %563
      %565 = vrot.lane.b32.xlu0 %v460, 4
      %v566 = vpop.permute.xlu0 %565
      %567 = vrot.lane.b32.xlu0 %v461, 4
      %v568 = vpop.permute.xlu0 %567
      %569 = vrot.lane.b32.xlu0 %v462, 4
      %v570 = vpop.permute.xlu0 %569
      %571 = vrot.lane.b32.xlu0 %v463, 4
      %v572 = vpop.permute.xlu0 %571
      %573 = vrot.lane.b32.xlu0 %v464, 4
      %v574 = vpop.permute.xlu0 %573
      %575 = vrot.lane.b32.xlu0 %v465, 4
      %v576 = vpop.permute.xlu0 %575
      %577 = vrot.lane.b32.xlu0 %v466, 4
      %v578 = vpop.permute.xlu0 %577
      %579 = vrot.lane.b32.xlu0 %v467, 4
      %v580 = vpop.permute.xlu0 %579
      %581 = vrot.lane.b32.xlu0 %v468, 4
      %v582 = vpop.permute.xlu0 %581
      %583 = vrot.lane.b32.xlu0 %v469, 4
      %v584 = vpop.permute.xlu0 %583
      %585 = vrot.lane.b32.xlu0 %v470, 4
      %v586 = vpop.permute.xlu0 %585
      %587 = vrot.lane.b32.xlu0 %v471, 4
      %v588 = vpop.permute.xlu0 %587
      %589 = vrot.lane.b32.xlu0 %v472, 4
      %v590 = vpop.permute.xlu0 %589
      %591 = vrot.lane.b32.xlu0 %v473, 4
      %v592 = vpop.permute.xlu0 %591
      %593 = vrot.lane.b32.xlu0 %v474, 4
      %v594 = vpop.permute.xlu0 %593
      %595 = vrot.lane.b32.xlu0 %v475, 4
      %v596 = vpop.permute.xlu0 %595
      %597 = vrot.lane.b32.xlu0 %v476, 4
      %v598 = vpop.permute.xlu0 %597
      %599 = vrot.lane.b32.xlu0 %v477, 4
      %v600 = vpop.permute.xlu0 %599
      %601 = vrot.lane.b32.xlu0 %v478, 4
      %v602 = vpop.permute.xlu0 %601
      %603 = vrot.lane.b32.xlu0 %v479, 4
      %v604 = vpop.permute.xlu0 %603
      %605 = vrot.lane.b32.xlu0 %v480, 4
      %v606 = vpop.permute.xlu0 %605
      %607 = vrot.lane.b32.xlu0 %v481, 4
      %v608 = vpop.permute.xlu0 %607
      %609 = vrot.lane.b32.xlu0 %v482, 4
      %v610 = vpop.permute.xlu0 %609
      %675 = vrot.lane.b32.xlu0 %v483, 8
      %v676 = vpop.permute.xlu0 %675
      %677 = vrot.lane.b32.xlu0 %v484, 8
      %v678 = vpop.permute.xlu0 %677
      %679 = vrot.lane.b32.xlu0 %v485, 8
      %v680 = vpop.permute.xlu0 %679
      %681 = vrot.lane.b32.xlu0 %v486, 8
      %v682 = vpop.permute.xlu0 %681
      %683 = vrot.lane.b32.xlu0 %v487, 8
      %v684 = vpop.permute.xlu0 %683
      %685 = vrot.lane.b32.xlu0 %v488, 8
      %v686 = vpop.permute.xlu0 %685
      %687 = vrot.lane.b32.xlu0 %v489, 8
      %v688 = vpop.permute.xlu0 %687
      %689 = vrot.lane.b32.xlu0 %v490, 8
      %v690 = vpop.permute.xlu0 %689
      %691 = vrot.lane.b32.xlu0 %v491, 8
      %v692 = vpop.permute.xlu0 %691
      %693 = vrot.lane.b32.xlu0 %v492, 8
      %v694 = vpop.permute.xlu0 %693
      %695 = vrot.lane.b32.xlu0 %v493, 8
      %v696 = vpop.permute.xlu0 %695
      %697 = vrot.lane.b32.xlu0 %v494, 8
      %v698 = vpop.permute.xlu0 %697
      %699 = vrot.lane.b32.xlu0 %v495, 8
      %v700 = vpop.permute.xlu0 %699
      %701 = vrot.lane.b32.xlu0 %v496, 8
      %v702 = vpop.permute.xlu0 %701
      %703 = vrot.lane.b32.xlu0 %v497, 8
      %v704 = vpop.permute.xlu0 %703
      %705 = vrot.lane.b32.xlu0 %v498, 8
      %v706 = vpop.permute.xlu0 %705
      %707 = vrot.lane.b32.xlu0 %v499, 8
      %v708 = vpop.permute.xlu0 %707
      %709 = vrot.lane.b32.xlu0 %v500, 8
      %v710 = vpop.permute.xlu0 %709
      %711 = vrot.lane.b32.xlu0 %v501, 8
      %v712 = vpop.permute.xlu0 %711
      %713 = vrot.lane.b32.xlu0 %v502, 8
      %v714 = vpop.permute.xlu0 %713
      %715 = vrot.lane.b32.xlu0 %v503, 8
      %v716 = vpop.permute.xlu0 %715
      %717 = vrot.lane.b32.xlu0 %v504, 8
      %v718 = vpop.permute.xlu0 %717
      %719 = vrot.lane.b32.xlu0 %v505, 8
      %v720 = vpop.permute.xlu0 %719
      %721 = vrot.lane.b32.xlu0 %v506, 8
      %v722 = vpop.permute.xlu0 %721
      %723 = vrot.lane.b32.xlu0 %v507, 8
      %v724 = vpop.permute.xlu0 %723
      %725 = vrot.lane.b32.xlu0 %v508, 8
      %v726 = vpop.permute.xlu0 %725
      %727 = vrot.lane.b32.xlu0 %v509, 8
      %v728 = vpop.permute.xlu0 %727
      %729 = vrot.lane.b32.xlu0 %v510, 8
      %v730 = vpop.permute.xlu0 %729
      %731 = vrot.lane.b32.xlu0 %v511, 8
      %v732 = vpop.permute.xlu0 %731
      %733 = vrot.lane.b32.xlu0 %v512, 8
      %v734 = vpop.permute.xlu0 %733
      %735 = vrot.lane.b32.xlu0 %v513, 8
      %v736 = vpop.permute.xlu0 %735
      %737 = vrot.lane.b32.xlu0 %v514, 8
      %v738 = vpop.permute.xlu0 %737
      %v771 = vsel %vm280, %v419, %v548
      %v772 = vsel %vm280, %v420, %v550
      %v773 = vsel %vm280, %v421, %v552
      %v774 = vsel %vm280, %v422, %v554
      %v775 = vsel %vm280, %v423, %v556
      %v776 = vsel %vm280, %v424, %v558
      %v777 = vsel %vm280, %v425, %v560
      %v778 = vsel %vm280, %v426, %v562
      %v779 = vsel %vm280, %v427, %v564
      %v780 = vsel %vm280, %v428, %v566
      %v781 = vsel %vm280, %v429, %v568
      %v782 = vsel %vm280, %v430, %v570
      %v783 = vsel %vm280, %v431, %v572
      %v784 = vsel %vm280, %v432, %v574
      %v785 = vsel %vm280, %v433, %v576
      %v786 = vsel %vm280, %v434, %v578
      %v787 = vsel %vm280, %v435, %v580
      %v788 = vsel %vm280, %v436, %v582
      %v789 = vsel %vm280, %v437, %v584
      %v790 = vsel %vm280, %v438, %v586
      %v791 = vsel %vm280, %v439, %v588
      %v792 = vsel %vm280, %v440, %v590
      %v793 = vsel %vm280, %v441, %v592
      %v794 = vsel %vm280, %v442, %v594
      %v795 = vsel %vm280, %v443, %v596
      %v796 = vsel %vm280, %v444, %v598
      %v797 = vsel %vm280, %v445, %v600
      %v798 = vsel %vm280, %v446, %v602
      %v799 = vsel %vm280, %v447, %v604
      %v800 = vsel %vm280, %v448, %v606
      %v801 = vsel %vm280, %v449, %v608
      %v802 = vsel %vm280, %v450, %v610
      %vm803 = vcmask 64512
      %v804 = vsel %vm803, %v771, %v676
      %v805 = vsel %vm803, %v772, %v678
      %v806 = vsel %vm803, %v773, %v680
      %v807 = vsel %vm803, %v774, %v682
      %v808 = vsel %vm803, %v775, %v684
      %v809 = vsel %vm803, %v776, %v686
      %v810 = vsel %vm803, %v777, %v688
      %v811 = vsel %vm803, %v778, %v690
      %v812 = vsel %vm803, %v779, %v692
      %v813 = vsel %vm803, %v780, %v694
      %v814 = vsel %vm803, %v781, %v696
      %v815 = vsel %vm803, %v782, %v698
      %v816 = vsel %vm803, %v783, %v700
      %v817 = vsel %vm803, %v784, %v702
      %v818 = vsel %vm803, %v785, %v704
      %v819 = vsel %vm803, %v786, %v706
      %v820 = vsel %vm803, %v787, %v708
      %v821 = vsel %vm803, %v788, %v710
      %v822 = vsel %vm803, %v789, %v712
      %v823 = vsel %vm803, %v790, %v714
      %v824 = vsel %vm803, %v791, %v716
      %v825 = vsel %vm803, %v792, %v718
      %v826 = vsel %vm803, %v793, %v720
      %v827 = vsel %vm803, %v794, %v722
      %v828 = vsel %vm803, %v795, %v724
      %v829 = vsel %vm803, %v796, %v726
      %v830 = vsel %vm803, %v797, %v728
      %v831 = vsel %vm803, %v798, %v730
      %v832 = vsel %vm803, %v799, %v732
      %v833 = vsel %vm803, %v800, %v734
      %v834 = vsel %vm803, %v801, %v736
      %v835 = vsel %vm803, %v802, %v738
      %v836 = vpack.c.bf16 %v805, %v804
      %v837 = vpack.c.bf16 %v807, %v806
      %v838 = vpack.c.bf16 %v809, %v808
      %v839 = vpack.c.bf16 %v811, %v810
      %v840 = vpack.c.bf16 %v813, %v812
      %v841 = vpack.c.bf16 %v815, %v814
      %v842 = vpack.c.bf16 %v817, %v816
      %v843 = vpack.c.bf16 %v819, %v818
      %v844 = vpack.c.bf16 %v821, %v820
      %v845 = vpack.c.bf16 %v823, %v822
      %v846 = vpack.c.bf16 %v825, %v824
      %v847 = vpack.c.bf16 %v827, %v826
      %v848 = vpack.c.bf16 %v829, %v828
      %v849 = vpack.c.bf16 %v831, %v830
      %v850 = vpack.c.bf16 %v833, %v832
      %v851 = vpack.c.bf16 %v835, %v834
      %v852 = vld [vmem:[%s1] sm:$0xf]
      %v853 = vld [vmem:[%s1 + $0x4] sm:$0x3]
      %v854 = vld [vmem:[%s289] sm:$0xff]
      %v855 = vld [vmem:[%s289 + $0x8] sm:$0xff]
      %v856 = vld [vmem:[%s289 + $0x18] sm:$0xff]
      %v857 = vld [vmem:[%s289 + $0x20] sm:$0xff]
      %v858 = vld [vmem:[%s289 + $0x30] sm:$0xff]
      %v859 = vld [vmem:[%s289 + $0x38] sm:$0xff]
      %v860 = vld [vmem:[%s289 + $0x48] sm:$0xff]
      %v861 = vld [vmem:[%s289 + $0x50] sm:$0xff]
      %v862 = vld [vmem:[%s289 + $0x60] sm:$0xff]
      %v863 = vld [vmem:[%s289 + $0x68] sm:$0xff]
      %v864 = vld [vmem:[%s289 + $0x78] sm:$0xff]
      %v865 = vld [vmem:[%s289 + $0x80] sm:$0xff]
      %v866 = vld [vmem:[%s289 + $0x90] sm:$0xff]
      %v867 = vld [vmem:[%s289 + $0x98] sm:$0xff]
      %v868 = vld [vmem:[%s289 + $0xa8] sm:$0xff]
      %v869 = vld [vmem:[%s289 + $0xb0] sm:$0xff]
      %v870 = vld [vmem:[%s289 + $0xc0] sm:$0xff]
      %v871 = vld [vmem:[%s289 + $0xc8] sm:$0xff]
      %v872 = vld [vmem:[%s289 + $0xd8] sm:$0xff]
      %v873 = vld [vmem:[%s289 + $0xe0] sm:$0xff]
      %v874 = vld [vmem:[%s289 + $0xf0] sm:$0xff]
      %v875 = vld [vmem:[%s289 + $0xf8] sm:$0xff]
      %v876 = vld [vmem:[%s289 + $0x108] sm:$0xff]
      %v877 = vld [vmem:[%s289 + $0x110] sm:$0xff]
      %v878 = vld [vmem:[%s289 + $0x120] sm:$0xff]
      %v879 = vld [vmem:[%s289 + $0x128] sm:$0xff]
      %v880 = vld [vmem:[%s289 + $0x138] sm:$0xff]
      %v881 = vld [vmem:[%s289 + $0x140] sm:$0xff]
      %v882 = vld [vmem:[%s289 + $0x150] sm:$0xff]
      %v883 = vld [vmem:[%s289 + $0x158] sm:$0xff]
      %v884 = vld [vmem:[%s289 + $0x168] sm:$0xff]
      %v885 = vld [vmem:[%s289 + $0x170] sm:$0xff]
      %v886 = vld [vmem:[%s289 + $0x1] sm:$0xff]
      %v887 = vld [vmem:[%s289 + $0x9] sm:$0xff]
      %v888 = vld [vmem:[%s289 + $0x19] sm:$0xff]
      %v889 = vld [vmem:[%s289 + $0x21] sm:$0xff]
      %v890 = vld [vmem:[%s289 + $0x31] sm:$0xff]
      %v891 = vld [vmem:[%s289 + $0x39] sm:$0xff]
      %v892 = vld [vmem:[%s289 + $0x49] sm:$0xff]
      %v893 = vld [vmem:[%s289 + $0x51] sm:$0xff]
      %v894 = vld [vmem:[%s289 + $0x61] sm:$0xff]
      %v895 = vld [vmem:[%s289 + $0x69] sm:$0xff]
      %v896 = vld [vmem:[%s289 + $0x79] sm:$0xff]
      %v897 = vld [vmem:[%s289 + $0x81] sm:$0xff]
      %v898 = vld [vmem:[%s289 + $0x91] sm:$0xff]
      %v899 = vld [vmem:[%s289 + $0x99] sm:$0xff]
      %v900 = vld [vmem:[%s289 + $0xa9] sm:$0xff]
      %v901 = vld [vmem:[%s289 + $0xb1] sm:$0xff]
      %v902 = vld [vmem:[%s289 + $0xc1] sm:$0xff]
      %v903 = vld [vmem:[%s289 + $0xc9] sm:$0xff]
      %v904 = vld [vmem:[%s289 + $0xd9] sm:$0xff]
      %v905 = vld [vmem:[%s289 + $0xe1] sm:$0xff]
      %v906 = vld [vmem:[%s289 + $0xf1] sm:$0xff]
      %v907 = vld [vmem:[%s289 + $0xf9] sm:$0xff]
      %v908 = vld [vmem:[%s289 + $0x109] sm:$0xff]
      %v909 = vld [vmem:[%s289 + $0x111] sm:$0xff]
      %v910 = vld [vmem:[%s289 + $0x121] sm:$0xff]
      %v911 = vld [vmem:[%s289 + $0x129] sm:$0xff]
      %v912 = vld [vmem:[%s289 + $0x139] sm:$0xff]
      %v913 = vld [vmem:[%s289 + $0x141] sm:$0xff]
      %v914 = vld [vmem:[%s289 + $0x151] sm:$0xff]
      %v915 = vld [vmem:[%s289 + $0x159] sm:$0xff]
      %v916 = vld [vmem:[%s289 + $0x169] sm:$0xff]
      %v917 = vld [vmem:[%s289 + $0x171] sm:$0xff]
      %v918 = vld [vmem:[%s289 + $0x2] sm:$0xff]
      %v919 = vld [vmem:[%s289 + $0xa] sm:$0xff]
      %v920 = vld [vmem:[%s289 + $0x1a] sm:$0xff]
      %v921 = vld [vmem:[%s289 + $0x22] sm:$0xff]
      %v922 = vld [vmem:[%s289 + $0x32] sm:$0xff]
      %v923 = vld [vmem:[%s289 + $0x3a] sm:$0xff]
      %v924 = vld [vmem:[%s289 + $0x4a] sm:$0xff]
      %v925 = vld [vmem:[%s289 + $0x52] sm:$0xff]
      %v926 = vld [vmem:[%s289 + $0x62] sm:$0xff]
      %v927 = vld [vmem:[%s289 + $0x6a] sm:$0xff]
      %v928 = vld [vmem:[%s289 + $0x7a] sm:$0xff]
      %v929 = vld [vmem:[%s289 + $0x82] sm:$0xff]
      %v930 = vld [vmem:[%s289 + $0x92] sm:$0xff]
      %v931 = vld [vmem:[%s289 + $0x9a] sm:$0xff]
      %v932 = vld [vmem:[%s289 + $0xaa] sm:$0xff]
      %v933 = vld [vmem:[%s289 + $0xb2] sm:$0xff]
      %v934 = vld [vmem:[%s289 + $0xc2] sm:$0xff]
      %v935 = vld [vmem:[%s289 + $0xca] sm:$0xff]
      %v936 = vld [vmem:[%s289 + $0xda] sm:$0xff]
      %v937 = vld [vmem:[%s289 + $0xe2] sm:$0xff]
      %v938 = vld [vmem:[%s289 + $0xf2] sm:$0xff]
      %v939 = vld [vmem:[%s289 + $0xfa] sm:$0xff]
      %v940 = vld [vmem:[%s289 + $0x10a] sm:$0xff]
      %v941 = vld [vmem:[%s289 + $0x112] sm:$0xff]
      %v942 = vld [vmem:[%s289 + $0x122] sm:$0xff]
      %v943 = vld [vmem:[%s289 + $0x12a] sm:$0xff]
      %v944 = vld [vmem:[%s289 + $0x13a] sm:$0xff]
      %v945 = vld [vmem:[%s289 + $0x142] sm:$0xff]
      %v946 = vld [vmem:[%s289 + $0x152] sm:$0xff]
      %v947 = vld [vmem:[%s289 + $0x15a] sm:$0xff]
      %v948 = vld [vmem:[%s289 + $0x16a] sm:$0xff]
      %v949 = vld [vmem:[%s289 + $0x172] sm:$0xff]
      %982 = vrot.lane.b32.xlu0 %v886, 4
      %v983 = vpop.permute.xlu0 %982
      %984 = vrot.lane.b32.xlu0 %v887, 4
      %v985 = vpop.permute.xlu0 %984
      %986 = vrot.lane.b32.xlu0 %v888, 4
      %v987 = vpop.permute.xlu0 %986
      %988 = vrot.lane.b32.xlu0 %v889, 4
      %v989 = vpop.permute.xlu0 %988
      %990 = vrot.lane.b32.xlu0 %v890, 4
      %v991 = vpop.permute.xlu0 %990
      %992 = vrot.lane.b32.xlu0 %v891, 4
      %v993 = vpop.permute.xlu0 %992
      %994 = vrot.lane.b32.xlu0 %v892, 4
      %v995 = vpop.permute.xlu0 %994
      %996 = vrot.lane.b32.xlu0 %v893, 4
      %v997 = vpop.permute.xlu0 %996
      %998 = vrot.lane.b32.xlu0 %v894, 4
      %v999 = vpop.permute.xlu0 %998
      %1000 = vrot.lane.b32.xlu0 %v895, 4
      %v1001 = vpop.permute.xlu0 %1000
      %1002 = vrot.lane.b32.xlu0 %v896, 4
      %v1003 = vpop.permute.xlu0 %1002
      %1004 = vrot.lane.b32.xlu0 %v897, 4
      %v1005 = vpop.permute.xlu0 %1004
      %1006 = vrot.lane.b32.xlu0 %v898, 4
      %v1007 = vpop.permute.xlu0 %1006
      %1008 = vrot.lane.b32.xlu0 %v899, 4
      %v1009 = vpop.permute.xlu0 %1008
      %1010 = vrot.lane.b32.xlu0 %v900, 4
      %v1011 = vpop.permute.xlu0 %1010
      %1012 = vrot.lane.b32.xlu0 %v901, 4
      %v1013 = vpop.permute.xlu0 %1012
      %1014 = vrot.lane.b32.xlu0 %v902, 4
      %v1015 = vpop.permute.xlu0 %1014
      %1016 = vrot.lane.b32.xlu0 %v903, 4
      %v1017 = vpop.permute.xlu0 %1016
      %1018 = vrot.lane.b32.xlu0 %v904, 4
      %v1019 = vpop.permute.xlu0 %1018
      %1020 = vrot.lane.b32.xlu0 %v905, 4
      %v1021 = vpop.permute.xlu0 %1020
      %1022 = vrot.lane.b32.xlu0 %v906, 4
      %v1023 = vpop.permute.xlu0 %1022
      %1024 = vrot.lane.b32.xlu0 %v907, 4
      %v1025 = vpop.permute.xlu0 %1024
      %1026 = vrot.lane.b32.xlu0 %v908, 4
      %v1027 = vpop.permute.xlu0 %1026
      %1028 = vrot.lane.b32.xlu0 %v909, 4
      %v1029 = vpop.permute.xlu0 %1028
      %1030 = vrot.lane.b32.xlu0 %v910, 4
      %v1031 = vpop.permute.xlu0 %1030
      %1032 = vrot.lane.b32.xlu0 %v911, 4
      %v1033 = vpop.permute.xlu0 %1032
      %1034 = vrot.lane.b32.xlu0 %v912, 4
      %v1035 = vpop.permute.xlu0 %1034
      %1036 = vrot.lane.b32.xlu0 %v913, 4
      %v1037 = vpop.permute.xlu0 %1036
      %1038 = vrot.lane.b32.xlu0 %v914, 4
      %v1039 = vpop.permute.xlu0 %1038
      %1040 = vrot.lane.b32.xlu0 %v915, 4
      %v1041 = vpop.permute.xlu0 %1040
      %1042 = vrot.lane.b32.xlu0 %v916, 4
      %v1043 = vpop.permute.xlu0 %1042
      %1044 = vrot.lane.b32.xlu0 %v917, 4
      %v1045 = vpop.permute.xlu0 %1044
      %1110 = vrot.lane.b32.xlu0 %v918, 8
      %v1111 = vpop.permute.xlu0 %1110
      %1112 = vrot.lane.b32.xlu0 %v919, 8
      %v1113 = vpop.permute.xlu0 %1112
      %1114 = vrot.lane.b32.xlu0 %v920, 8
      %v1115 = vpop.permute.xlu0 %1114
      %1116 = vrot.lane.b32.xlu0 %v921, 8
      %v1117 = vpop.permute.xlu0 %1116
      %1118 = vrot.lane.b32.xlu0 %v922, 8
      %v1119 = vpop.permute.xlu0 %1118
      %1120 = vrot.lane.b32.xlu0 %v923, 8
      %v1121 = vpop.permute.xlu0 %1120
      %1122 = vrot.lane.b32.xlu0 %v924, 8
      %v1123 = vpop.permute.xlu0 %1122
      %1124 = vrot.lane.b32.xlu0 %v925, 8
      %v1125 = vpop.permute.xlu0 %1124
      %1126 = vrot.lane.b32.xlu0 %v926, 8
      %v1127 = vpop.permute.xlu0 %1126
      %1128 = vrot.lane.b32.xlu0 %v927, 8
      %v1129 = vpop.permute.xlu0 %1128
      %1130 = vrot.lane.b32.xlu0 %v928, 8
      %v1131 = vpop.permute.xlu0 %1130
      %1132 = vrot.lane.b32.xlu0 %v929, 8
      %v1133 = vpop.permute.xlu0 %1132
      %1134 = vrot.lane.b32.xlu0 %v930, 8
      %v1135 = vpop.permute.xlu0 %1134
      %1136 = vrot.lane.b32.xlu0 %v931, 8
      %v1137 = vpop.permute.xlu0 %1136
      %1138 = vrot.lane.b32.xlu0 %v932, 8
      %v1139 = vpop.permute.xlu0 %1138
      %1140 = vrot.lane.b32.xlu0 %v933, 8
      %v1141 = vpop.permute.xlu0 %1140
      %1142 = vrot.lane.b32.xlu0 %v934, 8
      %v1143 = vpop.permute.xlu0 %1142
      %1144 = vrot.lane.b32.xlu0 %v935, 8
      %v1145 = vpop.permute.xlu0 %1144
      %1146 = vrot.lane.b32.xlu0 %v936, 8
      %v1147 = vpop.permute.xlu0 %1146
      %1148 = vrot.lane.b32.xlu0 %v937, 8
      %v1149 = vpop.permute.xlu0 %1148
      %1150 = vrot.lane.b32.xlu0 %v938, 8
      %v1151 = vpop.permute.xlu0 %1150
      %1152 = vrot.lane.b32.xlu0 %v939, 8
      %v1153 = vpop.permute.xlu0 %1152
      %1154 = vrot.lane.b32.xlu0 %v940, 8
      %v1155 = vpop.permute.xlu0 %1154
      %1156 = vrot.lane.b32.xlu0 %v941, 8
      %v1157 = vpop.permute.xlu0 %1156
      %1158 = vrot.lane.b32.xlu0 %v942, 8
      %v1159 = vpop.permute.xlu0 %1158
      %1160 = vrot.lane.b32.xlu0 %v943, 8
      %v1161 = vpop.permute.xlu0 %1160
      %1162 = vrot.lane.b32.xlu0 %v944, 8
      %v1163 = vpop.permute.xlu0 %1162
      %1164 = vrot.lane.b32.xlu0 %v945, 8
      %v1165 = vpop.permute.xlu0 %1164
      %1166 = vrot.lane.b32.xlu0 %v946, 8
      %v1167 = vpop.permute.xlu0 %1166
      %1168 = vrot.lane.b32.xlu0 %v947, 8
      %v1169 = vpop.permute.xlu0 %1168
      %1170 = vrot.lane.b32.xlu0 %v948, 8
      %v1171 = vpop.permute.xlu0 %1170
      %1172 = vrot.lane.b32.xlu0 %v949, 8
      %v1173 = vpop.permute.xlu0 %1172
      %v1206 = vsel %vm280, %v854, %v983
      %v1207 = vsel %vm280, %v855, %v985
      %v1208 = vsel %vm280, %v856, %v987
      %v1209 = vsel %vm280, %v857, %v989
      %v1210 = vsel %vm280, %v858, %v991
      %v1211 = vsel %vm280, %v859, %v993
      %v1212 = vsel %vm280, %v860, %v995
      %v1213 = vsel %vm280, %v861, %v997
      %v1214 = vsel %vm280, %v862, %v999
      %v1215 = vsel %vm280, %v863, %v1001
      %v1216 = vsel %vm280, %v864, %v1003
      %v1217 = vsel %vm280, %v865, %v1005
      %v1218 = vsel %vm280, %v866, %v1007
      %v1219 = vsel %vm280, %v867, %v1009
      %v1220 = vsel %vm280, %v868, %v1011
      %v1221 = vsel %vm280, %v869, %v1013
      %v1222 = vsel %vm280, %v870, %v1015
      %v1223 = vsel %vm280, %v871, %v1017
      %v1224 = vsel %vm280, %v872, %v1019
      %v1225 = vsel %vm280, %v873, %v1021
      %v1226 = vsel %vm280, %v874, %v1023
      %v1227 = vsel %vm280, %v875, %v1025
      %v1228 = vsel %vm280, %v876, %v1027
      %v1229 = vsel %vm280, %v877, %v1029
      %v1230 = vsel %vm280, %v878, %v1031
      %v1231 = vsel %vm280, %v879, %v1033
      %v1232 = vsel %vm280, %v880, %v1035
      %v1233 = vsel %vm280, %v881, %v1037
      %v1234 = vsel %vm280, %v882, %v1039
      %v1235 = vsel %vm280, %v883, %v1041
      %v1236 = vsel %vm280, %v884, %v1043
      %v1237 = vsel %vm280, %v885, %v1045
      %v1238 = vsel %vm803, %v1206, %v1111
      %v1239 = vsel %vm803, %v1207, %v1113
      %v1240 = vsel %vm803, %v1208, %v1115
      %v1241 = vsel %vm803, %v1209, %v1117
      %v1242 = vsel %vm803, %v1210, %v1119
      %v1243 = vsel %vm803, %v1211, %v1121
      %v1244 = vsel %vm803, %v1212, %v1123
      %v1245 = vsel %vm803, %v1213, %v1125
      %v1246 = vsel %vm803, %v1214, %v1127
      %v1247 = vsel %vm803, %v1215, %v1129
      %v1248 = vsel %vm803, %v1216, %v1131
      %v1249 = vsel %vm803, %v1217, %v1133
      %v1250 = vsel %vm803, %v1218, %v1135
      %v1251 = vsel %vm803, %v1219, %v1137
      %v1252 = vsel %vm803, %v1220, %v1139
      %v1253 = vsel %vm803, %v1221, %v1141
      %v1254 = vsel %vm803, %v1222, %v1143
      %v1255 = vsel %vm803, %v1223, %v1145
      %v1256 = vsel %vm803, %v1224, %v1147
      %v1257 = vsel %vm803, %v1225, %v1149
      %v1258 = vsel %vm803, %v1226, %v1151
      %v1259 = vsel %vm803, %v1227, %v1153
      %v1260 = vsel %vm803, %v1228, %v1155
      %v1261 = vsel %vm803, %v1229, %v1157
      %v1262 = vsel %vm803, %v1230, %v1159
      %v1263 = vsel %vm803, %v1231, %v1161
      %v1264 = vsel %vm803, %v1232, %v1163
      %v1265 = vsel %vm803, %v1233, %v1165
      %v1266 = vsel %vm803, %v1234, %v1167
      %v1267 = vsel %vm803, %v1235, %v1169
      %v1268 = vsel %vm803, %v1236, %v1171
      %v1269 = vsel %vm803, %v1237, %v1173
      %v1270 = vpack.c.bf16 %v1239, %v1238
      %v1271 = vpack.c.bf16 %v1241, %v1240
      %v1272 = vpack.c.bf16 %v1243, %v1242
      %v1273 = vpack.c.bf16 %v1245, %v1244
      %v1274 = vpack.c.bf16 %v1247, %v1246
      %v1275 = vpack.c.bf16 %v1249, %v1248
      %v1276 = vpack.c.bf16 %v1251, %v1250
      %v1277 = vpack.c.bf16 %v1253, %v1252
      %v1278 = vpack.c.bf16 %v1255, %v1254
      %v1279 = vpack.c.bf16 %v1257, %v1256
      %v1280 = vpack.c.bf16 %v1259, %v1258
      %v1281 = vpack.c.bf16 %v1261, %v1260
      %v1282 = vpack.c.bf16 %v1263, %v1262
      %v1283 = vpack.c.bf16 %v1265, %v1264
      %v1284 = vpack.c.bf16 %v1267, %v1266
      %v1285 = vpack.c.bf16 %v1269, %v1268
      %s1286 = scalar_lea.vmem %s1, 8
      %v1287 = vld [vmem:[%s1286] sm:$0xf]
      %v1288 = vld [vmem:[%s1286 + $0x4] sm:$0x3]
      %v1291 = vunpack.c.l.b16 %v1287
      %v1292 = vunpack.c.l.b16 %v1288
      %v1293 = vpack.c.b16 %v1292, %v1291
      %vm1294 = vcmask 97280
      %v1296 = vsel %vm1294, %v1270, 0
      %v1299 = vsel %vm1294, %v1271, 0
      %v1302 = vsel %vm1294, %v1272, 0
      %v1305 = vsel %vm1294, %v1273, 0
      %v1308 = vsel %vm1294, %v1274, 0
      %v1311 = vsel %vm1294, %v1275, 0
      %v1314 = vsel %vm1294, %v1276, 0
      %v1317 = vsel %vm1294, %v1277, 0
      %v1320 = vsel %vm1294, %v1278, 0
      %v1323 = vsel %vm1294, %v1279, 0
      %v1326 = vsel %vm1294, %v1280, 0
      %v1329 = vsel %vm1294, %v1281, 0
      %v1332 = vsel %vm1294, %v1282, 0
      %v1335 = vsel %vm1294, %v1283, 0
      %v1338 = vsel %vm1294, %v1284, 0
      %v1341 = vsel %vm1294, %v1285, 0
      %vm1343 = vcmask 1045504
      %v1345 = vsel %vm1343, %v1293, 0
      %1347 = vmatprep.subr.bf16.mxu0 0
      %1348 = vmatpush1.bf16.msra.mxu0 %v1345
      %1349 = vmatprep.subr.bf16.mxu0 0
      %1350 = vmatpush1.bf16.msra.mxu0 0
      %1351 = vmatprep.subr.bf16.mxu0 0
      %1352 = vmatpush1.bf16.msra.mxu0 0
      %1353 = vmatprep.subr.bf16.mxu0 0
      %1354 = vmatpush1.bf16.msra.mxu0 0
      %1355 = vmatprep.subr.bf16.mxu0 0
      %1356 = vmatpush1.bf16.msra.mxu0 0
      %1357 = vmatprep.subr.bf16.mxu0 0
      %1358 = vmatpush1.bf16.msra.mxu0 0
      %1359 = vmatprep.subr.bf16.mxu0 0
      %1360 = vmatpush1.bf16.msra.mxu0 0
      %1361 = vmatprep.subr.bf16.mxu0 0
      %1362 = vmatpush1.bf16.msra.mxu0 0
      %1363 = vmatprep.subr.bf16.mxu0 0
      %1364 = vmatpush1.bf16.msra.mxu0 0
      %1365 = vmatprep.subr.bf16.mxu0 0
      %1366 = vmatpush1.bf16.msra.mxu0 0
      %1367 = vmatprep.subr.bf16.mxu0 0
      %1368 = vmatpush1.bf16.msra.mxu0 0
      %1369 = vmatprep.subr.bf16.mxu0 0
      %1370 = vmatpush1.bf16.msra.mxu0 0
      %1371 = vmatprep.subr.bf16.mxu0 0
      %1372 = vmatpush1.bf16.msra.mxu0 0
      %1373 = vmatprep.subr.bf16.mxu0 0
      %1374 = vmatpush1.bf16.msra.mxu0 0
      %1375 = vmatprep.subr.bf16.mxu0 0
      %1376 = vmatpush1.bf16.msra.mxu0 0
      %1377 = vmatprep.subr.bf16.mxu0 0
      %1378 = vmatpush1.bf16.msra.mxu0 0
      %1379 = vmatprep.mubr.bf16.mxu0 0
      %1380 = vmatmul.mubr.bf16.gmra.mrb[0].mxu0 %v1296
      %v1381 = vpop.f32.mrb[0].mxu0
      %v1382 = vadd.f32 0.0, %v1381
      %v1383 = vpop.f32.mrb[0].mxu0
      %v1384 = vpop.f32.mrb[0].mxu0
      %v1385 = vadd.f32 0.0, %v1384
      %v1386 = vpop.f32.mrb[0].mxu0
      %1387 = vmatprep.mubr.bf16.mxu0 0
      %1388 = vmatmul.mubr.bf16.gmra.mrb[0].mxu0 %v1299
      %v1389 = vpop.f32.mrb[0].mxu0
      %v1390 = vadd.f32 0.0, %v1389
      %v1391 = vpop.f32.mrb[0].mxu0
      %v1392 = vpop.f32.mrb[0].mxu0
      %v1393 = vadd.f32 0.0, %v1392
      %v1394 = vpop.f32.mrb[0].mxu0
      %1395 = vmatprep.mubr.bf16.mxu0 0
      %1396 = vmatmul.mubr.bf16.gmra.mrb[0].mxu0 %v1302
      %v1397 = vpop.f32.mrb[0].mxu0
      %v1398 = vadd.f32 0.0, %v1397
      %v1399 = vpop.f32.mrb[0].mxu0
      %v1400 = vpop.f32.mrb[0].mxu0
      %v1401 = vadd.f32 0.0, %v1400
      %v1402 = vpop.f32.mrb[0].mxu0
      %1403 = vmatprep.mubr.bf16.mxu0 0
      %1404 = vmatmul.mubr.bf16.gmra.mrb[0].mxu0 %v1305
      %v1405 = vpop.f32.mrb[0].mxu0
      %v1406 = vadd.f32 0.0, %v1405
      %v1407 = vpop.f32.mrb[0].mxu0
      %v1408 = vpop.f32.mrb[0].mxu0
      %v1409 = vadd.f32 0.0, %v1408
      %v1410 = vpop.f32.mrb[0].mxu0
      %1411 = vmatprep.mubr.bf16.mxu0 0
      %1412 = vmatmul.mubr.bf16.gmra.mrb[0].mxu0 %v1308
      %v1413 = vpop.f32.mrb[0].mxu0
      %v1414 = vadd.f32 0.0, %v1413
      %v1415 = vpop.f32.mrb[0].mxu0
      %v1416 = vpop.f32.mrb[0].mxu0
      %v1417 = vadd.f32 0.0, %v1416
      %v1418 = vpop.f32.mrb[0].mxu0
      %1419 = vmatprep.mubr.bf16.mxu0 0
      %1420 = vmatmul.mubr.bf16.gmra.mrb[0].mxu0 %v1311
      %v1421 = vpop.f32.mrb[0].mxu0
      %v1422 = vadd.f32 0.0, %v1421
      %v1423 = vpop.f32.mrb[0].mxu0
      %v1424 = vpop.f32.mrb[0].mxu0
      %v1425 = vadd.f32 0.0, %v1424
      %v1426 = vpop.f32.mrb[0].mxu0
      %1427 = vmatprep.mubr.bf16.mxu0 0
      %1428 = vmatmul.mubr.bf16.gmra.mrb[0].mxu0 %v1314
      %v1429 = vpop.f32.mrb[0].mxu0
      %v1430 = vadd.f32 0.0, %v1429
      %v1431 = vpop.f32.mrb[0].mxu0
      %v1432 = vpop.f32.mrb[0].mxu0
      %v1433 = vadd.f32 0.0, %v1432
      %v1434 = vpop.f32.mrb[0].mxu0
      %1435 = vmatprep.mubr.bf16.mxu0 0
      %1436 = vmatmul.mubr.bf16.gmra.mrb[0].mxu0 %v1317
      %v1437 = vpop.f32.mrb[0].mxu0
      %v1438 = vadd.f32 0.0, %v1437
      %v1439 = vpop.f32.mrb[0].mxu0
      %v1440 = vpop.f32.mrb[0].mxu0
      %v1441 = vadd.f32 0.0, %v1440
      %v1442 = vpop.f32.mrb[0].mxu0
      %1443 = vmatprep.mubr.bf16.mxu0 0
      %1444 = vmatmul.mubr.bf16.gmra.mrb[0].mxu0 %v1320
      %v1445 = vpop.f32.mrb[0].mxu0
      %v1446 = vadd.f32 0.0, %v1445
      %v1447 = vpop.f32.mrb[0].mxu0
      %v1448 = vpop.f32.mrb[0].mxu0
      %v1449 = vadd.f32 0.0, %v1448
      %v1450 = vpop.f32.mrb[0].mxu0
      %1451 = vmatprep.mubr.bf16.mxu0 0
      %1452 = vmatmul.mubr.bf16.gmra.mrb[0].mxu0 %v1323
      %v1453 = vpop.f32.mrb[0].mxu0
      %v1454 = vadd.f32 0.0, %v1453
      %v1455 = vpop.f32.mrb[0].mxu0
      %v1456 = vpop.f32.mrb[0].mxu0
      %v1457 = vadd.f32 0.0, %v1456
      %v1458 = vpop.f32.mrb[0].mxu0
      %1459 = vmatprep.mubr.bf16.mxu0 0
      %1460 = vmatmul.mubr.bf16.gmra.mrb[0].mxu0 %v1326
      %v1461 = vpop.f32.mrb[0].mxu0
      %v1462 = vadd.f32 0.0, %v1461
      %v1463 = vpop.f32.mrb[0].mxu0
      %v1464 = vpop.f32.mrb[0].mxu0
      %v1465 = vadd.f32 0.0, %v1464
      %v1466 = vpop.f32.mrb[0].mxu0
      %1467 = vmatprep.mubr.bf16.mxu0 0
      %1468 = vmatmul.mubr.bf16.gmra.mrb[0].mxu0 %v1329
      %v1469 = vpop.f32.mrb[0].mxu0
      %v1470 = vadd.f32 0.0, %v1469
      %v1471 = vpop.f32.mrb[0].mxu0
      %v1472 = vpop.f32.mrb[0].mxu0
      %v1473 = vadd.f32 0.0, %v1472
      %v1474 = vpop.f32.mrb[0].mxu0
      %1475 = vmatprep.mubr.bf16.mxu0 0
      %1476 = vmatmul.mubr.bf16.gmra.mrb[0].mxu0 %v1332
      %v1477 = vpop.f32.mrb[0].mxu0
      %v1478 = vadd.f32 0.0, %v1477
      %v1479 = vpop.f32.mrb[0].mxu0
      %v1480 = vpop.f32.mrb[0].mxu0
      %v1481 = vadd.f32 0.0, %v1480
      %v1482 = vpop.f32.mrb[0].mxu0
      %1483 = vmatprep.mubr.bf16.mxu0 0
      %1484 = vmatmul.mubr.bf16.gmra.mrb[0].mxu0 %v1335
      %v1485 = vpop.f32.mrb[0].mxu0
      %v1486 = vadd.f32 0.0, %v1485
      %v1487 = vpop.f32.mrb[0].mxu0
      %v1488 = vpop.f32.mrb[0].mxu0
      %v1489 = vadd.f32 0.0, %v1488
      %v1490 = vpop.f32.mrb[0].mxu0
      %1491 = vmatprep.mubr.bf16.mxu0 0
      %1492 = vmatmul.mubr.bf16.gmra.mrb[0].mxu0 %v1338
      %v1493 = vpop.f32.mrb[0].mxu0
      %v1494 = vadd.f32 0.0, %v1493
      %v1495 = vpop.f32.mrb[0].mxu0
      %v1496 = vpop.f32.mrb[0].mxu0
      %v1497 = vadd.f32 0.0, %v1496
      %v1498 = vpop.f32.mrb[0].mxu0
      %1499 = vmatprep.mubr.bf16.mxu0 0
      %1500 = vmatmul.mubr.bf16.gmra.mrb[0].mxu0 %v1341
      %v1501 = vpop.f32.mrb[0].mxu0
      %v1502 = vadd.f32 0.0, %v1501
      %v1503 = vpop.f32.mrb[0].mxu0
      %v1504 = vpop.f32.mrb[0].mxu0
      %v1505 = vadd.f32 0.0, %v1504
      %v1506 = vpop.f32.mrb[0].mxu0
      %1507 = vdwg.mxu0
      %v1510 = vunpack.c.l.b16 %v852
      %v1511 = vunpack.c.l.b16 %v853
      %v1512 = vpack.c.b16 %v1511, %v1510
      %v1514 = vsel %vm1294, %v836, 0
      %v1517 = vsel %vm1294, %v837, 0
      %v1520 = vsel %vm1294, %v838, 0
      %v1523 = vsel %vm1294, %v839, 0
      %v1526 = vsel %vm1294, %v840, 0
      %v1529 = vsel %vm1294, %v841, 0
      %v1532 = vsel %vm1294, %v842, 0
      %v1535 = vsel %vm1294, %v843, 0
      %v1538 = vsel %vm1294, %v844, 0
      %v1541 = vsel %vm1294, %v845, 0
      %v1544 = vsel %vm1294, %v846, 0
      %v1547 = vsel %vm1294, %v847, 0
      %v1550 = vsel %vm1294, %v848, 0
      %v1553 = vsel %vm1294, %v849, 0
      %v1556 = vsel %vm1294, %v850, 0
      %v1559 = vsel %vm1294, %v851, 0
      %v1562 = vsel %vm1343, %v1512, 0
      %1564 = vmatprep.subr.bf16.mxu0 0
      %1565 = vmatpush1.bf16.msra.mxu0 %v1562
      %1566 = vmatprep.subr.bf16.mxu0 0
      %1567 = vmatpush1.bf16.msra.mxu0 0
      %1568 = vmatprep.subr.bf16.mxu0 0
      %1569 = vmatpush1.bf16.msra.mxu0 0
      %1570 = vmatprep.subr.bf16.mxu0 0
      %1571 = vmatpush1.bf16.msra.mxu0 0
      %1572 = vmatprep.subr.bf16.mxu0 0
      %1573 = vmatpush1.bf16.msra.mxu0 0
      %1574 = vmatprep.subr.bf16.mxu0 0
      %1575 = vmatpush1.bf16.msra.mxu0 0
      %1576 = vmatprep.subr.bf16.mxu0 0
      %1577 = vmatpush1.bf16.msra.mxu0 0
      %1578 = vmatprep.subr.bf16.mxu0 0
      %1579 = vmatpush1.bf16.msra.mxu0 0
      %1580 = vmatprep.subr.bf16.mxu0 0
      %1581 = vmatpush1.bf16.msra.mxu0 0
      %1582 = vmatprep.subr.bf16.mxu0 0
      %1583 = vmatpush1.bf16.msra.mxu0 0
      %1584 = vmatprep.subr.bf16.mxu0 0
      %1585 = vmatpush1.bf16.msra.mxu0 0
      %1586 = vmatprep.subr.bf16.mxu0 0
      %1587 = vmatpush1.bf16.msra.mxu0 0
      %1588 = vmatprep.subr.bf16.mxu0 0
      %1589 = vmatpush1.bf16.msra.mxu0 0
      %1590 = vmatprep.subr.bf16.mxu0 0
      %1591 = vmatpush1.bf16.msra.mxu0 0
      %1592 = vmatprep.subr.bf16.mxu0 0
      %1593 = vmatpush1.bf16.msra.mxu0 0
      %1594 = vmatprep.subr.bf16.mxu0 0
      %1595 = vmatpush1.bf16.msra.mxu0 0
      %1596 = vmatprep.mubr.bf16.mxu0 0
      %1597 = vmatmul.mubr.bf16.gmra.mrb[0].mxu0 %v1514
      %v1598 = vpop.f32.mrb[0].mxu0
      %v1599 = vadd.f32 %v1382, %v1598
      %v1600 = vpop.f32.mrb[0].mxu0
      %v1601 = vpop.f32.mrb[0].mxu0
      %v1602 = vadd.f32 %v1385, %v1601
      %v1603 = vpop.f32.mrb[0].mxu0
      %1604 = vmatprep.mubr.bf16.mxu0 0
      %1605 = vmatmul.mubr.bf16.gmra.mrb[0].mxu0 %v1517
      %v1606 = vpop.f32.mrb[0].mxu0
      %v1607 = vadd.f32 %v1390, %v1606
      %v1608 = vpop.f32.mrb[0].mxu0
      %v1609 = vpop.f32.mrb[0].mxu0
      %v1610 = vadd.f32 %v1393, %v1609
      %v1611 = vpop.f32.mrb[0].mxu0
      %1612 = vmatprep.mubr.bf16.mxu0 0
      %1613 = vmatmul.mubr.bf16.gmra.mrb[0].mxu0 %v1520
      %v1614 = vpop.f32.mrb[0].mxu0
      %v1615 = vadd.f32 %v1398, %v1614
      %v1616 = vpop.f32.mrb[0].mxu0
      %v1617 = vpop.f32.mrb[0].mxu0
      %v1618 = vadd.f32 %v1401, %v1617
      %v1619 = vpop.f32.mrb[0].mxu0
      %1620 = vmatprep.mubr.bf16.mxu0 0
      %1621 = vmatmul.mubr.bf16.gmra.mrb[0].mxu0 %v1523
      %v1622 = vpop.f32.mrb[0].mxu0
      %v1623 = vadd.f32 %v1406, %v1622
      %v1624 = vpop.f32.mrb[0].mxu0
      %v1625 = vpop.f32.mrb[0].mxu0
      %v1626 = vadd.f32 %v1409, %v1625
      %v1627 = vpop.f32.mrb[0].mxu0
      %1628 = vmatprep.mubr.bf16.mxu0 0
      %1629 = vmatmul.mubr.bf16.gmra.mrb[0].mxu0 %v1526
      %v1630 = vpop.f32.mrb[0].mxu0
      %v1631 = vadd.f32 %v1414, %v1630
      %v1632 = vpop.f32.mrb[0].mxu0
      %v1633 = vpop.f32.mrb[0].mxu0
      %v1634 = vadd.f32 %v1417, %v1633
      %v1635 = vpop.f32.mrb[0].mxu0
      %1636 = vmatprep.mubr.bf16.mxu0 0
      %1637 = vmatmul.mubr.bf16.gmra.mrb[0].mxu0 %v1529
      %v1638 = vpop.f32.mrb[0].mxu0
      %v1639 = vadd.f32 %v1422, %v1638
      %v1640 = vpop.f32.mrb[0].mxu0
      %v1641 = vpop.f32.mrb[0].mxu0
      %v1642 = vadd.f32 %v1425, %v1641
      %v1643 = vpop.f32.mrb[0].mxu0
      %1644 = vmatprep.mubr.bf16.mxu0 0
      %1645 = vmatmul.mubr.bf16.gmra.mrb[0].mxu0 %v1532
      %v1646 = vpop.f32.mrb[0].mxu0
      %v1647 = vadd.f32 %v1430, %v1646
      %v1648 = vpop.f32.mrb[0].mxu0
      %v1649 = vpop.f32.mrb[0].mxu0
      %v1650 = vadd.f32 %v1433, %v1649
      %v1651 = vpop.f32.mrb[0].mxu0
      %1652 = vmatprep.mubr.bf16.mxu0 0
      %1653 = vmatmul.mubr.bf16.gmra.mrb[0].mxu0 %v1535
      %v1654 = vpop.f32.mrb[0].mxu0
      %v1655 = vadd.f32 %v1438, %v1654
      %v1656 = vpop.f32.mrb[0].mxu0
      %v1657 = vpop.f32.mrb[0].mxu0
      %v1658 = vadd.f32 %v1441, %v1657
      %v1659 = vpop.f32.mrb[0].mxu0
      %1660 = vmatprep.mubr.bf16.mxu0 0
      %1661 = vmatmul.mubr.bf16.gmra.mrb[0].mxu0 %v1538
      %v1662 = vpop.f32.mrb[0].mxu0
      %v1663 = vadd.f32 %v1446, %v1662
      %v1664 = vpop.f32.mrb[0].mxu0
      %v1665 = vpop.f32.mrb[0].mxu0
      %v1666 = vadd.f32 %v1449, %v1665
      %v1667 = vpop.f32.mrb[0].mxu0
      %1668 = vmatprep.mubr.bf16.mxu0 0
      %1669 = vmatmul.mubr.bf16.gmra.mrb[0].mxu0 %v1541
      %v1670 = vpop.f32.mrb[0].mxu0
      %v1671 = vadd.f32 %v1454, %v1670
      %v1672 = vpop.f32.mrb[0].mxu0
      %v1673 = vpop.f32.mrb[0].mxu0
      %v1674 = vadd.f32 %v1457, %v1673
      %v1675 = vpop.f32.mrb[0].mxu0
      %1676 = vmatprep.mubr.bf16.mxu0 0
      %1677 = vmatmul.mubr.bf16.gmra.mrb[0].mxu0 %v1544
      %v1678 = vpop.f32.mrb[0].mxu0
      %v1679 = vadd.f32 %v1462, %v1678
      %v1680 = vpop.f32.mrb[0].mxu0
      %v1681 = vpop.f32.mrb[0].mxu0
      %v1682 = vadd.f32 %v1465, %v1681
      %v1683 = vpop.f32.mrb[0].mxu0
      %1684 = vmatprep.mubr.bf16.mxu0 0
      %1685 = vmatmul.mubr.bf16.gmra.mrb[0].mxu0 %v1547
      %v1686 = vpop.f32.mrb[0].mxu0
      %v1687 = vadd.f32 %v1470, %v1686
      %v1688 = vpop.f32.mrb[0].mxu0
      %v1689 = vpop.f32.mrb[0].mxu0
      %v1690 = vadd.f32 %v1473, %v1689
      %v1691 = vpop.f32.mrb[0].mxu0
      %1692 = vmatprep.mubr.bf16.mxu0 0
      %1693 = vmatmul.mubr.bf16.gmra.mrb[0].mxu0 %v1550
      %v1694 = vpop.f32.mrb[0].mxu0
      %v1695 = vadd.f32 %v1478, %v1694
      %v1696 = vpop.f32.mrb[0].mxu0
      %v1697 = vpop.f32.mrb[0].mxu0
      %v1698 = vadd.f32 %v1481, %v1697
      %v1699 = vpop.f32.mrb[0].mxu0
      %1700 = vmatprep.mubr.bf16.mxu0 0
      %1701 = vmatmul.mubr.bf16.gmra.mrb[0].mxu0 %v1553
      %v1702 = vpop.f32.mrb[0].mxu0
      %v1703 = vadd.f32 %v1486, %v1702
      %v1704 = vpop.f32.mrb[0].mxu0
      %v1705 = vpop.f32.mrb[0].mxu0
      %v1706 = vadd.f32 %v1489, %v1705
      %v1707 = vpop.f32.mrb[0].mxu0
      %1708 = vmatprep.mubr.bf16.mxu0 0
      %1709 = vmatmul.mubr.bf16.gmra.mrb[0].mxu0 %v1556
      %v1710 = vpop.f32.mrb[0].mxu0
      %v1711 = vadd.f32 %v1494, %v1710
      %v1712 = vpop.f32.mrb[0].mxu0
      %v1713 = vpop.f32.mrb[0].mxu0
      %v1714 = vadd.f32 %v1497, %v1713
      %v1715 = vpop.f32.mrb[0].mxu0
      %1716 = vmatprep.mubr.bf16.mxu0 0
      %1717 = vmatmul.mubr.bf16.gmra.mrb[0].mxu0 %v1559
      %v1718 = vpop.f32.mrb[0].mxu0
      %v1719 = vadd.f32 %v1502, %v1718
      %v1720 = vpop.f32.mrb[0].mxu0
      %v1721 = vpop.f32.mrb[0].mxu0
      %v1722 = vadd.f32 %v1505, %v1721
      %v1723 = vpop.f32.mrb[0].mxu0
      %1724 = vdwg.mxu0
      %s1725 = scalar_lea.vmem [#allocation2], 48
      %v1726 = vld [vmem:[%s1725] sm:$0xff]
      %v1727 = vld [vmem:[%s1725 + $0x8] sm:$0xff]
      %v1728 = vld [vmem:[%s1725 + $0x18] sm:$0xff]
      %v1729 = vld [vmem:[%s1725 + $0x20] sm:$0xff]
      %v1730 = vld [vmem:[%s1725 + $0x30] sm:$0xff]
      %v1731 = vld [vmem:[%s1725 + $0x38] sm:$0xff]
      %v1732 = vld [vmem:[%s1725 + $0x48] sm:$0xff]
      %v1733 = vld [vmem:[%s1725 + $0x50] sm:$0xff]
      %v1734 = vld [vmem:[%s1725 + $0x60] sm:$0xff]
      %v1735 = vld [vmem:[%s1725 + $0x68] sm:$0xff]
      %v1736 = vld [vmem:[%s1725 + $0x78] sm:$0xff]
      %v1737 = vld [vmem:[%s1725 + $0x80] sm:$0xff]
      %v1738 = vld [vmem:[%s1725 + $0x90] sm:$0xff]
      %v1739 = vld [vmem:[%s1725 + $0x98] sm:$0xff]
      %v1740 = vld [vmem:[%s1725 + $0xa8] sm:$0xff]
      %v1741 = vld [vmem:[%s1725 + $0xb0] sm:$0xff]
      %v1742 = vld [vmem:[%s1725 + $0xc0] sm:$0xff]
      %v1743 = vld [vmem:[%s1725 + $0xc8] sm:$0xff]
      %v1744 = vld [vmem:[%s1725 + $0xd8] sm:$0xff]
      %v1745 = vld [vmem:[%s1725 + $0xe0] sm:$0xff]
      %v1746 = vld [vmem:[%s1725 + $0xf0] sm:$0xff]
      %v1747 = vld [vmem:[%s1725 + $0xf8] sm:$0xff]
      %v1748 = vld [vmem:[%s1725 + $0x108] sm:$0xff]
      %v1749 = vld [vmem:[%s1725 + $0x110] sm:$0xff]
      %v1750 = vld [vmem:[%s1725 + $0x120] sm:$0xff]
      %v1751 = vld [vmem:[%s1725 + $0x128] sm:$0xff]
      %v1752 = vld [vmem:[%s1725 + $0x138] sm:$0xff]
      %v1753 = vld [vmem:[%s1725 + $0x140] sm:$0xff]
      %v1754 = vld [vmem:[%s1725 + $0x150] sm:$0xff]
      %v1755 = vld [vmem:[%s1725 + $0x158] sm:$0xff]
      %v1756 = vld [vmem:[%s1725 + $0x168] sm:$0xff]
      %v1757 = vld [vmem:[%s1725 + $0x170] sm:$0xff]
      %v1758 = vld [vmem:[%s1725 + $0x1] sm:$0xff]
      %v1759 = vld [vmem:[%s1725 + $0x9] sm:$0xff]
      %v1760 = vld [vmem:[%s1725 + $0x19] sm:$0xff]
      %v1761 = vld [vmem:[%s1725 + $0x21] sm:$0xff]
      %v1762 = vld [vmem:[%s1725 + $0x31] sm:$0xff]
      %v1763 = vld [vmem:[%s1725 + $0x39] sm:$0xff]
      %v1764 = vld [vmem:[%s1725 + $0x49] sm:$0xff]
      %v1765 = vld [vmem:[%s1725 + $0x51] sm:$0xff]
      %v1766 = vld [vmem:[%s1725 + $0x61] sm:$0xff]
      %v1767 = vld [vmem:[%s1725 + $0x69] sm:$0xff]
      %v1768 = vld [vmem:[%s1725 + $0x79] sm:$0xff]
      %v1769 = vld [vmem:[%s1725 + $0x81] sm:$0xff]
      %v1770 = vld [vmem:[%s1725 + $0x91] sm:$0xff]
      %v1771 = vld [vmem:[%s1725 + $0x99] sm:$0xff]
      %v1772 = vld [vmem:[%s1725 + $0xa9] sm:$0xff]
      %v1773 = vld [vmem:[%s1725 + $0xb1] sm:$0xff]
      %v1774 = vld [vmem:[%s1725 + $0xc1] sm:$0xff]
      %v1775 = vld [vmem:[%s1725 + $0xc9] sm:$0xff]
      %v1776 = vld [vmem:[%s1725 + $0xd9] sm:$0xff]
      %v1777 = vld [vmem:[%s1725 + $0xe1] sm:$0xff]
      %v1778 = vld [vmem:[%s1725 + $0xf1] sm:$0xff]
      %v1779 = vld [vmem:[%s1725 + $0xf9] sm:$0xff]
      %v1780 = vld [vmem:[%s1725 + $0x109] sm:$0xff]
      %v1781 = vld [vmem:[%s1725 + $0x111] sm:$0xff]
      %v1782 = vld [vmem:[%s1725 + $0x121] sm:$0xff]
      %v1783 = vld [vmem:[%s1725 + $0x129] sm:$0xff]
      %v1784 = vld [vmem:[%s1725 + $0x139] sm:$0xff]
      %v1785 = vld [vmem:[%s1725 + $0x141] sm:$0xff]
      %v1786 = vld [vmem:[%s1725 + $0x151] sm:$0xff]
      %v1787 = vld [vmem:[%s1725 + $0x159] sm:$0xff]
      %v1788 = vld [vmem:[%s1725 + $0x169] sm:$0xff]
      %v1789 = vld [vmem:[%s1725 + $0x171] sm:$0xff]
      %v1790 = vld [vmem:[%s1725 + $0x2] sm:$0xff]
      %v1791 = vld [vmem:[%s1725 + $0xa] sm:$0xff]
      %v1792 = vld [vmem:[%s1725 + $0x1a] sm:$0xff]
      %v1793 = vld [vmem:[%s1725 + $0x22] sm:$0xff]
      %v1794 = vld [vmem:[%s1725 + $0x32] sm:$0xff]
      %v1795 = vld [vmem:[%s1725 + $0x3a] sm:$0xff]
      %v1796 = vld [vmem:[%s1725 + $0x4a] sm:$0xff]
      %v1797 = vld [vmem:[%s1725 + $0x52] sm:$0xff]
      %v1798 = vld [vmem:[%s1725 + $0x62] sm:$0xff]
      %v1799 = vld [vmem:[%s1725 + $0x6a] sm:$0xff]
      %v1800 = vld [vmem:[%s1725 + $0x7a] sm:$0xff]
      %v1801 = vld [vmem:[%s1725 + $0x82] sm:$0xff]
      %v1802 = vld [vmem:[%s1725 + $0x92] sm:$0xff]
      %v1803 = vld [vmem:[%s1725 + $0x9a] sm:$0xff]
      %v1804 = vld [vmem:[%s1725 + $0xaa] sm:$0xff]
      %v1805 = vld [vmem:[%s1725 + $0xb2] sm:$0xff]
      %v1806 = vld [vmem:[%s1725 + $0xc2] sm:$0xff]
      %v1807 = vld [vmem:[%s1725 + $0xca] sm:$0xff]
      %v1808 = vld [vmem:[%s1725 + $0xda] sm:$0xff]
      %v1809 = vld [vmem:[%s1725 + $0xe2] sm:$0xff]
      %v1810 = vld [vmem:[%s1725 + $0xf2] sm:$0xff]
      %v1811 = vld [vmem:[%s1725 + $0xfa] sm:$0xff]
      %v1812 = vld [vmem:[%s1725 + $0x10a] sm:$0xff]
      %v1813 = vld [vmem:[%s1725 + $0x112] sm:$0xff]
      %v1814 = vld [vmem:[%s1725 + $0x122] sm:$0xff]
      %v1815 = vld [vmem:[%s1725 + $0x12a] sm:$0xff]
      %v1816 = vld [vmem:[%s1725 + $0x13a] sm:$0xff]
      %v1817 = vld [vmem:[%s1725 + $0x142] sm:$0xff]
      %v1818 = vld [vmem:[%s1725 + $0x152] sm:$0xff]
      %v1819 = vld [vmem:[%s1725 + $0x15a] sm:$0xff]
      %v1820 = vld [vmem:[%s1725 + $0x16a] sm:$0xff]
      %v1821 = vld [vmem:[%s1725 + $0x172] sm:$0xff]
      %1854 = vrot.lane.b32.xlu0 %v1758, 4
      %v1855 = vpop.permute.xlu0 %1854
      %1856 = vrot.lane.b32.xlu0 %v1759, 4
      %v1857 = vpop.permute.xlu0 %1856
      %1858 = vrot.lane.b32.xlu0 %v1760, 4
      %v1859 = vpop.permute.xlu0 %1858
      %1860 = vrot.lane.b32.xlu0 %v1761, 4
      %v1861 = vpop.permute.xlu0 %1860
      %1862 = vrot.lane.b32.xlu0 %v1762, 4
      %v1863 = vpop.permute.xlu0 %1862
      %1864 = vrot.lane.b32.xlu0 %v1763, 4
      %v1865 = vpop.permute.xlu0 %1864
      %1866 = vrot.lane.b32.xlu0 %v1764, 4
      %v1867 = vpop.permute.xlu0 %1866
      %1868 = vrot.lane.b32.xlu0 %v1765, 4
      %v1869 = vpop.permute.xlu0 %1868
      %1870 = vrot.lane.b32.xlu0 %v1766, 4
      %v1871 = vpop.permute.xlu0 %1870
      %1872 = vrot.lane.b32.xlu0 %v1767, 4
      %v1873 = vpop.permute.xlu0 %1872
      %1874 = vrot.lane.b32.xlu0 %v1768, 4
      %v1875 = vpop.permute.xlu0 %1874
      %1876 = vrot.lane.b32.xlu0 %v1769, 4
      %v1877 = vpop.permute.xlu0 %1876
      %1878 = vrot.lane.b32.xlu0 %v1770, 4
      %v1879 = vpop.permute.xlu0 %1878
      %1880 = vrot.lane.b32.xlu0 %v1771, 4
      %v1881 = vpop.permute.xlu0 %1880
      %1882 = vrot.lane.b32.xlu0 %v1772, 4
      %v1883 = vpop.permute.xlu0 %1882
      %1884 = vrot.lane.b32.xlu0 %v1773, 4
      %v1885 = vpop.permute.xlu0 %1884
      %1886 = vrot.lane.b32.xlu0 %v1774, 4
      %v1887 = vpop.permute.xlu0 %1886
      %1888 = vrot.lane.b32.xlu0 %v1775, 4
      %v1889 = vpop.permute.xlu0 %1888
      %1890 = vrot.lane.b32.xlu0 %v1776, 4
      %v1891 = vpop.permute.xlu0 %1890
      %1892 = vrot.lane.b32.xlu0 %v1777, 4
      %v1893 = vpop.permute.xlu0 %1892
      %1894 = vrot.lane.b32.xlu0 %v1778, 4
      %v1895 = vpop.permute.xlu0 %1894
      %1896 = vrot.lane.b32.xlu0 %v1779, 4
      %v1897 = vpop.permute.xlu0 %1896
      %1898 = vrot.lane.b32.xlu0 %v1780, 4
      %v1899 = vpop.permute.xlu0 %1898
      %1900 = vrot.lane.b32.xlu0 %v1781, 4
      %v1901 = vpop.permute.xlu0 %1900
      %1902 = vrot.lane.b32.xlu0 %v1782, 4
      %v1903 = vpop.permute.xlu0 %1902
      %1904 = vrot.lane.b32.xlu0 %v1783, 4
      %v1905 = vpop.permute.xlu0 %1904
      %1906 = vrot.lane.b32.xlu0 %v1784, 4
      %v1907 = vpop.permute.xlu0 %1906
      %1908 = vrot.lane.b32.xlu0 %v1785, 4
      %v1909 = vpop.permute.xlu0 %1908
      %1910 = vrot.lane.b32.xlu0 %v1786, 4
      %v1911 = vpop.permute.xlu0 %1910
      %1912 = vrot.lane.b32.xlu0 %v1787, 4
      %v1913 = vpop.permute.xlu0 %1912
      %1914 = vrot.lane.b32.xlu0 %v1788, 4
      %v1915 = vpop.permute.xlu0 %1914
      %1916 = vrot.lane.b32.xlu0 %v1789, 4
      %v1917 = vpop.permute.xlu0 %1916
      %1982 = vrot.lane.b32.xlu0 %v1790, 8
      %v1983 = vpop.permute.xlu0 %1982
      %1984 = vrot.lane.b32.xlu0 %v1791, 8
      %v1985 = vpop.permute.xlu0 %1984
      %1986 = vrot.lane.b32.xlu0 %v1792, 8
      %v1987 = vpop.permute.xlu0 %1986
      %1988 = vrot.lane.b32.xlu0 %v1793, 8
      %v1989 = vpop.permute.xlu0 %1988
      %1990 = vrot.lane.b32.xlu0 %v1794, 8
      %v1991 = vpop.permute.xlu0 %1990
      %1992 = vrot.lane.b32.xlu0 %v1795, 8
      %v1993 = vpop.permute.xlu0 %1992
      %1994 = vrot.lane.b32.xlu0 %v1796, 8
      %v1995 = vpop.permute.xlu0 %1994
      %1996 = vrot.lane.b32.xlu0 %v1797, 8
      %v1997 = vpop.permute.xlu0 %1996
      %1998 = vrot.lane.b32.xlu0 %v1798, 8
      %v1999 = vpop.permute.xlu0 %1998
      %2000 = vrot.lane.b32.xlu0 %v1799, 8
      %v2001 = vpop.permute.xlu0 %2000
      %2002 = vrot.lane.b32.xlu0 %v1800, 8
      %v2003 = vpop.permute.xlu0 %2002
      %2004 = vrot.lane.b32.xlu0 %v1801, 8
      %v2005 = vpop.permute.xlu0 %2004
      %2006 = vrot.lane.b32.xlu0 %v1802, 8
      %v2007 = vpop.permute.xlu0 %2006
      %2008 = vrot.lane.b32.xlu0 %v1803, 8
      %v2009 = vpop.permute.xlu0 %2008
      %2010 = vrot.lane.b32.xlu0 %v1804, 8
      %v2011 = vpop.permute.xlu0 %2010
      %2012 = vrot.lane.b32.xlu0 %v1805, 8
      %v2013 = vpop.permute.xlu0 %2012
      %2014 = vrot.lane.b32.xlu0 %v1806, 8
      %v2015 = vpop.permute.xlu0 %2014
      %2016 = vrot.lane.b32.xlu0 %v1807, 8
      %v2017 = vpop.permute.xlu0 %2016
      %2018 = vrot.lane.b32.xlu0 %v1808, 8
      %v2019 = vpop.permute.xlu0 %2018
      %2020 = vrot.lane.b32.xlu0 %v1809, 8
      %v2021 = vpop.permute.xlu0 %2020
      %2022 = vrot.lane.b32.xlu0 %v1810, 8
      %v2023 = vpop.permute.xlu0 %2022
      %2024 = vrot.lane.b32.xlu0 %v1811, 8
      %v2025 = vpop.permute.xlu0 %2024
      %2026 = vrot.lane.b32.xlu0 %v1812, 8
      %v2027 = vpop.permute.xlu0 %2026
      %2028 = vrot.lane.b32.xlu0 %v1813, 8
      %v2029 = vpop.permute.xlu0 %2028
      %2030 = vrot.lane.b32.xlu0 %v1814, 8
      %v2031 = vpop.permute.xlu0 %2030
      %2032 = vrot.lane.b32.xlu0 %v1815, 8
      %v2033 = vpop.permute.xlu0 %2032
      %2034 = vrot.lane.b32.xlu0 %v1816, 8
      %v2035 = vpop.permute.xlu0 %2034
      %2036 = vrot.lane.b32.xlu0 %v1817, 8
      %v2037 = vpop.permute.xlu0 %2036
      %2038 = vrot.lane.b32.xlu0 %v1818, 8
      %v2039 = vpop.permute.xlu0 %2038
      %2040 = vrot.lane.b32.xlu0 %v1819, 8
      %v2041 = vpop.permute.xlu0 %2040
      %2042 = vrot.lane.b32.xlu0 %v1820, 8
      %v2043 = vpop.permute.xlu0 %2042
      %2044 = vrot.lane.b32.xlu0 %v1821, 8
      %v2045 = vpop.permute.xlu0 %2044
      %v2078 = vsel %vm280, %v1726, %v1855
      %v2079 = vsel %vm280, %v1727, %v1857
      %v2080 = vsel %vm280, %v1728, %v1859
      %v2081 = vsel %vm280, %v1729, %v1861
      %v2082 = vsel %vm280, %v1730, %v1863
      %v2083 = vsel %vm280, %v1731, %v1865
      %v2084 = vsel %vm280, %v1732, %v1867
      %v2085 = vsel %vm280, %v1733, %v1869
      %v2086 = vsel %vm280, %v1734, %v1871
      %v2087 = vsel %vm280, %v1735, %v1873
      %v2088 = vsel %vm280, %v1736, %v1875
      %v2089 = vsel %vm280, %v1737, %v1877
      %v2090 = vsel %vm280, %v1738, %v1879
      %v2091 = vsel %vm280, %v1739, %v1881
      %v2092 = vsel %vm280, %v1740, %v1883
      %v2093 = vsel %vm280, %v1741, %v1885
      %v2094 = vsel %vm280, %v1742, %v1887
      %v2095 = vsel %vm280, %v1743, %v1889
      %v2096 = vsel %vm280, %v1744, %v1891
      %v2097 = vsel %vm280, %v1745, %v1893
      %v2098 = vsel %vm280, %v1746, %v1895
      %v2099 = vsel %vm280, %v1747, %v1897
      %v2100 = vsel %vm280, %v1748, %v1899
      %v2101 = vsel %vm280, %v1749, %v1901
      %v2102 = vsel %vm280, %v1750, %v1903
      %v2103 = vsel %vm280, %v1751, %v1905
      %v2104 = vsel %vm280, %v1752, %v1907
      %v2105 = vsel %vm280, %v1753, %v1909
      %v2106 = vsel %vm280, %v1754, %v1911
      %v2107 = vsel %vm280, %v1755, %v1913
      %v2108 = vsel %vm280, %v1756, %v1915
      %v2109 = vsel %vm280, %v1757, %v1917
      %v2110 = vsel %vm803, %v2078, %v1983
      %v2111 = vsel %vm803, %v2079, %v1985
      %v2112 = vsel %vm803, %v2080, %v1987
      %v2113 = vsel %vm803, %v2081, %v1989
      %v2114 = vsel %vm803, %v2082, %v1991
      %v2115 = vsel %vm803, %v2083, %v1993
      %v2116 = vsel %vm803, %v2084, %v1995
      %v2117 = vsel %vm803, %v2085, %v1997
      %v2118 = vsel %vm803, %v2086, %v1999
      %v2119 = vsel %vm803, %v2087, %v2001
      %v2120 = vsel %vm803, %v2088, %v2003
      %v2121 = vsel %vm803, %v2089, %v2005
      %v2122 = vsel %vm803, %v2090, %v2007
      %v2123 = vsel %vm803, %v2091, %v2009
      %v2124 = vsel %vm803, %v2092, %v2011
      %v2125 = vsel %vm803, %v2093, %v2013
      %v2126 = vsel %vm803, %v2094, %v2015
      %v2127 = vsel %vm803, %v2095, %v2017
      %v2128 = vsel %vm803, %v2096, %v2019
      %v2129 = vsel %vm803, %v2097, %v2021
      %v2130 = vsel %vm803, %v2098, %v2023
      %v2131 = vsel %vm803, %v2099, %v2025
      %v2132 = vsel %vm803, %v2100, %v2027
      %v2133 = vsel %vm803, %v2101, %v2029
      %v2134 = vsel %vm803, %v2102, %v2031
      %v2135 = vsel %vm803, %v2103, %v2033
      %v2136 = vsel %vm803, %v2104, %v2035
      %v2137 = vsel %vm803, %v2105, %v2037
      %v2138 = vsel %vm803, %v2106, %v2039
      %v2139 = vsel %vm803, %v2107, %v2041
      %v2140 = vsel %vm803, %v2108, %v2043
      %v2141 = vsel %vm803, %v2109, %v2045
      %v2142 = vpack.c.bf16 %v2111, %v2110
      %v2143 = vpack.c.bf16 %v2113, %v2112
      %v2144 = vpack.c.bf16 %v2115, %v2114
      %v2145 = vpack.c.bf16 %v2117, %v2116
      %v2146 = vpack.c.bf16 %v2119, %v2118
      %v2147 = vpack.c.bf16 %v2121, %v2120
      %v2148 = vpack.c.bf16 %v2123, %v2122
      %v2149 = vpack.c.bf16 %v2125, %v2124
      %v2150 = vpack.c.bf16 %v2127, %v2126
      %v2151 = vpack.c.bf16 %v2129, %v2128
      %v2152 = vpack.c.bf16 %v2131, %v2130
      %v2153 = vpack.c.bf16 %v2133, %v2132
      %v2154 = vpack.c.bf16 %v2135, %v2134
      %v2155 = vpack.c.bf16 %v2137, %v2136
      %v2156 = vpack.c.bf16 %v2139, %v2138
      %v2157 = vpack.c.bf16 %v2141, %v2140
      %s2158 = scalar_lea.vmem %s1, 16
      %v2159 = vld [vmem:[%s2158] sm:$0xf]
      %v2160 = vld [vmem:[%s2158 + $0x4] sm:$0x3]
      %v2163 = vunpack.c.l.b16 %v2159
      %v2164 = vunpack.c.l.b16 %v2160
      %v2165 = vpack.c.b16 %v2164, %v2163
      %v2167 = vsel %vm1294, %v2142, 0
      %v2170 = vsel %vm1294, %v2143, 0
      %v2173 = vsel %vm1294, %v2144, 0
      %v2176 = vsel %vm1294, %v2145, 0
      %v2179 = vsel %vm1294, %v2146, 0
      %v2182 = vsel %vm1294, %v2147, 0
      %v2185 = vsel %vm1294, %v2148, 0
      %v2188 = vsel %vm1294, %v2149, 0
      %v2191 = vsel %vm1294, %v2150, 0
      %v2194 = vsel %vm1294, %v2151, 0
      %v2197 = vsel %vm1294, %v2152, 0
      %v2200 = vsel %vm1294, %v2153, 0
      %v2203 = vsel %vm1294, %v2154, 0
      %v2206 = vsel %vm1294, %v2155, 0
      %v2209 = vsel %vm1294, %v2156, 0
      %v2212 = vsel %vm1294, %v2157, 0
      %v2215 = vsel %vm1343, %v2165, 0
      %2217 = vmatprep.subr.bf16.mxu0 0
      %2218 = vmatpush1.bf16.msra.mxu0 %v2215
      %2219 = vmatprep.subr.bf16.mxu0 0
      %2220 = vmatpush1.bf16.msra.mxu0 0
      %2221 = vmatprep.subr.bf16.mxu0 0
      %2222 = vmatpush1.bf16.msra.mxu0 0
      %2223 = vmatprep.subr.bf16.mxu0 0
      %2224 = vmatpush1.bf16.msra.mxu0 0
      %2225 = vmatprep.subr.bf16.mxu0 0
      %2226 = vmatpush1.bf16.msra.mxu0 0
      %2227 = vmatprep.subr.bf16.mxu0 0
      %2228 = vmatpush1.bf16.msra.mxu0 0
      %2229 = vmatprep.subr.bf16.mxu0 0
      %2230 = vmatpush1.bf16.msra.mxu0 0
      %2231 = vmatprep.subr.bf16.mxu0 0
      %2232 = vmatpush1.bf16.msra.mxu0 0
      %2233 = vmatprep.subr.bf16.mxu0 0
      %2234 = vmatpush1.bf16.msra.mxu0 0
      %2235 = vmatprep.subr.bf16.mxu0 0
      %2236 = vmatpush1.bf16.msra.mxu0 0
      %2237 = vmatprep.subr.bf16.mxu0 0
      %2238 = vmatpush1.bf16.msra.mxu0 0
      %2239 = vmatprep.subr.bf16.mxu0 0
      %2240 = vmatpush1.bf16.msra.mxu0 0
      %2241 = vmatprep.subr.bf16.mxu0 0
      %2242 = vmatpush1.bf16.msra.mxu0 0
      %2243 = vmatprep.subr.bf16.mxu0 0
      %2244 = vmatpush1.bf16.msra.mxu0 0
      %2245 = vmatprep.subr.bf16.mxu0 0
      %2246 = vmatpush1.bf16.msra.mxu0 0
      %2247 = vmatprep.subr.bf16.mxu0 0
      %2248 = vmatpush1.bf16.msra.mxu0 0
      %2249 = vmatprep.mubr.bf16.mxu0 0
      %2250 = vmatmul.mubr.bf16.gmra.mrb[0].mxu0 %v2167
      %v2251 = vpop.f32.mrb[0].mxu0
      %v2252 = vadd.f32 0.0, %v2251
      %v2253 = vpop.f32.mrb[0].mxu0
      %v2254 = vpop.f32.mrb[0].mxu0
      %v2255 = vadd.f32 0.0, %v2254
      %v2256 = vpop.f32.mrb[0].mxu0
      %2257 = vmatprep.mubr.bf16.mxu0 0
      %2258 = vmatmul.mubr.bf16.gmra.mrb[0].mxu0 %v2170
      %v2259 = vpop.f32.mrb[0].mxu0
      %v2260 = vadd.f32 0.0, %v2259
      %v2261 = vpop.f32.mrb[0].mxu0
      %v2262 = vpop.f32.mrb[0].mxu0
      %v2263 = vadd.f32 0.0, %v2262
      %v2264 = vpop.f32.mrb[0].mxu0
      %2265 = vmatprep.mubr.bf16.mxu0 0
      %2266 = vmatmul.mubr.bf16.gmra.mrb[0].mxu0 %v2173
      %v2267 = vpop.f32.mrb[0].mxu0
      %v2268 = vadd.f32 0.0, %v2267
      %v2269 = vpop.f32.mrb[0].mxu0
      %v2270 = vpop.f32.mrb[0].mxu0
      %v2271 = vadd.f32 0.0, %v2270
      %v2272 = vpop.f32.mrb[0].mxu0
      %2273 = vmatprep.mubr.bf16.mxu0 0
      %2274 = vmatmul.mubr.bf16.gmra.mrb[0].mxu0 %v2176
      %v2275 = vpop.f32.mrb[0].mxu0
      %v2276 = vadd.f32 0.0, %v2275
      %v2277 = vpop.f32.mrb[0].mxu0
      %v2278 = vpop.f32.mrb[0].mxu0
      %v2279 = vadd.f32 0.0, %v2278
      %v2280 = vpop.f32.mrb[0].mxu0
      %2281 = vmatprep.mubr.bf16.mxu0 0
      %2282 = vmatmul.mubr.bf16.gmra.mrb[0].mxu0 %v2179
      %v2283 = vpop.f32.mrb[0].mxu0
      %v2284 = vadd.f32 0.0, %v2283
      %v2285 = vpop.f32.mrb[0].mxu0
      %v2286 = vpop.f32.mrb[0].mxu0
      %v2287 = vadd.f32 0.0, %v2286
      %v2288 = vpop.f32.mrb[0].mxu0
      %2289 = vmatprep.mubr.bf16.mxu0 0
      %2290 = vmatmul.mubr.bf16.gmra.mrb[0].mxu0 %v2182
      %v2291 = vpop.f32.mrb[0].mxu0
      %v2292 = vadd.f32 0.0, %v2291
      %v2293 = vpop.f32.mrb[0].mxu0
      %v2294 = vpop.f32.mrb[0].mxu0
      %v2295 = vadd.f32 0.0, %v2294
      %v2296 = vpop.f32.mrb[0].mxu0
      %2297 = vmatprep.mubr.bf16.mxu0 0
      %2298 = vmatmul.mubr.bf16.gmra.mrb[0].mxu0 %v2185
      %v2299 = vpop.f32.mrb[0].mxu0
      %v2300 = vadd.f32 0.0, %v2299
      %v2301 = vpop.f32.mrb[0].mxu0
      %v2302 = vpop.f32.mrb[0].mxu0
      %v2303 = vadd.f32 0.0, %v2302
      %v2304 = vpop.f32.mrb[0].mxu0
      %2305 = vmatprep.mubr.bf16.mxu0 0
      %2306 = vmatmul.mubr.bf16.gmra.mrb[0].mxu0 %v2188
      %v2307 = vpop.f32.mrb[0].mxu0
      %v2308 = vadd.f32 0.0, %v2307
      %v2309 = vpop.f32.mrb[0].mxu0
      %v2310 = vpop.f32.mrb[0].mxu0
      %v2311 = vadd.f32 0.0, %v2310
      %v2312 = vpop.f32.mrb[0].mxu0
      %2313 = vmatprep.mubr.bf16.mxu0 0
      %2314 = vmatmul.mubr.bf16.gmra.mrb[0].mxu0 %v2191
      %v2315 = vpop.f32.mrb[0].mxu0
      %v2316 = vadd.f32 0.0, %v2315
      %v2317 = vpop.f32.mrb[0].mxu0
      %v2318 = vpop.f32.mrb[0].mxu0
      %v2319 = vadd.f32 0.0, %v2318
      %v2320 = vpop.f32.mrb[0].mxu0
      %2321 = vmatprep.mubr.bf16.mxu0 0
      %2322 = vmatmul.mubr.bf16.gmra.mrb[0].mxu0 %v2194
      %v2323 = vpop.f32.mrb[0].mxu0
      %v2324 = vadd.f32 0.0, %v2323
      %v2325 = vpop.f32.mrb[0].mxu0
      %v2326 = vpop.f32.mrb[0].mxu0
      %v2327 = vadd.f32 0.0, %v2326
      %v2328 = vpop.f32.mrb[0].mxu0
      %2329 = vmatprep.mubr.bf16.mxu0 0
      %2330 = vmatmul.mubr.bf16.gmra.mrb[0].mxu0 %v2197
      %v2331 = vpop.f32.mrb[0].mxu0
      %v2332 = vadd.f32 0.0, %v2331
      %v2333 = vpop.f32.mrb[0].mxu0
      %v2334 = vpop.f32.mrb[0].mxu0
      %v2335 = vadd.f32 0.0, %v2334
      %v2336 = vpop.f32.mrb[0].mxu0
      %2337 = vmatprep.mubr.bf16.mxu0 0
      %2338 = vmatmul.mubr.bf16.gmra.mrb[0].mxu0 %v2200
      %v2339 = vpop.f32.mrb[0].mxu0
      %v2340 = vadd.f32 0.0, %v2339
      %v2341 = vpop.f32.mrb[0].mxu0
      %v2342 = vpop.f32.mrb[0].mxu0
      %v2343 = vadd.f32 0.0, %v2342
      %v2344 = vpop.f32.mrb[0].mxu0
      %2345 = vmatprep.mubr.bf16.mxu0 0
      %2346 = vmatmul.mubr.bf16.gmra.mrb[0].mxu0 %v2203
      %v2347 = vpop.f32.mrb[0].mxu0
      %v2348 = vadd.f32 0.0, %v2347
      %v2349 = vpop.f32.mrb[0].mxu0
      %v2350 = vpop.f32.mrb[0].mxu0
      %v2351 = vadd.f32 0.0, %v2350
      %v2352 = vpop.f32.mrb[0].mxu0
      %2353 = vmatprep.mubr.bf16.mxu0 0
      %2354 = vmatmul.mubr.bf16.gmra.mrb[0].mxu0 %v2206
      %v2355 = vpop.f32.mrb[0].mxu0
      %v2356 = vadd.f32 0.0, %v2355
      %v2357 = vpop.f32.mrb[0].mxu0
      %v2358 = vpop.f32.mrb[0].mxu0
      %v2359 = vadd.f32 0.0, %v2358
      %v2360 = vpop.f32.mrb[0].mxu0
      %2361 = vmatprep.mubr.bf16.mxu0 0
      %2362 = vmatmul.mubr.bf16.gmra.mrb[0].mxu0 %v2209
      %v2363 = vpop.f32.mrb[0].mxu0
      %v2364 = vadd.f32 0.0, %v2363
      %v2365 = vpop.f32.mrb[0].mxu0
      %v2366 = vpop.f32.mrb[0].mxu0
      %v2367 = vadd.f32 0.0, %v2366
      %v2368 = vpop.f32.mrb[0].mxu0
      %2369 = vmatprep.mubr.bf16.mxu0 0
      %2370 = vmatmul.mubr.bf16.gmra.mrb[0].mxu0 %v2212
      %v2371 = vpop.f32.mrb[0].mxu0
      %v2372 = vadd.f32 0.0, %v2371
      %v2373 = vpop.f32.mrb[0].mxu0
      %v2374 = vpop.f32.mrb[0].mxu0
      %v2375 = vadd.f32 0.0, %v2374
      %v2376 = vpop.f32.mrb[0].mxu0
      %2377 = vdwg.mxu0
      %v2378 = vadd.f32 %v1599, %v2252
      %v2379 = vadd.f32 %v1602, %v2255
      %v2380 = vadd.f32 %v1607, %v2260
      %v2381 = vadd.f32 %v1610, %v2263
      %v2382 = vadd.f32 %v1615, %v2268
      %v2383 = vadd.f32 %v1618, %v2271
      %v2384 = vadd.f32 %v1623, %v2276
      %v2385 = vadd.f32 %v1626, %v2279
      %v2386 = vadd.f32 %v1631, %v2284
      %v2387 = vadd.f32 %v1634, %v2287
      %v2388 = vadd.f32 %v1639, %v2292
      %v2389 = vadd.f32 %v1642, %v2295
      %v2390 = vadd.f32 %v1647, %v2300
      %v2391 = vadd.f32 %v1650, %v2303
      %v2392 = vadd.f32 %v1655, %v2308
      %v2393 = vadd.f32 %v1658, %v2311
      %v2394 = vadd.f32 %v1663, %v2316
      %v2395 = vadd.f32 %v1666, %v2319
      %v2396 = vadd.f32 %v1671, %v2324
      %v2397 = vadd.f32 %v1674, %v2327
      %v2398 = vadd.f32 %v1679, %v2332
      %v2399 = vadd.f32 %v1682, %v2335
      %v2400 = vadd.f32 %v1687, %v2340
      %v2401 = vadd.f32 %v1690, %v2343
      %v2402 = vadd.f32 %v1695, %v2348
      %v2403 = vadd.f32 %v1698, %v2351
      %v2404 = vadd.f32 %v1703, %v2356
      %v2405 = vadd.f32 %v1706, %v2359
      %v2406 = vadd.f32 %v1711, %v2364
      %v2407 = vadd.f32 %v1714, %v2367
      %v2408 = vadd.f32 %v1719, %v2372
      %v2409 = vadd.f32 %v1722, %v2375
      %v2410 = vld [vmem:[%s2] sm:$0x1]
      %v2412 = vlaneseq
      %v2413 = vshrl.u32 %v2412, 7
      %v2414 = vsub.s32 0, %v2413
      %v2415 = vrot.slane %v2410, %v2414
      %v2417 = vadd.f32 %v2378, %v2415
      %v2418 = vadd.f32 %v2379, %v2415
      %v2419 = vadd.f32 %v2380, %v2415
      %v2420 = vadd.f32 %v2381, %v2415
      %v2421 = vadd.f32 %v2382, %v2415
      %v2422 = vadd.f32 %v2383, %v2415
      %v2423 = vadd.f32 %v2384, %v2415
      %v2424 = vadd.f32 %v2385, %v2415
      %v2425 = vadd.f32 %v2386, %v2415
      %v2426 = vadd.f32 %v2387, %v2415
      %v2427 = vadd.f32 %v2388, %v2415
      %v2428 = vadd.f32 %v2389, %v2415
      %v2429 = vadd.f32 %v2390, %v2415
      %v2430 = vadd.f32 %v2391, %v2415
      %v2431 = vadd.f32 %v2392, %v2415
      %v2432 = vadd.f32 %v2393, %v2415
      %v2433 = vadd.f32 %v2394, %v2415
      %v2434 = vadd.f32 %v2395, %v2415
      %v2435 = vadd.f32 %v2396, %v2415
      %v2436 = vadd.f32 %v2397, %v2415
      %v2437 = vadd.f32 %v2398, %v2415
      %v2438 = vadd.f32 %v2399, %v2415
      %v2439 = vadd.f32 %v2400, %v2415
      %v2440 = vadd.f32 %v2401, %v2415
      %v2441 = vadd.f32 %v2402, %v2415
      %v2442 = vadd.f32 %v2403, %v2415
      %v2443 = vadd.f32 %v2404, %v2415
      %v2444 = vadd.f32 %v2405, %v2415
      %v2445 = vadd.f32 %v2406, %v2415
      %v2446 = vadd.f32 %v2407, %v2415
      %v2447 = vadd.f32 %v2408, %v2415
      %v2448 = vadd.f32 %v2409, %v2415
      %v2449 = vmax.f32 %v2417, 0.0
      %v2450 = vmax.f32 %v2418, 0.0
      %v2451 = vmax.f32 %v2419, 0.0
      %v2452 = vmax.f32 %v2420, 0.0
      %v2453 = vmax.f32 %v2421, 0.0
      %v2454 = vmax.f32 %v2422, 0.0
      %v2455 = vmax.f32 %v2423, 0.0
      %v2456 = vmax.f32 %v2424, 0.0
      %v2457 = vmax.f32 %v2425, 0.0
      %v2458 = vmax.f32 %v2426, 0.0
      %v2459 = vmax.f32 %v2427, 0.0
      %v2460 = vmax.f32 %v2428, 0.0
      %v2461 = vmax.f32 %v2429, 0.0
      %v2462 = vmax.f32 %v2430, 0.0
      %v2463 = vmax.f32 %v2431, 0.0
      %v2464 = vmax.f32 %v2432, 0.0
      %v2465 = vmax.f32 %v2433, 0.0
      %v2466 = vmax.f32 %v2434, 0.0
      %v2467 = vmax.f32 %v2435, 0.0
      %v2468 = vmax.f32 %v2436, 0.0
      %v2469 = vmax.f32 %v2437, 0.0
      %v2470 = vmax.f32 %v2438, 0.0
      %v2471 = vmax.f32 %v2439, 0.0
      %v2472 = vmax.f32 %v2440, 0.0
      %v2473 = vmax.f32 %v2441, 0.0
      %v2474 = vmax.f32 %v2442, 0.0
      %v2475 = vmax.f32 %v2443, 0.0
      %v2476 = vmax.f32 %v2444, 0.0
      %v2477 = vmax.f32 %v2445, 0.0
      %v2478 = vmax.f32 %v2446, 0.0
      %v2479 = vmax.f32 %v2447, 0.0
      %v2480 = vmax.f32 %v2448, 0.0
      %2481 = vst.msk [vmem:[#allocation3] sm:$0xff] %vm803, 0.0
      %2482 = vst.msk [vmem:[#allocation3 + $0x8] sm:$0xff] %vm803, 0.0
      %vm2483 = vcmask 58368
      %2484 = vst.msk [vmem:[#allocation3 + $0x10] sm:$0x3] %vm2483, 0.0
      %s2485 = scalar_lea.vmem [#allocation3], 408
      %2486 = vst.msk [vmem:[%s2485] sm:$0xff] %vm803, 0.0
      %2487 = vst.msk [vmem:[%s2485 + $0x8] sm:$0xff] %vm803, 0.0
      %2488 = vst.msk [vmem:[%s2485 + $0x10] sm:$0x3] %vm2483, 0.0
      %s2489 = scalar_lea.vmem [#allocation3], 24
      %vm2490 = vcmask 57344
      %2491 = vst.msk [vmem:[%s2489] sm:$0x1] %vm2490, 0.0
      %2492 = vst.msk [vmem:[%s2489 + $0x18] sm:$0x1] %vm2490, 0.0
      %2493 = vst.msk [vmem:[%s2489 + $0x30] sm:$0x1] %vm2490, 0.0
      %2494 = vst.msk [vmem:[%s2489 + $0x48] sm:$0x1] %vm2490, 0.0
      %2495 = vst.msk [vmem:[%s2489 + $0x60] sm:$0x1] %vm2490, 0.0
      %2496 = vst.msk [vmem:[%s2489 + $0x78] sm:$0x1] %vm2490, 0.0
      %2497 = vst.msk [vmem:[%s2489 + $0x90] sm:$0x1] %vm2490, 0.0
      %2498 = vst.msk [vmem:[%s2489 + $0xa8] sm:$0x1] %vm2490, 0.0
      %2499 = vst.msk [vmem:[%s2489 + $0xc0] sm:$0x1] %vm2490, 0.0
      %2500 = vst.msk [vmem:[%s2489 + $0xd8] sm:$0x1] %vm2490, 0.0
      %2501 = vst.msk [vmem:[%s2489 + $0xf0] sm:$0x1] %vm2490, 0.0
      %2502 = vst.msk [vmem:[%s2489 + $0x108] sm:$0x1] %vm2490, 0.0
      %2503 = vst.msk [vmem:[%s2489 + $0x120] sm:$0x1] %vm2490, 0.0
      %2504 = vst.msk [vmem:[%s2489 + $0x138] sm:$0x1] %vm2490, 0.0
      %2505 = vst.msk [vmem:[%s2489 + $0x150] sm:$0x1] %vm2490, 0.0
      %2506 = vst.msk [vmem:[%s2489 + $0x168] sm:$0x1] %vm2490, 0.0
      %2507 = vst.msk [vmem:[%s2489 + $0x11] sm:$0x1] %vm2490, 0.0
      %2508 = vst.msk [vmem:[%s2489 + $0x29] sm:$0x1] %vm2490, 0.0
      %2509 = vst.msk [vmem:[%s2489 + $0x41] sm:$0x1] %vm2490, 0.0
      %2510 = vst.msk [vmem:[%s2489 + $0x59] sm:$0x1] %vm2490, 0.0
      %2511 = vst.msk [vmem:[%s2489 + $0x71] sm:$0x1] %vm2490, 0.0
      %2512 = vst.msk [vmem:[%s2489 + $0x89] sm:$0x1] %vm2490, 0.0
      %2513 = vst.msk [vmem:[%s2489 + $0xa1] sm:$0x1] %vm2490, 0.0
      %2514 = vst.msk [vmem:[%s2489 + $0xb9] sm:$0x1] %vm2490, 0.0
      %2515 = vst.msk [vmem:[%s2489 + $0xd1] sm:$0x1] %vm2490, 0.0
      %2516 = vst.msk [vmem:[%s2489 + $0xe9] sm:$0x1] %vm2490, 0.0
      %2517 = vst.msk [vmem:[%s2489 + $0x101] sm:$0x1] %vm2490, 0.0
      %2518 = vst.msk [vmem:[%s2489 + $0x119] sm:$0x1] %vm2490, 0.0
      %2519 = vst.msk [vmem:[%s2489 + $0x131] sm:$0x1] %vm2490, 0.0
      %2520 = vst.msk [vmem:[%s2489 + $0x149] sm:$0x1] %vm2490, 0.0
      %2521 = vst.msk [vmem:[%s2489 + $0x161] sm:$0x1] %vm2490, 0.0
      %2522 = vst.msk [vmem:[%s2489 + $0x179] sm:$0x1] %vm2490, 0.0
      %2523 = vst.msk [vmem:[%s2489 + $0x1] sm:$0xff] %vm803, %v2449
      %2524 = vst.msk [vmem:[%s2489 + $0x9] sm:$0xff] %vm803, %v2450
      %2525 = vst.msk [vmem:[%s2489 + $0x19] sm:$0xff] %vm803, %v2451
      %2526 = vst.msk [vmem:[%s2489 + $0x21] sm:$0xff] %vm803, %v2452
      %2527 = vst.msk [vmem:[%s2489 + $0x31] sm:$0xff] %vm803, %v2453
      %2528 = vst.msk [vmem:[%s2489 + $0x39] sm:$0xff] %vm803, %v2454
      %2529 = vst.msk [vmem:[%s2489 + $0x49] sm:$0xff] %vm803, %v2455
      %2530 = vst.msk [vmem:[%s2489 + $0x51] sm:$0xff] %vm803, %v2456
      %2531 = vst.msk [vmem:[%s2489 + $0x61] sm:$0xff] %vm803, %v2457
      %2532 = vst.msk [vmem:[%s2489 + $0x69] sm:$0xff] %vm803, %v2458
      %2533 = vst.msk [vmem:[%s2489 + $0x79] sm:$0xff] %vm803, %v2459
      %2534 = vst.msk [vmem:[%s2489 + $0x81] sm:$0xff] %vm803, %v2460
      %2535 = vst.msk [vmem:[%s2489 + $0x91] sm:$0xff] %vm803, %v2461
      %2536 = vst.msk [vmem:[%s2489 + $0x99] sm:$0xff] %vm803, %v2462
      %2537 = vst.msk [vmem:[%s2489 + $0xa9] sm:$0xff] %vm803, %v2463
      %2538 = vst.msk [vmem:[%s2489 + $0xb1] sm:$0xff] %vm803, %v2464
      %2539 = vst.msk [vmem:[%s2489 + $0xc1] sm:$0xff] %vm803, %v2465
      %2540 = vst.msk [vmem:[%s2489 + $0xc9] sm:$0xff] %vm803, %v2466
      %2541 = vst.msk [vmem:[%s2489 + $0xd9] sm:$0xff] %vm803, %v2467
      %2542 = vst.msk [vmem:[%s2489 + $0xe1] sm:$0xff] %vm803, %v2468
      %2543 = vst.msk [vmem:[%s2489 + $0xf1] sm:$0xff] %vm803, %v2469
      %2544 = vst.msk [vmem:[%s2489 + $0xf9] sm:$0xff] %vm803, %v2470
      %2545 = vst.msk [vmem:[%s2489 + $0x109] sm:$0xff] %vm803, %v2471
      %2546 = vst.msk [vmem:[%s2489 + $0x111] sm:$0xff] %vm803, %v2472
      %2547 = vst.msk [vmem:[%s2489 + $0x121] sm:$0xff] %vm803, %v2473
      %2548 = vst.msk [vmem:[%s2489 + $0x129] sm:$0xff] %vm803, %v2474
      %2549 = vst.msk [vmem:[%s2489 + $0x139] sm:$0xff] %vm803, %v2475
      %2550 = vst.msk [vmem:[%s2489 + $0x141] sm:$0xff] %vm803, %v2476
      %2551 = vst.msk [vmem:[%s2489 + $0x151] sm:$0xff] %vm803, %v2477
      %2552 = vst.msk [vmem:[%s2489 + $0x159] sm:$0xff] %vm803, %v2478
      %2553 = vst.msk [vmem:[%s2489 + $0x169] sm:$0xff] %vm803, %v2479
      %2554 = vst.msk [vmem:[%s2489 + $0x171] sm:$0xff] %vm803, %v2480
      %v2555 = vld [vmem:[#allocation3] sm:$0xff]
      %v2556 = vld [vmem:[#allocation3 + $0x8] sm:$0xff]
      %v2557 = vld [vmem:[#allocation3 + $0x18] sm:$0xff]
      %v2558 = vld [vmem:[#allocation3 + $0x20] sm:$0xff]
      %v2559 = vld [vmem:[#allocation3 + $0x30] sm:$0xff]
      %v2560 = vld [vmem:[#allocation3 + $0x38] sm:$0xff]
      %v2561 = vld [vmem:[#allocation3 + $0x48] sm:$0xff]
      %v2562 = vld [vmem:[#allocation3 + $0x50] sm:$0xff]
      %v2563 = vld [vmem:[#allocation3 + $0x60] sm:$0xff]
      %v2564 = vld [vmem:[#allocation3 + $0x68] sm:$0xff]
      %v2565 = vld [vmem:[#allocation3 + $0x78] sm:$0xff]
      %v2566 = vld [vmem:[#allocation3 + $0x80] sm:$0xff]
      %v2567 = vld [vmem:[#allocation3 + $0x90] sm:$0xff]
      %v2568 = vld [vmem:[#allocation3 + $0x98] sm:$0xff]
      %v2569 = vld [vmem:[#allocation3 + $0xa8] sm:$0xff]
      %v2570 = vld [vmem:[#allocation3 + $0xb0] sm:$0xff]
      %v2571 = vld [vmem:[#allocation3 + $0xc0] sm:$0xff]
      %v2572 = vld [vmem:[#allocation3 + $0xc8] sm:$0xff]
      %v2573 = vld [vmem:[#allocation3 + $0xd8] sm:$0xff]
      %v2574 = vld [vmem:[#allocation3 + $0xe0] sm:$0xff]
      %v2575 = vld [vmem:[#allocation3 + $0xf0] sm:$0xff]
      %v2576 = vld [vmem:[#allocation3 + $0xf8] sm:$0xff]
      %v2577 = vld [vmem:[#allocation3 + $0x108] sm:$0xff]
      %v2578 = vld [vmem:[#allocation3 + $0x110] sm:$0xff]
      %v2579 = vld [vmem:[#allocation3 + $0x120] sm:$0xff]
      %v2580 = vld [vmem:[#allocation3 + $0x128] sm:$0xff]
      %v2581 = vld [vmem:[#allocation3 + $0x138] sm:$0xff]
      %v2582 = vld [vmem:[#allocation3 + $0x140] sm:$0xff]
      %v2583 = vld [vmem:[#allocation3 + $0x150] sm:$0xff]
      %v2584 = vld [vmem:[#allocation3 + $0x158] sm:$0xff]
      %v2585 = vld [vmem:[#allocation3 + $0x168] sm:$0xff]
      %v2586 = vld [vmem:[#allocation3 + $0x170] sm:$0xff]
      %v2587 = vld [vmem:[#allocation3 + $0x1] sm:$0xff]
      %v2588 = vld [vmem:[#allocation3 + $0x9] sm:$0xff]
      %v2589 = vld [vmem:[#allocation3 + $0x19] sm:$0xff]
      %v2590 = vld [vmem:[#allocation3 + $0x21] sm:$0xff]
      %v2591 = vld [vmem:[#allocation3 + $0x31] sm:$0xff]
      %v2592 = vld [vmem:[#allocation3 + $0x39] sm:$0xff]
      %v2593 = vld [vmem:[#allocation3 + $0x49] sm:$0xff]
      %v2594 = vld [vmem:[#allocation3 + $0x51] sm:$0xff]
      %v2595 = vld [vmem:[#allocation3 + $0x61] sm:$0xff]
      %v2596 = vld [vmem:[#allocation3 + $0x69] sm:$0xff]
      %v2597 = vld [vmem:[#allocation3 + $0x79] sm:$0xff]
      %v2598 = vld [vmem:[#allocation3 + $0x81] sm:$0xff]
      %v2599 = vld [vmem:[#allocation3 + $0x91] sm:$0xff]
      %v2600 = vld [vmem:[#allocation3 + $0x99] sm:$0xff]
      %v2601 = vld [vmem:[#allocation3 + $0xa9] sm:$0xff]
      %v2602 = vld [vmem:[#allocation3 + $0xb1] sm:$0xff]
      %v2603 = vld [vmem:[#allocation3 + $0xc1] sm:$0xff]
      %v2604 = vld [vmem:[#allocation3 + $0xc9] sm:$0xff]
      %v2605 = vld [vmem:[#allocation3 + $0xd9] sm:$0xff]
      %v2606 = vld [vmem:[#allocation3 + $0xe1] sm:$0xff]
      %v2607 = vld [vmem:[#allocation3 + $0xf1] sm:$0xff]
      %v2608 = vld [vmem:[#allocation3 + $0xf9] sm:$0xff]
      %v2609 = vld [vmem:[#allocation3 + $0x109] sm:$0xff]
      %v2610 = vld [vmem:[#allocation3 + $0x111] sm:$0xff]
      %v2611 = vld [vmem:[#allocation3 + $0x121] sm:$0xff]
      %v2612 = vld [vmem:[#allocation3 + $0x129] sm:$0xff]
      %v2613 = vld [vmem:[#allocation3 + $0x139] sm:$0xff]
      %v2614 = vld [vmem:[#allocation3 + $0x141] sm:$0xff]
      %v2615 = vld [vmem:[#allocation3 + $0x151] sm:$0xff]
      %v2616 = vld [vmem:[#allocation3 + $0x159] sm:$0xff]
      %v2617 = vld [vmem:[#allocation3 + $0x169] sm:$0xff]
      %v2618 = vld [vmem:[#allocation3 + $0x171] sm:$0xff]
      %v2619 = vld [vmem:[#allocation3 + $0x2] sm:$0xff]
      %v2620 = vld [vmem:[#allocation3 + $0xa] sm:$0xff]
      %v2621 = vld [vmem:[#allocation3 + $0x1a] sm:$0xff]
      %v2622 = vld [vmem:[#allocation3 + $0x22] sm:$0xff]
      %v2623 = vld [vmem:[#allocation3 + $0x32] sm:$0xff]
      %v2624 = vld [vmem:[#allocation3 + $0x3a] sm:$0xff]
      %v2625 = vld [vmem:[#allocation3 + $0x4a] sm:$0xff]
      %v2626 = vld [vmem:[#allocation3 + $0x52] sm:$0xff]
      %v2627 = vld [vmem:[#allocation3 + $0x62] sm:$0xff]
      %v2628 = vld [vmem:[#allocation3 + $0x6a] sm:$0xff]
      %v2629 = vld [vmem:[#allocation3 + $0x7a] sm:$0xff]
      %v2630 = vld [vmem:[#allocation3 + $0x82] sm:$0xff]
      %v2631 = vld [vmem:[#allocation3 + $0x92] sm:$0xff]
      %v2632 = vld [vmem:[#allocation3 + $0x9a] sm:$0xff]
      %v2633 = vld [vmem:[#allocation3 + $0xaa] sm:$0xff]
      %v2634 = vld [vmem:[#allocation3 + $0xb2] sm:$0xff]
      %v2635 = vld [vmem:[#allocation3 + $0xc2] sm:$0xff]
      %v2636 = vld [vmem:[#allocation3 + $0xca] sm:$0xff]
      %v2637 = vld [vmem:[#allocation3 + $0xda] sm:$0xff]
      %v2638 = vld [vmem:[#allocation3 + $0xe2] sm:$0xff]
      %v2639 = vld [vmem:[#allocation3 + $0xf2] sm:$0xff]
      %v2640 = vld [vmem:[#allocation3 + $0xfa] sm:$0xff]
      %v2641 = vld [vmem:[#allocation3 + $0x10a] sm:$0xff]
      %v2642 = vld [vmem:[#allocation3 + $0x112] sm:$0xff]
      %v2643 = vld [vmem:[#allocation3 + $0x122] sm:$0xff]
      %v2644 = vld [vmem:[#allocation3 + $0x12a] sm:$0xff]
      %v2645 = vld [vmem:[#allocation3 + $0x13a] sm:$0xff]
      %v2646 = vld [vmem:[#allocation3 + $0x142] sm:$0xff]
      %v2647 = vld [vmem:[#allocation3 + $0x152] sm:$0xff]
      %v2648 = vld [vmem:[#allocation3 + $0x15a] sm:$0xff]
      %v2649 = vld [vmem:[#allocation3 + $0x16a] sm:$0xff]
      %v2650 = vld [vmem:[#allocation3 + $0x172] sm:$0xff]
      %2683 = vrot.lane.b32.xlu0 %v2587, 8
      %v2684 = vpop.permute.xlu0 %2683
      %2685 = vrot.lane.b32.xlu0 %v2588, 8
      %v2686 = vpop.permute.xlu0 %2685
      %2687 = vrot.lane.b32.xlu0 %v2589, 8
      %v2688 = vpop.permute.xlu0 %2687
      %2689 = vrot.lane.b32.xlu0 %v2590, 8
      %v2690 = vpop.permute.xlu0 %2689
      %2691 = vrot.lane.b32.xlu0 %v2591, 8
      %v2692 = vpop.permute.xlu0 %2691
      %2693 = vrot.lane.b32.xlu0 %v2592, 8
      %v2694 = vpop.permute.xlu0 %2693
      %2695 = vrot.lane.b32.xlu0 %v2593, 8
      %v2696 = vpop.permute.xlu0 %2695
      %2697 = vrot.lane.b32.xlu0 %v2594, 8
      %v2698 = vpop.permute.xlu0 %2697
      %2699 = vrot.lane.b32.xlu0 %v2595, 8
      %v2700 = vpop.permute.xlu0 %2699
      %2701 = vrot.lane.b32.xlu0 %v2596, 8
      %v2702 = vpop.permute.xlu0 %2701
      %2703 = vrot.lane.b32.xlu0 %v2597, 8
      %v2704 = vpop.permute.xlu0 %2703
      %2705 = vrot.lane.b32.xlu0 %v2598, 8
      %v2706 = vpop.permute.xlu0 %2705
      %2707 = vrot.lane.b32.xlu0 %v2599, 8
      %v2708 = vpop.permute.xlu0 %2707
      %2709 = vrot.lane.b32.xlu0 %v2600, 8
      %v2710 = vpop.permute.xlu0 %2709
      %2711 = vrot.lane.b32.xlu0 %v2601, 8
      %v2712 = vpop.permute.xlu0 %2711
      %2713 = vrot.lane.b32.xlu0 %v2602, 8
      %v2714 = vpop.permute.xlu0 %2713
      %2715 = vrot.lane.b32.xlu0 %v2603, 8
      %v2716 = vpop.permute.xlu0 %2715
      %2717 = vrot.lane.b32.xlu0 %v2604, 8
      %v2718 = vpop.permute.xlu0 %2717
      %2719 = vrot.lane.b32.xlu0 %v2605, 8
      %v2720 = vpop.permute.xlu0 %2719
      %2721 = vrot.lane.b32.xlu0 %v2606, 8
      %v2722 = vpop.permute.xlu0 %2721
      %2723 = vrot.lane.b32.xlu0 %v2607, 8
      %v2724 = vpop.permute.xlu0 %2723
      %2725 = vrot.lane.b32.xlu0 %v2608, 8
      %v2726 = vpop.permute.xlu0 %2725
      %2727 = vrot.lane.b32.xlu0 %v2609, 8
      %v2728 = vpop.permute.xlu0 %2727
      %2729 = vrot.lane.b32.xlu0 %v2610, 8
      %v2730 = vpop.permute.xlu0 %2729
      %2731 = vrot.lane.b32.xlu0 %v2611, 8
      %v2732 = vpop.permute.xlu0 %2731
      %2733 = vrot.lane.b32.xlu0 %v2612, 8
      %v2734 = vpop.permute.xlu0 %2733
      %2735 = vrot.lane.b32.xlu0 %v2613, 8
      %v2736 = vpop.permute.xlu0 %2735
      %2737 = vrot.lane.b32.xlu0 %v2614, 8
      %v2738 = vpop.permute.xlu0 %2737
      %2739 = vrot.lane.b32.xlu0 %v2615, 8
      %v2740 = vpop.permute.xlu0 %2739
      %2741 = vrot.lane.b32.xlu0 %v2616, 8
      %v2742 = vpop.permute.xlu0 %2741
      %2743 = vrot.lane.b32.xlu0 %v2617, 8
      %v2744 = vpop.permute.xlu0 %2743
      %2745 = vrot.lane.b32.xlu0 %v2618, 8
      %v2746 = vpop.permute.xlu0 %2745
      %2811 = vrot.lane.b32.xlu0 %v2619, 16
      %v2812 = vpop.permute.xlu0 %2811
      %2813 = vrot.lane.b32.xlu0 %v2620, 16
      %v2814 = vpop.permute.xlu0 %2813
      %2815 = vrot.lane.b32.xlu0 %v2621, 16
      %v2816 = vpop.permute.xlu0 %2815
      %2817 = vrot.lane.b32.xlu0 %v2622, 16
      %v2818 = vpop.permute.xlu0 %2817
      %2819 = vrot.lane.b32.xlu0 %v2623, 16
      %v2820 = vpop.permute.xlu0 %2819
      %2821 = vrot.lane.b32.xlu0 %v2624, 16
      %v2822 = vpop.permute.xlu0 %2821
      %2823 = vrot.lane.b32.xlu0 %v2625, 16
      %v2824 = vpop.permute.xlu0 %2823
      %2825 = vrot.lane.b32.xlu0 %v2626, 16
      %v2826 = vpop.permute.xlu0 %2825
      %2827 = vrot.lane.b32.xlu0 %v2627, 16
      %v2828 = vpop.permute.xlu0 %2827
      %2829 = vrot.lane.b32.xlu0 %v2628, 16
      %v2830 = vpop.permute.xlu0 %2829
      %2831 = vrot.lane.b32.xlu0 %v2629, 16
      %v2832 = vpop.permute.xlu0 %2831
      %2833 = vrot.lane.b32.xlu0 %v2630, 16
      %v2834 = vpop.permute.xlu0 %2833
      %2835 = vrot.lane.b32.xlu0 %v2631, 16
      %v2836 = vpop.permute.xlu0 %2835
      %2837 = vrot.lane.b32.xlu0 %v2632, 16
      %v2838 = vpop.permute.xlu0 %2837
      %2839 = vrot.lane.b32.xlu0 %v2633, 16
      %v2840 = vpop.permute.xlu0 %2839
      %2841 = vrot.lane.b32.xlu0 %v2634, 16
      %v2842 = vpop.permute.xlu0 %2841
      %2843 = vrot.lane.b32.xlu0 %v2635, 16
      %v2844 = vpop.permute.xlu0 %2843
      %2845 = vrot.lane.b32.xlu0 %v2636, 16
      %v2846 = vpop.permute.xlu0 %2845
      %2847 = vrot.lane.b32.xlu0 %v2637, 16
      %v2848 = vpop.permute.xlu0 %2847
      %2849 = vrot.lane.b32.xlu0 %v2638, 16
      %v2850 = vpop.permute.xlu0 %2849
      %2851 = vrot.lane.b32.xlu0 %v2639, 16
      %v2852 = vpop.permute.xlu0 %2851
      %2853 = vrot.lane.b32.xlu0 %v2640, 16
      %v2854 = vpop.permute.xlu0 %2853
      %2855 = vrot.lane.b32.xlu0 %v2641, 16
      %v2856 = vpop.permute.xlu0 %2855
      %2857 = vrot.lane.b32.xlu0 %v2642, 16
      %v2858 = vpop.permute.xlu0 %2857
      %2859 = vrot.lane.b32.xlu0 %v2643, 16
      %v2860 = vpop.permute.xlu0 %2859
      %2861 = vrot.lane.b32.xlu0 %v2644, 16
      %v2862 = vpop.permute.xlu0 %2861
      %2863 = vrot.lane.b32.xlu0 %v2645, 16
      %v2864 = vpop.permute.xlu0 %2863
      %2865 = vrot.lane.b32.xlu0 %v2646, 16
      %v2866 = vpop.permute.xlu0 %2865
      %2867 = vrot.lane.b32.xlu0 %v2647, 16
      %v2868 = vpop.permute.xlu0 %2867
      %2869 = vrot.lane.b32.xlu0 %v2648, 16
      %v2870 = vpop.permute.xlu0 %2869
      %2871 = vrot.lane.b32.xlu0 %v2649, 16
      %v2872 = vpop.permute.xlu0 %2871
      %2873 = vrot.lane.b32.xlu0 %v2650, 16
      %v2874 = vpop.permute.xlu0 %2873
      %v2907 = vsel %vm803, %v2555, %v2684
      %v2908 = vsel %vm803, %v2556, %v2686
      %v2909 = vsel %vm803, %v2557, %v2688
      %v2910 = vsel %vm803, %v2558, %v2690
      %v2911 = vsel %vm803, %v2559, %v2692
      %v2912 = vsel %vm803, %v2560, %v2694
      %v2913 = vsel %vm803, %v2561, %v2696
      %v2914 = vsel %vm803, %v2562, %v2698
      %v2915 = vsel %vm803, %v2563, %v2700
      %v2916 = vsel %vm803, %v2564, %v2702
      %v2917 = vsel %vm803, %v2565, %v2704
      %v2918 = vsel %vm803, %v2566, %v2706
      %v2919 = vsel %vm803, %v2567, %v2708
      %v2920 = vsel %vm803, %v2568, %v2710
      %v2921 = vsel %vm803, %v2569, %v2712
      %v2922 = vsel %vm803, %v2570, %v2714
      %v2923 = vsel %vm803, %v2571, %v2716
      %v2924 = vsel %vm803, %v2572, %v2718
      %v2925 = vsel %vm803, %v2573, %v2720
      %v2926 = vsel %vm803, %v2574, %v2722
      %v2927 = vsel %vm803, %v2575, %v2724
      %v2928 = vsel %vm803, %v2576, %v2726
      %v2929 = vsel %vm803, %v2577, %v2728
      %v2930 = vsel %vm803, %v2578, %v2730
      %v2931 = vsel %vm803, %v2579, %v2732
      %v2932 = vsel %vm803, %v2580, %v2734
      %v2933 = vsel %vm803, %v2581, %v2736
      %v2934 = vsel %vm803, %v2582, %v2738
      %v2935 = vsel %vm803, %v2583, %v2740
      %v2936 = vsel %vm803, %v2584, %v2742
      %v2937 = vsel %vm803, %v2585, %v2744
      %v2938 = vsel %vm803, %v2586, %v2746
      %vm2939 = vcmask 130048
      %v2940 = vsel %vm2939, %v2907, %v2812
      %v2941 = vsel %vm2939, %v2908, %v2814
      %v2942 = vsel %vm2939, %v2909, %v2816
      %v2943 = vsel %vm2939, %v2910, %v2818
      %v2944 = vsel %vm2939, %v2911, %v2820
      %v2945 = vsel %vm2939, %v2912, %v2822
      %v2946 = vsel %vm2939, %v2913, %v2824
      %v2947 = vsel %vm2939, %v2914, %v2826
      %v2948 = vsel %vm2939, %v2915, %v2828
      %v2949 = vsel %vm2939, %v2916, %v2830
      %v2950 = vsel %vm2939, %v2917, %v2832
      %v2951 = vsel %vm2939, %v2918, %v2834
      %v2952 = vsel %vm2939, %v2919, %v2836
      %v2953 = vsel %vm2939, %v2920, %v2838
      %v2954 = vsel %vm2939, %v2921, %v2840
      %v2955 = vsel %vm2939, %v2922, %v2842
      %v2956 = vsel %vm2939, %v2923, %v2844
      %v2957 = vsel %vm2939, %v2924, %v2846
      %v2958 = vsel %vm2939, %v2925, %v2848
      %v2959 = vsel %vm2939, %v2926, %v2850
      %v2960 = vsel %vm2939, %v2927, %v2852
      %v2961 = vsel %vm2939, %v2928, %v2854
      %v2962 = vsel %vm2939, %v2929, %v2856
      %v2963 = vsel %vm2939, %v2930, %v2858
      %v2964 = vsel %vm2939, %v2931, %v2860
      %v2965 = vsel %vm2939, %v2932, %v2862
      %v2966 = vsel %vm2939, %v2933, %v2864
      %v2967 = vsel %vm2939, %v2934, %v2866
      %v2968 = vsel %vm2939, %v2935, %v2868
      %v2969 = vsel %vm2939, %v2936, %v2870
      %v2970 = vsel %vm2939, %v2937, %v2872
      %v2971 = vsel %vm2939, %v2938, %v2874
      %v2972 = vpack.c.bf16 %v2941, %v2940
      %v2973 = vpack.c.bf16 %v2943, %v2942
      %v2974 = vpack.c.bf16 %v2945, %v2944
      %v2975 = vpack.c.bf16 %v2947, %v2946
      %v2976 = vpack.c.bf16 %v2949, %v2948
      %v2977 = vpack.c.bf16 %v2951, %v2950
      %v2978 = vpack.c.bf16 %v2953, %v2952
      %v2979 = vpack.c.bf16 %v2955, %v2954
      %v2980 = vpack.c.bf16 %v2957, %v2956
      %v2981 = vpack.c.bf16 %v2959, %v2958
      %v2982 = vpack.c.bf16 %v2961, %v2960
      %v2983 = vpack.c.bf16 %v2963, %v2962
      %v2984 = vpack.c.bf16 %v2965, %v2964
      %v2985 = vpack.c.bf16 %v2967, %v2966
      %v2986 = vpack.c.bf16 %v2969, %v2968
      %v2987 = vpack.c.bf16 %v2971, %v2970
      %v2988 = vld [vmem:[%s3] sm:$0xf]
      %v2989 = vld [vmem:[%s3 + $0x4] sm:$0xf]
      %v2990 = vld [vmem:[%s3 + $0x8] sm:$0xf]
      %v2991 = vld [vmem:[%s2489] sm:$0xff]
      %v2992 = vld [vmem:[%s2489 + $0x8] sm:$0xff]
      %v2993 = vld [vmem:[%s2489 + $0x18] sm:$0xff]
      %v2994 = vld [vmem:[%s2489 + $0x20] sm:$0xff]
      %v2995 = vld [vmem:[%s2489 + $0x30] sm:$0xff]
      %v2996 = vld [vmem:[%s2489 + $0x38] sm:$0xff]
      %v2997 = vld [vmem:[%s2489 + $0x48] sm:$0xff]
      %v2998 = vld [vmem:[%s2489 + $0x50] sm:$0xff]
      %v2999 = vld [vmem:[%s2489 + $0x60] sm:$0xff]
      %v3000 = vld [vmem:[%s2489 + $0x68] sm:$0xff]
      %v3001 = vld [vmem:[%s2489 + $0x78] sm:$0xff]
      %v3002 = vld [vmem:[%s2489 + $0x80] sm:$0xff]
      %v3003 = vld [vmem:[%s2489 + $0x90] sm:$0xff]
      %v3004 = vld [vmem:[%s2489 + $0x98] sm:$0xff]
      %v3005 = vld [vmem:[%s2489 + $0xa8] sm:$0xff]
      %v3006 = vld [vmem:[%s2489 + $0xb0] sm:$0xff]
      %v3007 = vld [vmem:[%s2489 + $0xc0] sm:$0xff]
      %v3008 = vld [vmem:[%s2489 + $0xc8] sm:$0xff]
      %v3009 = vld [vmem:[%s2489 + $0xd8] sm:$0xff]
      %v3010 = vld [vmem:[%s2489 + $0xe0] sm:$0xff]
      %v3011 = vld [vmem:[%s2489 + $0xf0] sm:$0xff]
      %v3012 = vld [vmem:[%s2489 + $0xf8] sm:$0xff]
      %v3013 = vld [vmem:[%s2489 + $0x108] sm:$0xff]
      %v3014 = vld [vmem:[%s2489 + $0x110] sm:$0xff]
      %v3015 = vld [vmem:[%s2489 + $0x120] sm:$0xff]
      %v3016 = vld [vmem:[%s2489 + $0x128] sm:$0xff]
      %v3017 = vld [vmem:[%s2489 + $0x138] sm:$0xff]
      %v3018 = vld [vmem:[%s2489 + $0x140] sm:$0xff]
      %v3019 = vld [vmem:[%s2489 + $0x150] sm:$0xff]
      %v3020 = vld [vmem:[%s2489 + $0x158] sm:$0xff]
      %v3021 = vld [vmem:[%s2489 + $0x168] sm:$0xff]
      %v3022 = vld [vmem:[%s2489 + $0x170] sm:$0xff]
      %v3023 = vld [vmem:[%s2489 + $0x1] sm:$0xff]
      %v3024 = vld [vmem:[%s2489 + $0x9] sm:$0xff]
      %v3025 = vld [vmem:[%s2489 + $0x19] sm:$0xff]
      %v3026 = vld [vmem:[%s2489 + $0x21] sm:$0xff]
      %v3027 = vld [vmem:[%s2489 + $0x31] sm:$0xff]
      %v3028 = vld [vmem:[%s2489 + $0x39] sm:$0xff]
      %v3029 = vld [vmem:[%s2489 + $0x49] sm:$0xff]
      %v3030 = vld [vmem:[%s2489 + $0x51] sm:$0xff]
      %v3031 = vld [vmem:[%s2489 + $0x61] sm:$0xff]
      %v3032 = vld [vmem:[%s2489 + $0x69] sm:$0xff]
      %v3033 = vld [vmem:[%s2489 + $0x79] sm:$0xff]
      %v3034 = vld [vmem:[%s2489 + $0x81] sm:$0xff]
      %v3035 = vld [vmem:[%s2489 + $0x91] sm:$0xff]
      %v3036 = vld [vmem:[%s2489 + $0x99] sm:$0xff]
      %v3037 = vld [vmem:[%s2489 + $0xa9] sm:$0xff]
      %v3038 = vld [vmem:[%s2489 + $0xb1] sm:$0xff]
      %v3039 = vld [vmem:[%s2489 + $0xc1] sm:$0xff]
      %v3040 = vld [vmem:[%s2489 + $0xc9] sm:$0xff]
      %v3041 = vld [vmem:[%s2489 + $0xd9] sm:$0xff]
      %v3042 = vld [vmem:[%s2489 + $0xe1] sm:$0xff]
      %v3043 = vld [vmem:[%s2489 + $0xf1] sm:$0xff]
      %v3044 = vld [vmem:[%s2489 + $0xf9] sm:$0xff]
      %v3045 = vld [vmem:[%s2489 + $0x109] sm:$0xff]
      %v3046 = vld [vmem:[%s2489 + $0x111] sm:$0xff]
      %v3047 = vld [vmem:[%s2489 + $0x121] sm:$0xff]
      %v3048 = vld [vmem:[%s2489 + $0x129] sm:$0xff]
      %v3049 = vld [vmem:[%s2489 + $0x139] sm:$0xff]
      %v3050 = vld [vmem:[%s2489 + $0x141] sm:$0xff]
      %v3051 = vld [vmem:[%s2489 + $0x151] sm:$0xff]
      %v3052 = vld [vmem:[%s2489 + $0x159] sm:$0xff]
      %v3053 = vld [vmem:[%s2489 + $0x169] sm:$0xff]
      %v3054 = vld [vmem:[%s2489 + $0x171] sm:$0xff]
      %v3055 = vld [vmem:[%s2489 + $0x2] sm:$0xff]
      %v3056 = vld [vmem:[%s2489 + $0xa] sm:$0xff]
      %v3057 = vld [vmem:[%s2489 + $0x1a] sm:$0xff]
      %v3058 = vld [vmem:[%s2489 + $0x22] sm:$0xff]
      %v3059 = vld [vmem:[%s2489 + $0x32] sm:$0xff]
      %v3060 = vld [vmem:[%s2489 + $0x3a] sm:$0xff]
      %v3061 = vld [vmem:[%s2489 + $0x4a] sm:$0xff]
      %v3062 = vld [vmem:[%s2489 + $0x52] sm:$0xff]
      %v3063 = vld [vmem:[%s2489 + $0x62] sm:$0xff]
      %v3064 = vld [vmem:[%s2489 + $0x6a] sm:$0xff]
      %v3065 = vld [vmem:[%s2489 + $0x7a] sm:$0xff]
      %v3066 = vld [vmem:[%s2489 + $0x82] sm:$0xff]
      %v3067 = vld [vmem:[%s2489 + $0x92] sm:$0xff]
      %v3068 = vld [vmem:[%s2489 + $0x9a] sm:$0xff]
      %v3069 = vld [vmem:[%s2489 + $0xaa] sm:$0xff]
      %v3070 = vld [vmem:[%s2489 + $0xb2] sm:$0xff]
      %v3071 = vld [vmem:[%s2489 + $0xc2] sm:$0xff]
      %v3072 = vld [vmem:[%s2489 + $0xca] sm:$0xff]
      %v3073 = vld [vmem:[%s2489 + $0xda] sm:$0xff]
      %v3074 = vld [vmem:[%s2489 + $0xe2] sm:$0xff]
      %v3075 = vld [vmem:[%s2489 + $0xf2] sm:$0xff]
      %v3076 = vld [vmem:[%s2489 + $0xfa] sm:$0xff]
      %v3077 = vld [vmem:[%s2489 + $0x10a] sm:$0xff]
      %v3078 = vld [vmem:[%s2489 + $0x112] sm:$0xff]
      %v3079 = vld [vmem:[%s2489 + $0x122] sm:$0xff]
      %v3080 = vld [vmem:[%s2489 + $0x12a] sm:$0xff]
      %v3081 = vld [vmem:[%s2489 + $0x13a] sm:$0xff]
      %v3082 = vld [vmem:[%s2489 + $0x142] sm:$0xff]
      %v3083 = vld [vmem:[%s2489 + $0x152] sm:$0xff]
      %v3084 = vld [vmem:[%s2489 + $0x15a] sm:$0xff]
      %v3085 = vld [vmem:[%s2489 + $0x16a] sm:$0xff]
      %v3086 = vld [vmem:[%s2489 + $0x172] sm:$0xff]
      %3119 = vrot.lane.b32.xlu0 %v3023, 8
      %v3120 = vpop.permute.xlu0 %3119
      %3121 = vrot.lane.b32.xlu0 %v3024, 8
      %v3122 = vpop.permute.xlu0 %3121
      %3123 = vrot.lane.b32.xlu0 %v3025, 8
      %v3124 = vpop.permute.xlu0 %3123
      %3125 = vrot.lane.b32.xlu0 %v3026, 8
      %v3126 = vpop.permute.xlu0 %3125
      %3127 = vrot.lane.b32.xlu0 %v3027, 8
      %v3128 = vpop.permute.xlu0 %3127
      %3129 = vrot.lane.b32.xlu0 %v3028, 8
      %v3130 = vpop.permute.xlu0 %3129
      %3131 = vrot.lane.b32.xlu0 %v3029, 8
      %v3132 = vpop.permute.xlu0 %3131
      %3133 = vrot.lane.b32.xlu0 %v3030, 8
      %v3134 = vpop.permute.xlu0 %3133
      %3135 = vrot.lane.b32.xlu0 %v3031, 8
      %v3136 = vpop.permute.xlu0 %3135
      %3137 = vrot.lane.b32.xlu0 %v3032, 8
      %v3138 = vpop.permute.xlu0 %3137
      %3139 = vrot.lane.b32.xlu0 %v3033, 8
      %v3140 = vpop.permute.xlu0 %3139
      %3141 = vrot.lane.b32.xlu0 %v3034, 8
      %v3142 = vpop.permute.xlu0 %3141
      %3143 = vrot.lane.b32.xlu0 %v3035, 8
      %v3144 = vpop.permute.xlu0 %3143
      %3145 = vrot.lane.b32.xlu0 %v3036, 8
      %v3146 = vpop.permute.xlu0 %3145
      %3147 = vrot.lane.b32.xlu0 %v3037, 8
      %v3148 = vpop.permute.xlu0 %3147
      %3149 = vrot.lane.b32.xlu0 %v3038, 8
      %v3150 = vpop.permute.xlu0 %3149
      %3151 = vrot.lane.b32.xlu0 %v3039, 8
      %v3152 = vpop.permute.xlu0 %3151
      %3153 = vrot.lane.b32.xlu0 %v3040, 8
      %v3154 = vpop.permute.xlu0 %3153
      %3155 = vrot.lane.b32.xlu0 %v3041, 8
      %v3156 = vpop.permute.xlu0 %3155
      %3157 = vrot.lane.b32.xlu0 %v3042, 8
      %v3158 = vpop.permute.xlu0 %3157
      %3159 = vrot.lane.b32.xlu0 %v3043, 8
      %v3160 = vpop.permute.xlu0 %3159
      %3161 = vrot.lane.b32.xlu0 %v3044, 8
      %v3162 = vpop.permute.xlu0 %3161
      %3163 = vrot.lane.b32.xlu0 %v3045, 8
      %v3164 = vpop.permute.xlu0 %3163
      %3165 = vrot.lane.b32.xlu0 %v3046, 8
      %v3166 = vpop.permute.xlu0 %3165
      %3167 = vrot.lane.b32.xlu0 %v3047, 8
      %v3168 = vpop.permute.xlu0 %3167
      %3169 = vrot.lane.b32.xlu0 %v3048, 8
      %v3170 = vpop.permute.xlu0 %3169
      %3171 = vrot.lane.b32.xlu0 %v3049, 8
      %v3172 = vpop.permute.xlu0 %3171
      %3173 = vrot.lane.b32.xlu0 %v3050, 8
      %v3174 = vpop.permute.xlu0 %3173
      %3175 = vrot.lane.b32.xlu0 %v3051, 8
      %v3176 = vpop.permute.xlu0 %3175
      %3177 = vrot.lane.b32.xlu0 %v3052, 8
      %v3178 = vpop.permute.xlu0 %3177
      %3179 = vrot.lane.b32.xlu0 %v3053, 8
      %v3180 = vpop.permute.xlu0 %3179
      %3181 = vrot.lane.b32.xlu0 %v3054, 8
      %v3182 = vpop.permute.xlu0 %3181
      %3247 = vrot.lane.b32.xlu0 %v3055, 16
      %v3248 = vpop.permute.xlu0 %3247
      %3249 = vrot.lane.b32.xlu0 %v3056, 16
      %v3250 = vpop.permute.xlu0 %3249
      %3251 = vrot.lane.b32.xlu0 %v3057, 16
      %v3252 = vpop.permute.xlu0 %3251
      %3253 = vrot.lane.b32.xlu0 %v3058, 16
      %v3254 = vpop.permute.xlu0 %3253
      %3255 = vrot.lane.b32.xlu0 %v3059, 16
      %v3256 = vpop.permute.xlu0 %3255
      %3257 = vrot.lane.b32.xlu0 %v3060, 16
      %v3258 = vpop.permute.xlu0 %3257
      %3259 = vrot.lane.b32.xlu0 %v3061, 16
      %v3260 = vpop.permute.xlu0 %3259
      %3261 = vrot.lane.b32.xlu0 %v3062, 16
      %v3262 = vpop.permute.xlu0 %3261
      %3263 = vrot.lane.b32.xlu0 %v3063, 16
      %v3264 = vpop.permute.xlu0 %3263
      %3265 = vrot.lane.b32.xlu0 %v3064, 16
      %v3266 = vpop.permute.xlu0 %3265
      %3267 = vrot.lane.b32.xlu0 %v3065, 16
      %v3268 = vpop.permute.xlu0 %3267
      %3269 = vrot.lane.b32.xlu0 %v3066, 16
      %v3270 = vpop.permute.xlu0 %3269
      %3271 = vrot.lane.b32.xlu0 %v3067, 16
      %v3272 = vpop.permute.xlu0 %3271
      %3273 = vrot.lane.b32.xlu0 %v3068, 16
      %v3274 = vpop.permute.xlu0 %3273
      %3275 = vrot.lane.b32.xlu0 %v3069, 16
      %v3276 = vpop.permute.xlu0 %3275
      %3277 = vrot.lane.b32.xlu0 %v3070, 16
      %v3278 = vpop.permute.xlu0 %3277
      %3279 = vrot.lane.b32.xlu0 %v3071, 16
      %v3280 = vpop.permute.xlu0 %3279
      %3281 = vrot.lane.b32.xlu0 %v3072, 16
      %v3282 = vpop.permute.xlu0 %3281
      %3283 = vrot.lane.b32.xlu0 %v3073, 16
      %v3284 = vpop.permute.xlu0 %3283
      %3285 = vrot.lane.b32.xlu0 %v3074, 16
      %v3286 = vpop.permute.xlu0 %3285
      %3287 = vrot.lane.b32.xlu0 %v3075, 16
      %v3288 = vpop.permute.xlu0 %3287
      %3289 = vrot.lane.b32.xlu0 %v3076, 16
      %v3290 = vpop.permute.xlu0 %3289
      %3291 = vrot.lane.b32.xlu0 %v3077, 16
      %v3292 = vpop.permute.xlu0 %3291
      %3293 = vrot.lane.b32.xlu0 %v3078, 16
      %v3294 = vpop.permute.xlu0 %3293
      %3295 = vrot.lane.b32.xlu0 %v3079, 16
      %v3296 = vpop.permute.xlu0 %3295
      %3297 = vrot.lane.b32.xlu0 %v3080, 16
      %v3298 = vpop.permute.xlu0 %3297
      %3299 = vrot.lane.b32.xlu0 %v3081, 16
      %v3300 = vpop.permute.xlu0 %3299
      %3301 = vrot.lane.b32.xlu0 %v3082, 16
      %v3302 = vpop.permute.xlu0 %3301
      %3303 = vrot.lane.b32.xlu0 %v3083, 16
      %v3304 = vpop.permute.xlu0 %3303
      %3305 = vrot.lane.b32.xlu0 %v3084, 16
      %v3306 = vpop.permute.xlu0 %3305
      %3307 = vrot.lane.b32.xlu0 %v3085, 16
      %v3308 = vpop.permute.xlu0 %3307
      %3309 = vrot.lane.b32.xlu0 %v3086, 16
      %v3310 = vpop.permute.xlu0 %3309
      %v3343 = vsel %vm803, %v2991, %v3120
      %v3344 = vsel %vm803, %v2992, %v3122
      %v3345 = vsel %vm803, %v2993, %v3124
      %v3346 = vsel %vm803, %v2994, %v3126
      %v3347 = vsel %vm803, %v2995, %v3128
      %v3348 = vsel %vm803, %v2996, %v3130
      %v3349 = vsel %vm803, %v2997, %v3132
      %v3350 = vsel %vm803, %v2998, %v3134
      %v3351 = vsel %vm803, %v2999, %v3136
      %v3352 = vsel %vm803, %v3000, %v3138
      %v3353 = vsel %vm803, %v3001, %v3140
      %v3354 = vsel %vm803, %v3002, %v3142
      %v3355 = vsel %vm803, %v3003, %v3144
      %v3356 = vsel %vm803, %v3004, %v3146
      %v3357 = vsel %vm803, %v3005, %v3148
      %v3358 = vsel %vm803, %v3006, %v3150
      %v3359 = vsel %vm803, %v3007, %v3152
      %v3360 = vsel %vm803, %v3008, %v3154
      %v3361 = vsel %vm803, %v3009, %v3156
      %v3362 = vsel %vm803, %v3010, %v3158
      %v3363 = vsel %vm803, %v3011, %v3160
      %v3364 = vsel %vm803, %v3012, %v3162
      %v3365 = vsel %vm803, %v3013, %v3164
      %v3366 = vsel %vm803, %v3014, %v3166
      %v3367 = vsel %vm803, %v3015, %v3168
      %v3368 = vsel %vm803, %v3016, %v3170
      %v3369 = vsel %vm803, %v3017, %v3172
      %v3370 = vsel %vm803, %v3018, %v3174
      %v3371 = vsel %vm803, %v3019, %v3176
      %v3372 = vsel %vm803, %v3020, %v3178
      %v3373 = vsel %vm803, %v3021, %v3180
      %v3374 = vsel %vm803, %v3022, %v3182
      %v3375 = vsel %vm2939, %v3343, %v3248
      %v3376 = vsel %vm2939, %v3344, %v3250
      %v3377 = vsel %vm2939, %v3345, %v3252
      %v3378 = vsel %vm2939, %v3346, %v3254
      %v3379 = vsel %vm2939, %v3347, %v3256
      %v3380 = vsel %vm2939, %v3348, %v3258
      %v3381 = vsel %vm2939, %v3349, %v3260
      %v3382 = vsel %vm2939, %v3350, %v3262
      %v3383 = vsel %vm2939, %v3351, %v3264
      %v3384 = vsel %vm2939, %v3352, %v3266
      %v3385 = vsel %vm2939, %v3353, %v3268
      %v3386 = vsel %vm2939, %v3354, %v3270
      %v3387 = vsel %vm2939, %v3355, %v3272
      %v3388 = vsel %vm2939, %v3356, %v3274
      %v3389 = vsel %vm2939, %v3357, %v3276
      %v3390 = vsel %vm2939, %v3358, %v3278
      %v3391 = vsel %vm2939, %v3359, %v3280
      %v3392 = vsel %vm2939, %v3360, %v3282
      %v3393 = vsel %vm2939, %v3361, %v3284
      %v3394 = vsel %vm2939, %v3362, %v3286
      %v3395 = vsel %vm2939, %v3363, %v3288
      %v3396 = vsel %vm2939, %v3364, %v3290
      %v3397 = vsel %vm2939, %v3365, %v3292
      %v3398 = vsel %vm2939, %v3366, %v3294
      %v3399 = vsel %vm2939, %v3367, %v3296
      %v3400 = vsel %vm2939, %v3368, %v3298
      %v3401 = vsel %vm2939, %v3369, %v3300
      %v3402 = vsel %vm2939, %v3370, %v3302
      %v3403 = vsel %vm2939, %v3371, %v3304
      %v3404 = vsel %vm2939, %v3372, %v3306
      %v3405 = vsel %vm2939, %v3373, %v3308
      %v3406 = vsel %vm2939, %v3374, %v3310
      %v3407 = vpack.c.bf16 %v3376, %v3375
      %v3408 = vpack.c.bf16 %v3378, %v3377
      %v3409 = vpack.c.bf16 %v3380, %v3379
      %v3410 = vpack.c.bf16 %v3382, %v3381
      %v3411 = vpack.c.bf16 %v3384, %v3383
      %v3412 = vpack.c.bf16 %v3386, %v3385
      %v3413 = vpack.c.bf16 %v3388, %v3387
      %v3414 = vpack.c.bf16 %v3390, %v3389
      %v3415 = vpack.c.bf16 %v3392, %v3391
      %v3416 = vpack.c.bf16 %v3394, %v3393
      %v3417 = vpack.c.bf16 %v3396, %v3395
      %v3418 = vpack.c.bf16 %v3398, %v3397
      %v3419 = vpack.c.bf16 %v3400, %v3399
      %v3420 = vpack.c.bf16 %v3402, %v3401
      %v3421 = vpack.c.bf16 %v3404, %v3403
      %v3422 = vpack.c.bf16 %v3406, %v3405
      %s3423 = scalar_lea.vmem %s3, 12
      %v3424 = vld [vmem:[%s3423] sm:$0xf]
      %v3425 = vld [vmem:[%s3423 + $0x4] sm:$0xf]
      %v3426 = vld [vmem:[%s3423 + $0x8] sm:$0xf]
      %v3430 = vunpack.c.l.b16 %v3424
      %v3431 = vunpack.c.l.b16 %v3425
      %v3432 = vunpack.c.l.b16 %v3426
      %v3433 = vpack.c.b16 %v3431, %v3430
      %v3434 = vpack.c.b16 %v3432, %v3432
      %vm3436 = vcmask 195584
      %v3438 = vsel %vm3436, %v3407, 0
      %v3441 = vsel %vm3436, %v3408, 0
      %v3444 = vsel %vm3436, %v3409, 0
      %v3447 = vsel %vm3436, %v3410, 0
      %v3450 = vsel %vm3436, %v3411, 0
      %v3453 = vsel %vm3436, %v3412, 0
      %v3456 = vsel %vm3436, %v3413, 0
      %v3459 = vsel %vm3436, %v3414, 0
      %v3462 = vsel %vm3436, %v3415, 0
      %v3465 = vsel %vm3436, %v3416, 0
      %v3468 = vsel %vm3436, %v3417, 0
      %v3471 = vsel %vm3436, %v3418, 0
      %v3474 = vsel %vm3436, %v3419, 0
      %v3477 = vsel %vm3436, %v3420, 0
      %v3480 = vsel %vm3436, %v3421, 0
      %v3483 = vsel %vm3436, %v3422, 0
      %vm3485 = vcmask 1043456
      %v3487 = vsel %vm3485, %v3434, 0
      %3489 = vmatprep.subr.bf16.mxu0 0
      %3490 = vmatpush1.bf16.msra.mxu0 %v3433
      %3491 = vmatprep.subr.bf16.mxu0 0
      %3492 = vmatpush1.bf16.msra.mxu0 %v3487
      %3493 = vmatprep.subr.bf16.mxu0 0
      %3494 = vmatpush1.bf16.msra.mxu0 0
      %3495 = vmatprep.subr.bf16.mxu0 0
      %3496 = vmatpush1.bf16.msra.mxu0 0
      %3497 = vmatprep.subr.bf16.mxu0 0
      %3498 = vmatpush1.bf16.msra.mxu0 0
      %3499 = vmatprep.subr.bf16.mxu0 0
      %3500 = vmatpush1.bf16.msra.mxu0 0
      %3501 = vmatprep.subr.bf16.mxu0 0
      %3502 = vmatpush1.bf16.msra.mxu0 0
      %3503 = vmatprep.subr.bf16.mxu0 0
      %3504 = vmatpush1.bf16.msra.mxu0 0
      %3505 = vmatprep.subr.bf16.mxu0 0
      %3506 = vmatpush1.bf16.msra.mxu0 0
      %3507 = vmatprep.subr.bf16.mxu0 0
      %3508 = vmatpush1.bf16.msra.mxu0 0
      %3509 = vmatprep.subr.bf16.mxu0 0
      %3510 = vmatpush1.bf16.msra.mxu0 0
      %3511 = vmatprep.subr.bf16.mxu0 0
      %3512 = vmatpush1.bf16.msra.mxu0 0
      %3513 = vmatprep.subr.bf16.mxu0 0
      %3514 = vmatpush1.bf16.msra.mxu0 0
      %3515 = vmatprep.subr.bf16.mxu0 0
      %3516 = vmatpush1.bf16.msra.mxu0 0
      %3517 = vmatprep.subr.bf16.mxu0 0
      %3518 = vmatpush1.bf16.msra.mxu0 0
      %3519 = vmatprep.subr.bf16.mxu0 0
      %3520 = vmatpush1.bf16.msra.mxu0 0
      %3521 = vmatprep.mubr.bf16.mxu0 0
      %3522 = vmatmul.mubr.bf16.gmra.mrb[0].mxu0 %v3438
      %v3523 = vpop.f32.mrb[0].mxu0
      %v3524 = vadd.f32 0.0, %v3523
      %v3525 = vpop.f32.mrb[0].mxu0
      %v3526 = vpop.f32.mrb[0].mxu0
      %v3527 = vadd.f32 0.0, %v3526
      %v3528 = vpop.f32.mrb[0].mxu0
      %3529 = vmatprep.mubr.bf16.mxu0 0
      %3530 = vmatmul.mubr.bf16.gmra.mrb[0].mxu0 %v3441
      %v3531 = vpop.f32.mrb[0].mxu0
      %v3532 = vadd.f32 0.0, %v3531
      %v3533 = vpop.f32.mrb[0].mxu0
      %v3534 = vpop.f32.mrb[0].mxu0
      %v3535 = vadd.f32 0.0, %v3534
      %v3536 = vpop.f32.mrb[0].mxu0
      %3537 = vmatprep.mubr.bf16.mxu0 0
      %3538 = vmatmul.mubr.bf16.gmra.mrb[0].mxu0 %v3444
      %v3539 = vpop.f32.mrb[0].mxu0
      %v3540 = vadd.f32 0.0, %v3539
      %v3541 = vpop.f32.mrb[0].mxu0
      %v3542 = vpop.f32.mrb[0].mxu0
      %v3543 = vadd.f32 0.0, %v3542
      %v3544 = vpop.f32.mrb[0].mxu0
      %3545 = vmatprep.mubr.bf16.mxu0 0
      %3546 = vmatmul.mubr.bf16.gmra.mrb[0].mxu0 %v3447
      %v3547 = vpop.f32.mrb[0].mxu0
      %v3548 = vadd.f32 0.0, %v3547
      %v3549 = vpop.f32.mrb[0].mxu0
      %v3550 = vpop.f32.mrb[0].mxu0
      %v3551 = vadd.f32 0.0, %v3550
      %v3552 = vpop.f32.mrb[0].mxu0
      %3553 = vmatprep.mubr.bf16.mxu0 0
      %3554 = vmatmul.mubr.bf16.gmra.mrb[0].mxu0 %v3450
      %v3555 = vpop.f32.mrb[0].mxu0
      %v3556 = vadd.f32 0.0, %v3555
      %v3557 = vpop.f32.mrb[0].mxu0
      %v3558 = vpop.f32.mrb[0].mxu0
      %v3559 = vadd.f32 0.0, %v3558
      %v3560 = vpop.f32.mrb[0].mxu0
      %3561 = vmatprep.mubr.bf16.mxu0 0
      %3562 = vmatmul.mubr.bf16.gmra.mrb[0].mxu0 %v3453
      %v3563 = vpop.f32.mrb[0].mxu0
      %v3564 = vadd.f32 0.0, %v3563
      %v3565 = vpop.f32.mrb[0].mxu0
      %v3566 = vpop.f32.mrb[0].mxu0
      %v3567 = vadd.f32 0.0, %v3566
      %v3568 = vpop.f32.mrb[0].mxu0
      %3569 = vmatprep.mubr.bf16.mxu0 0
      %3570 = vmatmul.mubr.bf16.gmra.mrb[0].mxu0 %v3456
      %v3571 = vpop.f32.mrb[0].mxu0
      %v3572 = vadd.f32 0.0, %v3571
      %v3573 = vpop.f32.mrb[0].mxu0
      %v3574 = vpop.f32.mrb[0].mxu0
      %v3575 = vadd.f32 0.0, %v3574
      %v3576 = vpop.f32.mrb[0].mxu0
      %3577 = vmatprep.mubr.bf16.mxu0 0
      %3578 = vmatmul.mubr.bf16.gmra.mrb[0].mxu0 %v3459
      %v3579 = vpop.f32.mrb[0].mxu0
      %v3580 = vadd.f32 0.0, %v3579
      %v3581 = vpop.f32.mrb[0].mxu0
      %v3582 = vpop.f32.mrb[0].mxu0
      %v3583 = vadd.f32 0.0, %v3582
      %v3584 = vpop.f32.mrb[0].mxu0
      %3585 = vmatprep.mubr.bf16.mxu0 0
      %3586 = vmatmul.mubr.bf16.gmra.mrb[0].mxu0 %v3462
      %v3587 = vpop.f32.mrb[0].mxu0
      %v3588 = vadd.f32 0.0, %v3587
      %v3589 = vpop.f32.mrb[0].mxu0
      %v3590 = vpop.f32.mrb[0].mxu0
      %v3591 = vadd.f32 0.0, %v3590
      %v3592 = vpop.f32.mrb[0].mxu0
      %3593 = vmatprep.mubr.bf16.mxu0 0
      %3594 = vmatmul.mubr.bf16.gmra.mrb[0].mxu0 %v3465
      %v3595 = vpop.f32.mrb[0].mxu0
      %v3596 = vadd.f32 0.0, %v3595
      %v3597 = vpop.f32.mrb[0].mxu0
      %v3598 = vpop.f32.mrb[0].mxu0
      %v3599 = vadd.f32 0.0, %v3598
      %v3600 = vpop.f32.mrb[0].mxu0
      %3601 = vmatprep.mubr.bf16.mxu0 0
      %3602 = vmatmul.mubr.bf16.gmra.mrb[0].mxu0 %v3468
      %v3603 = vpop.f32.mrb[0].mxu0
      %v3604 = vadd.f32 0.0, %v3603
      %v3605 = vpop.f32.mrb[0].mxu0
      %v3606 = vpop.f32.mrb[0].mxu0
      %v3607 = vadd.f32 0.0, %v3606
      %v3608 = vpop.f32.mrb[0].mxu0
      %3609 = vmatprep.mubr.bf16.mxu0 0
      %3610 = vmatmul.mubr.bf16.gmra.mrb[0].mxu0 %v3471
      %v3611 = vpop.f32.mrb[0].mxu0
      %v3612 = vadd.f32 0.0, %v3611
      %v3613 = vpop.f32.mrb[0].mxu0
      %v3614 = vpop.f32.mrb[0].mxu0
      %v3615 = vadd.f32 0.0, %v3614
      %v3616 = vpop.f32.mrb[0].mxu0
      %3617 = vmatprep.mubr.bf16.mxu0 0
      %3618 = vmatmul.mubr.bf16.gmra.mrb[0].mxu0 %v3474
      %v3619 = vpop.f32.mrb[0].mxu0
      %v3620 = vadd.f32 0.0, %v3619
      %v3621 = vpop.f32.mrb[0].mxu0
      %v3622 = vpop.f32.mrb[0].mxu0
      %v3623 = vadd.f32 0.0, %v3622
      %v3624 = vpop.f32.mrb[0].mxu0
      %3625 = vmatprep.mubr.bf16.mxu0 0
      %3626 = vmatmul.mubr.bf16.gmra.mrb[0].mxu0 %v3477
      %v3627 = vpop.f32.mrb[0].mxu0
      %v3628 = vadd.f32 0.0, %v3627
      %v3629 = vpop.f32.mrb[0].mxu0
      %v3630 = vpop.f32.mrb[0].mxu0
      %v3631 = vadd.f32 0.0, %v3630
      %v3632 = vpop.f32.mrb[0].mxu0
      %3633 = vmatprep.mubr.bf16.mxu0 0
      %3634 = vmatmul.mubr.bf16.gmra.mrb[0].mxu0 %v3480
      %v3635 = vpop.f32.mrb[0].mxu0
      %v3636 = vadd.f32 0.0, %v3635
      %v3637 = vpop.f32.mrb[0].mxu0
      %v3638 = vpop.f32.mrb[0].mxu0
      %v3639 = vadd.f32 0.0, %v3638
      %v3640 = vpop.f32.mrb[0].mxu0
      %3641 = vmatprep.mubr.bf16.mxu0 0
      %3642 = vmatmul.mubr.bf16.gmra.mrb[0].mxu0 %v3483
      %v3643 = vpop.f32.mrb[0].mxu0
      %v3644 = vadd.f32 0.0, %v3643
      %v3645 = vpop.f32.mrb[0].mxu0
      %v3646 = vpop.f32.mrb[0].mxu0
      %v3647 = vadd.f32 0.0, %v3646
      %v3648 = vpop.f32.mrb[0].mxu0
      %3649 = vdwg.mxu0
      %v3653 = vunpack.c.l.b16 %v2988
      %v3654 = vunpack.c.l.b16 %v2989
      %v3655 = vunpack.c.l.b16 %v2990
      %v3656 = vpack.c.b16 %v3654, %v3653
      %v3657 = vpack.c.b16 %v3655, %v3655
      %v3660 = vsel %vm3436, %v2972, 0
      %v3663 = vsel %vm3436, %v2973, 0
      %v3666 = vsel %vm3436, %v2974, 0
      %v3669 = vsel %vm3436, %v2975, 0
      %v3672 = vsel %vm3436, %v2976, 0
      %v3675 = vsel %vm3436, %v2977, 0
      %v3678 = vsel %vm3436, %v2978, 0
      %v3681 = vsel %vm3436, %v2979, 0
      %v3684 = vsel %vm3436, %v2980, 0
      %v3687 = vsel %vm3436, %v2981, 0
      %v3690 = vsel %vm3436, %v2982, 0
      %v3693 = vsel %vm3436, %v2983, 0
      %v3696 = vsel %vm3436, %v2984, 0
      %v3699 = vsel %vm3436, %v2985, 0
      %v3702 = vsel %vm3436, %v2986, 0
      %v3705 = vsel %vm3436, %v2987, 0
      %v3708 = vsel %vm3485, %v3657, 0
      %3710 = vmatprep.subr.bf16.mxu0 0
      %3711 = vmatpush1.bf16.msra.mxu0 %v3656
      %3712 = vmatprep.subr.bf16.mxu0 0
      %3713 = vmatpush1.bf16.msra.mxu0 %v3708
      %3714 = vmatprep.subr.bf16.mxu0 0
      %3715 = vmatpush1.bf16.msra.mxu0 0
      %3716 = vmatprep.subr.bf16.mxu0 0
      %3717 = vmatpush1.bf16.msra.mxu0 0
      %3718 = vmatprep.subr.bf16.mxu0 0
      %3719 = vmatpush1.bf16.msra.mxu0 0
      %3720 = vmatprep.subr.bf16.mxu0 0
      %3721 = vmatpush1.bf16.msra.mxu0 0
      %3722 = vmatprep.subr.bf16.mxu0 0
      %3723 = vmatpush1.bf16.msra.mxu0 0
      %3724 = vmatprep.subr.bf16.mxu0 0
      %3725 = vmatpush1.bf16.msra.mxu0 0
      %3726 = vmatprep.subr.bf16.mxu0 0
      %3727 = vmatpush1.bf16.msra.mxu0 0
      %3728 = vmatprep.subr.bf16.mxu0 0
      %3729 = vmatpush1.bf16.msra.mxu0 0
      %3730 = vmatprep.subr.bf16.mxu0 0
      %3731 = vmatpush1.bf16.msra.mxu0 0
      %3732 = vmatprep.subr.bf16.mxu0 0
      %3733 = vmatpush1.bf16.msra.mxu0 0
      %3734 = vmatprep.subr.bf16.mxu0 0
      %3735 = vmatpush1.bf16.msra.mxu0 0
      %3736 = vmatprep.subr.bf16.mxu0 0
      %3737 = vmatpush1.bf16.msra.mxu0 0
      %3738 = vmatprep.subr.bf16.mxu0 0
      %3739 = vmatpush1.bf16.msra.mxu0 0
      %3740 = vmatprep.subr.bf16.mxu0 0
      %3741 = vmatpush1.bf16.msra.mxu0 0
      %3742 = vmatprep.mubr.bf16.mxu0 0
      %3743 = vmatmul.mubr.bf16.gmra.mrb[0].mxu0 %v3660
      %v3744 = vpop.f32.mrb[0].mxu0
      %v3745 = vadd.f32 %v3524, %v3744
      %v3746 = vpop.f32.mrb[0].mxu0
      %v3747 = vpop.f32.mrb[0].mxu0
      %v3748 = vadd.f32 %v3527, %v3747
      %v3749 = vpop.f32.mrb[0].mxu0
      %3750 = vmatprep.mubr.bf16.mxu0 0
      %3751 = vmatmul.mubr.bf16.gmra.mrb[0].mxu0 %v3663
      %v3752 = vpop.f32.mrb[0].mxu0
      %v3753 = vadd.f32 %v3532, %v3752
      %v3754 = vpop.f32.mrb[0].mxu0
      %v3755 = vpop.f32.mrb[0].mxu0
      %v3756 = vadd.f32 %v3535, %v3755
      %v3757 = vpop.f32.mrb[0].mxu0
      %3758 = vmatprep.mubr.bf16.mxu0 0
      %3759 = vmatmul.mubr.bf16.gmra.mrb[0].mxu0 %v3666
      %v3760 = vpop.f32.mrb[0].mxu0
      %v3761 = vadd.f32 %v3540, %v3760
      %v3762 = vpop.f32.mrb[0].mxu0
      %v3763 = vpop.f32.mrb[0].mxu0
      %v3764 = vadd.f32 %v3543, %v3763
      %v3765 = vpop.f32.mrb[0].mxu0
      %3766 = vmatprep.mubr.bf16.mxu0 0
      %3767 = vmatmul.mubr.bf16.gmra.mrb[0].mxu0 %v3669
      %v3768 = vpop.f32.mrb[0].mxu0
      %v3769 = vadd.f32 %v3548, %v3768
      %v3770 = vpop.f32.mrb[0].mxu0
      %v3771 = vpop.f32.mrb[0].mxu0
      %v3772 = vadd.f32 %v3551, %v3771
      %v3773 = vpop.f32.mrb[0].mxu0
      %3774 = vmatprep.mubr.bf16.mxu0 0
      %3775 = vmatmul.mubr.bf16.gmra.mrb[0].mxu0 %v3672
      %v3776 = vpop.f32.mrb[0].mxu0
      %v3777 = vadd.f32 %v3556, %v3776
      %v3778 = vpop.f32.mrb[0].mxu0
      %v3779 = vpop.f32.mrb[0].mxu0
      %v3780 = vadd.f32 %v3559, %v3779
      %v3781 = vpop.f32.mrb[0].mxu0
      %3782 = vmatprep.mubr.bf16.mxu0 0
      %3783 = vmatmul.mubr.bf16.gmra.mrb[0].mxu0 %v3675
      %v3784 = vpop.f32.mrb[0].mxu0
      %v3785 = vadd.f32 %v3564, %v3784
      %v3786 = vpop.f32.mrb[0].mxu0
      %v3787 = vpop.f32.mrb[0].mxu0
      %v3788 = vadd.f32 %v3567, %v3787
      %v3789 = vpop.f32.mrb[0].mxu0
      %3790 = vmatprep.mubr.bf16.mxu0 0
      %3791 = vmatmul.mubr.bf16.gmra.mrb[0].mxu0 %v3678
      %v3792 = vpop.f32.mrb[0].mxu0
      %v3793 = vadd.f32 %v3572, %v3792
      %v3794 = vpop.f32.mrb[0].mxu0
      %v3795 = vpop.f32.mrb[0].mxu0
      %v3796 = vadd.f32 %v3575, %v3795
      %v3797 = vpop.f32.mrb[0].mxu0
      %3798 = vmatprep.mubr.bf16.mxu0 0
      %3799 = vmatmul.mubr.bf16.gmra.mrb[0].mxu0 %v3681
      %v3800 = vpop.f32.mrb[0].mxu0
      %v3801 = vadd.f32 %v3580, %v3800
      %v3802 = vpop.f32.mrb[0].mxu0
      %v3803 = vpop.f32.mrb[0].mxu0
      %v3804 = vadd.f32 %v3583, %v3803
      %v3805 = vpop.f32.mrb[0].mxu0
      %3806 = vmatprep.mubr.bf16.mxu0 0
      %3807 = vmatmul.mubr.bf16.gmra.mrb[0].mxu0 %v3684
      %v3808 = vpop.f32.mrb[0].mxu0
      %v3809 = vadd.f32 %v3588, %v3808
      %v3810 = vpop.f32.mrb[0].mxu0
      %v3811 = vpop.f32.mrb[0].mxu0
      %v3812 = vadd.f32 %v3591, %v3811
      %v3813 = vpop.f32.mrb[0].mxu0
      %3814 = vmatprep.mubr.bf16.mxu0 0
      %3815 = vmatmul.mubr.bf16.gmra.mrb[0].mxu0 %v3687
      %v3816 = vpop.f32.mrb[0].mxu0
      %v3817 = vadd.f32 %v3596, %v3816
      %v3818 = vpop.f32.mrb[0].mxu0
      %v3819 = vpop.f32.mrb[0].mxu0
      %v3820 = vadd.f32 %v3599, %v3819
      %v3821 = vpop.f32.mrb[0].mxu0
      %3822 = vmatprep.mubr.bf16.mxu0 0
      %3823 = vmatmul.mubr.bf16.gmra.mrb[0].mxu0 %v3690
      %v3824 = vpop.f32.mrb[0].mxu0
      %v3825 = vadd.f32 %v3604, %v3824
      %v3826 = vpop.f32.mrb[0].mxu0
      %v3827 = vpop.f32.mrb[0].mxu0
      %v3828 = vadd.f32 %v3607, %v3827
      %v3829 = vpop.f32.mrb[0].mxu0
      %3830 = vmatprep.mubr.bf16.mxu0 0
      %3831 = vmatmul.mubr.bf16.gmra.mrb[0].mxu0 %v3693
      %v3832 = vpop.f32.mrb[0].mxu0
      %v3833 = vadd.f32 %v3612, %v3832
      %v3834 = vpop.f32.mrb[0].mxu0
      %v3835 = vpop.f32.mrb[0].mxu0
      %v3836 = vadd.f32 %v3615, %v3835
      %v3837 = vpop.f32.mrb[0].mxu0
      %3838 = vmatprep.mubr.bf16.mxu0 0
      %3839 = vmatmul.mubr.bf16.gmra.mrb[0].mxu0 %v3696
      %v3840 = vpop.f32.mrb[0].mxu0
      %v3841 = vadd.f32 %v3620, %v3840
      %v3842 = vpop.f32.mrb[0].mxu0
      %v3843 = vpop.f32.mrb[0].mxu0
      %v3844 = vadd.f32 %v3623, %v3843
      %v3845 = vpop.f32.mrb[0].mxu0
      %3846 = vmatprep.mubr.bf16.mxu0 0
      %3847 = vmatmul.mubr.bf16.gmra.mrb[0].mxu0 %v3699
      %v3848 = vpop.f32.mrb[0].mxu0
      %v3849 = vadd.f32 %v3628, %v3848
      %v3850 = vpop.f32.mrb[0].mxu0
      %v3851 = vpop.f32.mrb[0].mxu0
      %v3852 = vadd.f32 %v3631, %v3851
      %v3853 = vpop.f32.mrb[0].mxu0
      %3854 = vmatprep.mubr.bf16.mxu0 0
      %3855 = vmatmul.mubr.bf16.gmra.mrb[0].mxu0 %v3702
      %v3856 = vpop.f32.mrb[0].mxu0
      %v3857 = vadd.f32 %v3636, %v3856
      %v3858 = vpop.f32.mrb[0].mxu0
      %v3859 = vpop.f32.mrb[0].mxu0
      %v3860 = vadd.f32 %v3639, %v3859
      %v3861 = vpop.f32.mrb[0].mxu0
      %3862 = vmatprep.mubr.bf16.mxu0 0
      %3863 = vmatmul.mubr.bf16.gmra.mrb[0].mxu0 %v3705
      %v3864 = vpop.f32.mrb[0].mxu0
      %v3865 = vadd.f32 %v3644, %v3864
      %v3866 = vpop.f32.mrb[0].mxu0
      %v3867 = vpop.f32.mrb[0].mxu0
      %v3868 = vadd.f32 %v3647, %v3867
      %v3869 = vpop.f32.mrb[0].mxu0
      %3870 = vdwg.mxu0
      %s3871 = scalar_lea.vmem [#allocation3], 48
      %v3872 = vld [vmem:[%s3871] sm:$0xff]
      %v3873 = vld [vmem:[%s3871 + $0x8] sm:$0xff]
      %v3874 = vld [vmem:[%s3871 + $0x18] sm:$0xff]
      %v3875 = vld [vmem:[%s3871 + $0x20] sm:$0xff]
      %v3876 = vld [vmem:[%s3871 + $0x30] sm:$0xff]
      %v3877 = vld [vmem:[%s3871 + $0x38] sm:$0xff]
      %v3878 = vld [vmem:[%s3871 + $0x48] sm:$0xff]
      %v3879 = vld [vmem:[%s3871 + $0x50] sm:$0xff]
      %v3880 = vld [vmem:[%s3871 + $0x60] sm:$0xff]
      %v3881 = vld [vmem:[%s3871 + $0x68] sm:$0xff]
      %v3882 = vld [vmem:[%s3871 + $0x78] sm:$0xff]
      %v3883 = vld [vmem:[%s3871 + $0x80] sm:$0xff]
      %v3884 = vld [vmem:[%s3871 + $0x90] sm:$0xff]
      %v3885 = vld [vmem:[%s3871 + $0x98] sm:$0xff]
      %v3886 = vld [vmem:[%s3871 + $0xa8] sm:$0xff]
      %v3887 = vld [vmem:[%s3871 + $0xb0] sm:$0xff]
      %v3888 = vld [vmem:[%s3871 + $0xc0] sm:$0xff]
      %v3889 = vld [vmem:[%s3871 + $0xc8] sm:$0xff]
      %v3890 = vld [vmem:[%s3871 + $0xd8] sm:$0xff]
      %v3891 = vld [vmem:[%s3871 + $0xe0] sm:$0xff]
      %v3892 = vld [vmem:[%s3871 + $0xf0] sm:$0xff]
      %v3893 = vld [vmem:[%s3871 + $0xf8] sm:$0xff]
      %v3894 = vld [vmem:[%s3871 + $0x108] sm:$0xff]
      %v3895 = vld [vmem:[%s3871 + $0x110] sm:$0xff]
      %v3896 = vld [vmem:[%s3871 + $0x120] sm:$0xff]
      %v3897 = vld [vmem:[%s3871 + $0x128] sm:$0xff]
      %v3898 = vld [vmem:[%s3871 + $0x138] sm:$0xff]
      %v3899 = vld [vmem:[%s3871 + $0x140] sm:$0xff]
      %v3900 = vld [vmem:[%s3871 + $0x150] sm:$0xff]
      %v3901 = vld [vmem:[%s3871 + $0x158] sm:$0xff]
      %v3902 = vld [vmem:[%s3871 + $0x168] sm:$0xff]
      %v3903 = vld [vmem:[%s3871 + $0x170] sm:$0xff]
      %v3904 = vld [vmem:[%s3871 + $0x1] sm:$0xff]
      %v3905 = vld [vmem:[%s3871 + $0x9] sm:$0xff]
      %v3906 = vld [vmem:[%s3871 + $0x19] sm:$0xff]
      %v3907 = vld [vmem:[%s3871 + $0x21] sm:$0xff]
      %v3908 = vld [vmem:[%s3871 + $0x31] sm:$0xff]
      %v3909 = vld [vmem:[%s3871 + $0x39] sm:$0xff]
      %v3910 = vld [vmem:[%s3871 + $0x49] sm:$0xff]
      %v3911 = vld [vmem:[%s3871 + $0x51] sm:$0xff]
      %v3912 = vld [vmem:[%s3871 + $0x61] sm:$0xff]
      %v3913 = vld [vmem:[%s3871 + $0x69] sm:$0xff]
      %v3914 = vld [vmem:[%s3871 + $0x79] sm:$0xff]
      %v3915 = vld [vmem:[%s3871 + $0x81] sm:$0xff]
      %v3916 = vld [vmem:[%s3871 + $0x91] sm:$0xff]
      %v3917 = vld [vmem:[%s3871 + $0x99] sm:$0xff]
      %v3918 = vld [vmem:[%s3871 + $0xa9] sm:$0xff]
      %v3919 = vld [vmem:[%s3871 + $0xb1] sm:$0xff]
      %v3920 = vld [vmem:[%s3871 + $0xc1] sm:$0xff]
      %v3921 = vld [vmem:[%s3871 + $0xc9] sm:$0xff]
      %v3922 = vld [vmem:[%s3871 + $0xd9] sm:$0xff]
      %v3923 = vld [vmem:[%s3871 + $0xe1] sm:$0xff]
      %v3924 = vld [vmem:[%s3871 + $0xf1] sm:$0xff]
      %v3925 = vld [vmem:[%s3871 + $0xf9] sm:$0xff]
      %v3926 = vld [vmem:[%s3871 + $0x109] sm:$0xff]
      %v3927 = vld [vmem:[%s3871 + $0x111] sm:$0xff]
      %v3928 = vld [vmem:[%s3871 + $0x121] sm:$0xff]
      %v3929 = vld [vmem:[%s3871 + $0x129] sm:$0xff]
      %v3930 = vld [vmem:[%s3871 + $0x139] sm:$0xff]
      %v3931 = vld [vmem:[%s3871 + $0x141] sm:$0xff]
      %v3932 = vld [vmem:[%s3871 + $0x151] sm:$0xff]
      %v3933 = vld [vmem:[%s3871 + $0x159] sm:$0xff]
      %v3934 = vld [vmem:[%s3871 + $0x169] sm:$0xff]
      %v3935 = vld [vmem:[%s3871 + $0x171] sm:$0xff]
      %v3936 = vld [vmem:[%s3871 + $0x2] sm:$0xff]
      %v3937 = vld [vmem:[%s3871 + $0xa] sm:$0xff]
      %v3938 = vld [vmem:[%s3871 + $0x1a] sm:$0xff]
      %v3939 = vld [vmem:[%s3871 + $0x22] sm:$0xff]
      %v3940 = vld [vmem:[%s3871 + $0x32] sm:$0xff]
      %v3941 = vld [vmem:[%s3871 + $0x3a] sm:$0xff]
      %v3942 = vld [vmem:[%s3871 + $0x4a] sm:$0xff]
      %v3943 = vld [vmem:[%s3871 + $0x52] sm:$0xff]
      %v3944 = vld [vmem:[%s3871 + $0x62] sm:$0xff]
      %v3945 = vld [vmem:[%s3871 + $0x6a] sm:$0xff]
      %v3946 = vld [vmem:[%s3871 + $0x7a] sm:$0xff]
      %v3947 = vld [vmem:[%s3871 + $0x82] sm:$0xff]
      %v3948 = vld [vmem:[%s3871 + $0x92] sm:$0xff]
      %v3949 = vld [vmem:[%s3871 + $0x9a] sm:$0xff]
      %v3950 = vld [vmem:[%s3871 + $0xaa] sm:$0xff]
      %v3951 = vld [vmem:[%s3871 + $0xb2] sm:$0xff]
      %v3952 = vld [vmem:[%s3871 + $0xc2] sm:$0xff]
      %v3953 = vld [vmem:[%s3871 + $0xca] sm:$0xff]
      %v3954 = vld [vmem:[%s3871 + $0xda] sm:$0xff]
      %v3955 = vld [vmem:[%s3871 + $0xe2] sm:$0xff]
      %v3956 = vld [vmem:[%s3871 + $0xf2] sm:$0xff]
      %v3957 = vld [vmem:[%s3871 + $0xfa] sm:$0xff]
      %v3958 = vld [vmem:[%s3871 + $0x10a] sm:$0xff]
      %v3959 = vld [vmem:[%s3871 + $0x112] sm:$0xff]
      %v3960 = vld [vmem:[%s3871 + $0x122] sm:$0xff]
      %v3961 = vld [vmem:[%s3871 + $0x12a] sm:$0xff]
      %v3962 = vld [vmem:[%s3871 + $0x13a] sm:$0xff]
      %v3963 = vld [vmem:[%s3871 + $0x142] sm:$0xff]
      %v3964 = vld [vmem:[%s3871 + $0x152] sm:$0xff]
      %v3965 = vld [vmem:[%s3871 + $0x15a] sm:$0xff]
      %v3966 = vld [vmem:[%s3871 + $0x16a] sm:$0xff]
      %v3967 = vld [vmem:[%s3871 + $0x172] sm:$0xff]
      %4000 = vrot.lane.b32.xlu0 %v3904, 8
      %v4001 = vpop.permute.xlu0 %4000
      %4002 = vrot.lane.b32.xlu0 %v3905, 8
      %v4003 = vpop.permute.xlu0 %4002
      %4004 = vrot.lane.b32.xlu0 %v3906, 8
      %v4005 = vpop.permute.xlu0 %4004
      %4006 = vrot.lane.b32.xlu0 %v3907, 8
      %v4007 = vpop.permute.xlu0 %4006
      %4008 = vrot.lane.b32.xlu0 %v3908, 8
      %v4009 = vpop.permute.xlu0 %4008
      %4010 = vrot.lane.b32.xlu0 %v3909, 8
      %v4011 = vpop.permute.xlu0 %4010
      %4012 = vrot.lane.b32.xlu0 %v3910, 8
      %v4013 = vpop.permute.xlu0 %4012
      %4014 = vrot.lane.b32.xlu0 %v3911, 8
      %v4015 = vpop.permute.xlu0 %4014
      %4016 = vrot.lane.b32.xlu0 %v3912, 8
      %v4017 = vpop.permute.xlu0 %4016
      %4018 = vrot.lane.b32.xlu0 %v3913, 8
      %v4019 = vpop.permute.xlu0 %4018
      %4020 = vrot.lane.b32.xlu0 %v3914, 8
      %v4021 = vpop.permute.xlu0 %4020
      %4022 = vrot.lane.b32.xlu0 %v3915, 8
      %v4023 = vpop.permute.xlu0 %4022
      %4024 = vrot.lane.b32.xlu0 %v3916, 8
      %v4025 = vpop.permute.xlu0 %4024
      %4026 = vrot.lane.b32.xlu0 %v3917, 8
      %v4027 = vpop.permute.xlu0 %4026
      %4028 = vrot.lane.b32.xlu0 %v3918, 8
      %v4029 = vpop.permute.xlu0 %4028
      %4030 = vrot.lane.b32.xlu0 %v3919, 8
      %v4031 = vpop.permute.xlu0 %4030
      %4032 = vrot.lane.b32.xlu0 %v3920, 8
      %v4033 = vpop.permute.xlu0 %4032
      %4034 = vrot.lane.b32.xlu0 %v3921, 8
      %v4035 = vpop.permute.xlu0 %4034
      %4036 = vrot.lane.b32.xlu0 %v3922, 8
      %v4037 = vpop.permute.xlu0 %4036
      %4038 = vrot.lane.b32.xlu0 %v3923, 8
      %v4039 = vpop.permute.xlu0 %4038
      %4040 = vrot.lane.b32.xlu0 %v3924, 8
      %v4041 = vpop.permute.xlu0 %4040
      %4042 = vrot.lane.b32.xlu0 %v3925, 8
      %v4043 = vpop.permute.xlu0 %4042
      %4044 = vrot.lane.b32.xlu0 %v3926, 8
      %v4045 = vpop.permute.xlu0 %4044
      %4046 = vrot.lane.b32.xlu0 %v3927, 8
      %v4047 = vpop.permute.xlu0 %4046
      %4048 = vrot.lane.b32.xlu0 %v3928, 8
      %v4049 = vpop.permute.xlu0 %4048
      %4050 = vrot.lane.b32.xlu0 %v3929, 8
      %v4051 = vpop.permute.xlu0 %4050
      %4052 = vrot.lane.b32.xlu0 %v3930, 8
      %v4053 = vpop.permute.xlu0 %4052
      %4054 = vrot.lane.b32.xlu0 %v3931, 8
      %v4055 = vpop.permute.xlu0 %4054
      %4056 = vrot.lane.b32.xlu0 %v3932, 8
      %v4057 = vpop.permute.xlu0 %4056
      %4058 = vrot.lane.b32.xlu0 %v3933, 8
      %v4059 = vpop.permute.xlu0 %4058
      %4060 = vrot.lane.b32.xlu0 %v3934, 8
      %v4061 = vpop.permute.xlu0 %4060
      %4062 = vrot.lane.b32.xlu0 %v3935, 8
      %v4063 = vpop.permute.xlu0 %4062
      %4128 = vrot.lane.b32.xlu0 %v3936, 16
      %v4129 = vpop.permute.xlu0 %4128
      %4130 = vrot.lane.b32.xlu0 %v3937, 16
      %v4131 = vpop.permute.xlu0 %4130
      %4132 = vrot.lane.b32.xlu0 %v3938, 16
      %v4133 = vpop.permute.xlu0 %4132
      %4134 = vrot.lane.b32.xlu0 %v3939, 16
      %v4135 = vpop.permute.xlu0 %4134
      %4136 = vrot.lane.b32.xlu0 %v3940, 16
      %v4137 = vpop.permute.xlu0 %4136
      %4138 = vrot.lane.b32.xlu0 %v3941, 16
      %v4139 = vpop.permute.xlu0 %4138
      %4140 = vrot.lane.b32.xlu0 %v3942, 16
      %v4141 = vpop.permute.xlu0 %4140
      %4142 = vrot.lane.b32.xlu0 %v3943, 16
      %v4143 = vpop.permute.xlu0 %4142
      %4144 = vrot.lane.b32.xlu0 %v3944, 16
      %v4145 = vpop.permute.xlu0 %4144
      %4146 = vrot.lane.b32.xlu0 %v3945, 16
      %v4147 = vpop.permute.xlu0 %4146
      %4148 = vrot.lane.b32.xlu0 %v3946, 16
      %v4149 = vpop.permute.xlu0 %4148
      %4150 = vrot.lane.b32.xlu0 %v3947, 16
      %v4151 = vpop.permute.xlu0 %4150
      %4152 = vrot.lane.b32.xlu0 %v3948, 16
      %v4153 = vpop.permute.xlu0 %4152
      %4154 = vrot.lane.b32.xlu0 %v3949, 16
      %v4155 = vpop.permute.xlu0 %4154
      %4156 = vrot.lane.b32.xlu0 %v3950, 16
      %v4157 = vpop.permute.xlu0 %4156
      %4158 = vrot.lane.b32.xlu0 %v3951, 16
      %v4159 = vpop.permute.xlu0 %4158
      %4160 = vrot.lane.b32.xlu0 %v3952, 16
      %v4161 = vpop.permute.xlu0 %4160
      %4162 = vrot.lane.b32.xlu0 %v3953, 16
      %v4163 = vpop.permute.xlu0 %4162
      %4164 = vrot.lane.b32.xlu0 %v3954, 16
      %v4165 = vpop.permute.xlu0 %4164
      %4166 = vrot.lane.b32.xlu0 %v3955, 16
      %v4167 = vpop.permute.xlu0 %4166
      %4168 = vrot.lane.b32.xlu0 %v3956, 16
      %v4169 = vpop.permute.xlu0 %4168
      %4170 = vrot.lane.b32.xlu0 %v3957, 16
      %v4171 = vpop.permute.xlu0 %4170
      %4172 = vrot.lane.b32.xlu0 %v3958, 16
      %v4173 = vpop.permute.xlu0 %4172
      %4174 = vrot.lane.b32.xlu0 %v3959, 16
      %v4175 = vpop.permute.xlu0 %4174
      %4176 = vrot.lane.b32.xlu0 %v3960, 16
      %v4177 = vpop.permute.xlu0 %4176
      %4178 = vrot.lane.b32.xlu0 %v3961, 16
      %v4179 = vpop.permute.xlu0 %4178
      %4180 = vrot.lane.b32.xlu0 %v3962, 16
      %v4181 = vpop.permute.xlu0 %4180
      %4182 = vrot.lane.b32.xlu0 %v3963, 16
      %v4183 = vpop.permute.xlu0 %4182
      %4184 = vrot.lane.b32.xlu0 %v3964, 16
      %v4185 = vpop.permute.xlu0 %4184
      %4186 = vrot.lane.b32.xlu0 %v3965, 16
      %v4187 = vpop.permute.xlu0 %4186
      %4188 = vrot.lane.b32.xlu0 %v3966, 16
      %v4189 = vpop.permute.xlu0 %4188
      %4190 = vrot.lane.b32.xlu0 %v3967, 16
      %v4191 = vpop.permute.xlu0 %4190
      %v4224 = vsel %vm803, %v3872, %v4001
      %v4225 = vsel %vm803, %v3873, %v4003
      %v4226 = vsel %vm803, %v3874, %v4005
      %v4227 = vsel %vm803, %v3875, %v4007
      %v4228 = vsel %vm803, %v3876, %v4009
      %v4229 = vsel %vm803, %v3877, %v4011
      %v4230 = vsel %vm803, %v3878, %v4013
      %v4231 = vsel %vm803, %v3879, %v4015
      %v4232 = vsel %vm803, %v3880, %v4017
      %v4233 = vsel %vm803, %v3881, %v4019
      %v4234 = vsel %vm803, %v3882, %v4021
      %v4235 = vsel %vm803, %v3883, %v4023
      %v4236 = vsel %vm803, %v3884, %v4025
      %v4237 = vsel %vm803, %v3885, %v4027
      %v4238 = vsel %vm803, %v3886, %v4029
      %v4239 = vsel %vm803, %v3887, %v4031
      %v4240 = vsel %vm803, %v3888, %v4033
      %v4241 = vsel %vm803, %v3889, %v4035
      %v4242 = vsel %vm803, %v3890, %v4037
      %v4243 = vsel %vm803, %v3891, %v4039
      %v4244 = vsel %vm803, %v3892, %v4041
      %v4245 = vsel %vm803, %v3893, %v4043
      %v4246 = vsel %vm803, %v3894, %v4045
      %v4247 = vsel %vm803, %v3895, %v4047
      %v4248 = vsel %vm803, %v3896, %v4049
      %v4249 = vsel %vm803, %v3897, %v4051
      %v4250 = vsel %vm803, %v3898, %v4053
      %v4251 = vsel %vm803, %v3899, %v4055
      %v4252 = vsel %vm803, %v3900, %v4057
      %v4253 = vsel %vm803, %v3901, %v4059
      %v4254 = vsel %vm803, %v3902, %v4061
      %v4255 = vsel %vm803, %v3903, %v4063
      %v4256 = vsel %vm2939, %v4224, %v4129
      %v4257 = vsel %vm2939, %v4225, %v4131
      %v4258 = vsel %vm2939, %v4226, %v4133
      %v4259 = vsel %vm2939, %v4227, %v4135
      %v4260 = vsel %vm2939, %v4228, %v4137
      %v4261 = vsel %vm2939, %v4229, %v4139
      %v4262 = vsel %vm2939, %v4230, %v4141
      %v4263 = vsel %vm2939, %v4231, %v4143
      %v4264 = vsel %vm2939, %v4232, %v4145
      %v4265 = vsel %vm2939, %v4233, %v4147
      %v4266 = vsel %vm2939, %v4234, %v4149
      %v4267 = vsel %vm2939, %v4235, %v4151
      %v4268 = vsel %vm2939, %v4236, %v4153
      %v4269 = vsel %vm2939, %v4237, %v4155
      %v4270 = vsel %vm2939, %v4238, %v4157
      %v4271 = vsel %vm2939, %v4239, %v4159
      %v4272 = vsel %vm2939, %v4240, %v4161
      %v4273 = vsel %vm2939, %v4241, %v4163
      %v4274 = vsel %vm2939, %v4242, %v4165
      %v4275 = vsel %vm2939, %v4243, %v4167
      %v4276 = vsel %vm2939, %v4244, %v4169
      %v4277 = vsel %vm2939, %v4245, %v4171
      %v4278 = vsel %vm2939, %v4246, %v4173
      %v4279 = vsel %vm2939, %v4247, %v4175
      %v4280 = vsel %vm2939, %v4248, %v4177
      %v4281 = vsel %vm2939, %v4249, %v4179
      %v4282 = vsel %vm2939, %v4250, %v4181
      %v4283 = vsel %vm2939, %v4251, %v4183
      %v4284 = vsel %vm2939, %v4252, %v4185
      %v4285 = vsel %vm2939, %v4253, %v4187
      %v4286 = vsel %vm2939, %v4254, %v4189
      %v4287 = vsel %vm2939, %v4255, %v4191
      %v4288 = vpack.c.bf16 %v4257, %v4256
      %v4289 = vpack.c.bf16 %v4259, %v4258
      %v4290 = vpack.c.bf16 %v4261, %v4260
      %v4291 = vpack.c.bf16 %v4263, %v4262
      %v4292 = vpack.c.bf16 %v4265, %v4264
      %v4293 = vpack.c.bf16 %v4267, %v4266
      %v4294 = vpack.c.bf16 %v4269, %v4268
      %v4295 = vpack.c.bf16 %v4271, %v4270
      %v4296 = vpack.c.bf16 %v4273, %v4272
      %v4297 = vpack.c.bf16 %v4275, %v4274
      %v4298 = vpack.c.bf16 %v4277, %v4276
      %v4299 = vpack.c.bf16 %v4279, %v4278
      %v4300 = vpack.c.bf16 %v4281, %v4280
      %v4301 = vpack.c.bf16 %v4283, %v4282
      %v4302 = vpack.c.bf16 %v4285, %v4284
      %v4303 = vpack.c.bf16 %v4287, %v4286
      %s4304 = scalar_lea.vmem %s3, 24
      %v4305 = vld [vmem:[%s4304] sm:$0xf]
      %v4306 = vld [vmem:[%s4304 + $0x4] sm:$0xf]
      %v4307 = vld [vmem:[%s4304 + $0x8] sm:$0xf]
      %v4311 = vunpack.c.l.b16 %v4305
      %v4312 = vunpack.c.l.b16 %v4306
      %v4313 = vunpack.c.l.b16 %v4307
      %v4314 = vpack.c.b16 %v4312, %v4311
      %v4315 = vpack.c.b16 %v4313, %v4313
      %v4318 = vsel %vm3436, %v4288, 0
      %v4321 = vsel %vm3436, %v4289, 0
      %v4324 = vsel %vm3436, %v4290, 0
      %v4327 = vsel %vm3436, %v4291, 0
      %v4330 = vsel %vm3436, %v4292, 0
      %v4333 = vsel %vm3436, %v4293, 0
      %v4336 = vsel %vm3436, %v4294, 0
      %v4339 = vsel %vm3436, %v4295, 0
      %v4342 = vsel %vm3436, %v4296, 0
      %v4345 = vsel %vm3436, %v4297, 0
      %v4348 = vsel %vm3436, %v4298, 0
      %v4351 = vsel %vm3436, %v4299, 0
      %v4354 = vsel %vm3436, %v4300, 0
      %v4357 = vsel %vm3436, %v4301, 0
      %v4360 = vsel %vm3436, %v4302, 0
      %v4363 = vsel %vm3436, %v4303, 0
      %v4366 = vsel %vm3485, %v4315, 0
      %4368 = vmatprep.subr.bf16.mxu0 0
      %4369 = vmatpush1.bf16.msra.mxu0 %v4314
      %4370 = vmatprep.subr.bf16.mxu0 0
      %4371 = vmatpush1.bf16.msra.mxu0 %v4366
      %4372 = vmatprep.subr.bf16.mxu0 0
      %4373 = vmatpush1.bf16.msra.mxu0 0
      %4374 = vmatprep.subr.bf16.mxu0 0
      %4375 = vmatpush1.bf16.msra.mxu0 0
      %4376 = vmatprep.subr.bf16.mxu0 0
      %4377 = vmatpush1.bf16.msra.mxu0 0
      %4378 = vmatprep.subr.bf16.mxu0 0
      %4379 = vmatpush1.bf16.msra.mxu0 0
      %4380 = vmatprep.subr.bf16.mxu0 0
      %4381 = vmatpush1.bf16.msra.mxu0 0
      %4382 = vmatprep.subr.bf16.mxu0 0
      %4383 = vmatpush1.bf16.msra.mxu0 0
      %4384 = vmatprep.subr.bf16.mxu0 0
      %4385 = vmatpush1.bf16.msra.mxu0 0
      %4386 = vmatprep.subr.bf16.mxu0 0
      %4387 = vmatpush1.bf16.msra.mxu0 0
      %4388 = vmatprep.subr.bf16.mxu0 0
      %4389 = vmatpush1.bf16.msra.mxu0 0
      %4390 = vmatprep.subr.bf16.mxu0 0
      %4391 = vmatpush1.bf16.msra.mxu0 0
      %4392 = vmatprep.subr.bf16.mxu0 0
      %4393 = vmatpush1.bf16.msra.mxu0 0
      %4394 = vmatprep.subr.bf16.mxu0 0
      %4395 = vmatpush1.bf16.msra.mxu0 0
      %4396 = vmatprep.subr.bf16.mxu0 0
      %4397 = vmatpush1.bf16.msra.mxu0 0
      %4398 = vmatprep.subr.bf16.mxu0 0
      %4399 = vmatpush1.bf16.msra.mxu0 0
      %4400 = vmatprep.mubr.bf16.mxu0 0
      %4401 = vmatmul.mubr.bf16.gmra.mrb[0].mxu0 %v4318
      %v4402 = vpop.f32.mrb[0].mxu0
      %v4403 = vadd.f32 0.0, %v4402
      %v4404 = vpop.f32.mrb[0].mxu0
      %v4405 = vpop.f32.mrb[0].mxu0
      %v4406 = vadd.f32 0.0, %v4405
      %v4407 = vpop.f32.mrb[0].mxu0
      %4408 = vmatprep.mubr.bf16.mxu0 0
      %4409 = vmatmul.mubr.bf16.gmra.mrb[0].mxu0 %v4321
      %v4410 = vpop.f32.mrb[0].mxu0
      %v4411 = vadd.f32 0.0, %v4410
      %v4412 = vpop.f32.mrb[0].mxu0
      %v4413 = vpop.f32.mrb[0].mxu0
      %v4414 = vadd.f32 0.0, %v4413
      %v4415 = vpop.f32.mrb[0].mxu0
      %4416 = vmatprep.mubr.bf16.mxu0 0
      %4417 = vmatmul.mubr.bf16.gmra.mrb[0].mxu0 %v4324
      %v4418 = vpop.f32.mrb[0].mxu0
      %v4419 = vadd.f32 0.0, %v4418
      %v4420 = vpop.f32.mrb[0].mxu0
      %v4421 = vpop.f32.mrb[0].mxu0
      %v4422 = vadd.f32 0.0, %v4421
      %v4423 = vpop.f32.mrb[0].mxu0
      %4424 = vmatprep.mubr.bf16.mxu0 0
      %4425 = vmatmul.mubr.bf16.gmra.mrb[0].mxu0 %v4327
      %v4426 = vpop.f32.mrb[0].mxu0
      %v4427 = vadd.f32 0.0, %v4426
      %v4428 = vpop.f32.mrb[0].mxu0
      %v4429 = vpop.f32.mrb[0].mxu0
      %v4430 = vadd.f32 0.0, %v4429
      %v4431 = vpop.f32.mrb[0].mxu0
      %4432 = vmatprep.mubr.bf16.mxu0 0
      %4433 = vmatmul.mubr.bf16.gmra.mrb[0].mxu0 %v4330
      %v4434 = vpop.f32.mrb[0].mxu0
      %v4435 = vadd.f32 0.0, %v4434
      %v4436 = vpop.f32.mrb[0].mxu0
      %v4437 = vpop.f32.mrb[0].mxu0
      %v4438 = vadd.f32 0.0, %v4437
      %v4439 = vpop.f32.mrb[0].mxu0
      %4440 = vmatprep.mubr.bf16.mxu0 0
      %4441 = vmatmul.mubr.bf16.gmra.mrb[0].mxu0 %v4333
      %v4442 = vpop.f32.mrb[0].mxu0
      %v4443 = vadd.f32 0.0, %v4442
      %v4444 = vpop.f32.mrb[0].mxu0
      %v4445 = vpop.f32.mrb[0].mxu0
      %v4446 = vadd.f32 0.0, %v4445
      %v4447 = vpop.f32.mrb[0].mxu0
      %4448 = vmatprep.mubr.bf16.mxu0 0
      %4449 = vmatmul.mubr.bf16.gmra.mrb[0].mxu0 %v4336
      %v4450 = vpop.f32.mrb[0].mxu0
      %v4451 = vadd.f32 0.0, %v4450
      %v4452 = vpop.f32.mrb[0].mxu0
      %v4453 = vpop.f32.mrb[0].mxu0
      %v4454 = vadd.f32 0.0, %v4453
      %v4455 = vpop.f32.mrb[0].mxu0
      %4456 = vmatprep.mubr.bf16.mxu0 0
      %4457 = vmatmul.mubr.bf16.gmra.mrb[0].mxu0 %v4339
      %v4458 = vpop.f32.mrb[0].mxu0
      %v4459 = vadd.f32 0.0, %v4458
      %v4460 = vpop.f32.mrb[0].mxu0
      %v4461 = vpop.f32.mrb[0].mxu0
      %v4462 = vadd.f32 0.0, %v4461
      %v4463 = vpop.f32.mrb[0].mxu0
      %4464 = vmatprep.mubr.bf16.mxu0 0
      %4465 = vmatmul.mubr.bf16.gmra.mrb[0].mxu0 %v4342
      %v4466 = vpop.f32.mrb[0].mxu0
      %v4467 = vadd.f32 0.0, %v4466
      %v4468 = vpop.f32.mrb[0].mxu0
      %v4469 = vpop.f32.mrb[0].mxu0
      %v4470 = vadd.f32 0.0, %v4469
      %v4471 = vpop.f32.mrb[0].mxu0
      %4472 = vmatprep.mubr.bf16.mxu0 0
      %4473 = vmatmul.mubr.bf16.gmra.mrb[0].mxu0 %v4345
      %v4474 = vpop.f32.mrb[0].mxu0
      %v4475 = vadd.f32 0.0, %v4474
      %v4476 = vpop.f32.mrb[0].mxu0
      %v4477 = vpop.f32.mrb[0].mxu0
      %v4478 = vadd.f32 0.0, %v4477
      %v4479 = vpop.f32.mrb[0].mxu0
      %4480 = vmatprep.mubr.bf16.mxu0 0
      %4481 = vmatmul.mubr.bf16.gmra.mrb[0].mxu0 %v4348
      %v4482 = vpop.f32.mrb[0].mxu0
      %v4483 = vadd.f32 0.0, %v4482
      %v4484 = vpop.f32.mrb[0].mxu0
      %v4485 = vpop.f32.mrb[0].mxu0
      %v4486 = vadd.f32 0.0, %v4485
      %v4487 = vpop.f32.mrb[0].mxu0
      %4488 = vmatprep.mubr.bf16.mxu0 0
      %4489 = vmatmul.mubr.bf16.gmra.mrb[0].mxu0 %v4351
      %v4490 = vpop.f32.mrb[0].mxu0
      %v4491 = vadd.f32 0.0, %v4490
      %v4492 = vpop.f32.mrb[0].mxu0
      %v4493 = vpop.f32.mrb[0].mxu0
      %v4494 = vadd.f32 0.0, %v4493
      %v4495 = vpop.f32.mrb[0].mxu0
      %4496 = vmatprep.mubr.bf16.mxu0 0
      %4497 = vmatmul.mubr.bf16.gmra.mrb[0].mxu0 %v4354
      %v4498 = vpop.f32.mrb[0].mxu0
      %v4499 = vadd.f32 0.0, %v4498
      %v4500 = vpop.f32.mrb[0].mxu0
      %v4501 = vpop.f32.mrb[0].mxu0
      %v4502 = vadd.f32 0.0, %v4501
      %v4503 = vpop.f32.mrb[0].mxu0
      %4504 = vmatprep.mubr.bf16.mxu0 0
      %4505 = vmatmul.mubr.bf16.gmra.mrb[0].mxu0 %v4357
      %v4506 = vpop.f32.mrb[0].mxu0
      %v4507 = vadd.f32 0.0, %v4506
      %v4508 = vpop.f32.mrb[0].mxu0
      %v4509 = vpop.f32.mrb[0].mxu0
      %v4510 = vadd.f32 0.0, %v4509
      %v4511 = vpop.f32.mrb[0].mxu0
      %4512 = vmatprep.mubr.bf16.mxu0 0
      %4513 = vmatmul.mubr.bf16.gmra.mrb[0].mxu0 %v4360
      %v4514 = vpop.f32.mrb[0].mxu0
      %v4515 = vadd.f32 0.0, %v4514
      %v4516 = vpop.f32.mrb[0].mxu0
      %v4517 = vpop.f32.mrb[0].mxu0
      %v4518 = vadd.f32 0.0, %v4517
      %v4519 = vpop.f32.mrb[0].mxu0
      %4520 = vmatprep.mubr.bf16.mxu0 0
      %4521 = vmatmul.mubr.bf16.gmra.mrb[0].mxu0 %v4363
      %v4522 = vpop.f32.mrb[0].mxu0
      %v4523 = vadd.f32 0.0, %v4522
      %v4524 = vpop.f32.mrb[0].mxu0
      %v4525 = vpop.f32.mrb[0].mxu0
      %v4526 = vadd.f32 0.0, %v4525
      %v4527 = vpop.f32.mrb[0].mxu0
      %4528 = vdwg.mxu0
      %v4529 = vadd.f32 %v3745, %v4403
      %v4530 = vadd.f32 %v3748, %v4406
      %v4531 = vadd.f32 %v3753, %v4411
      %v4532 = vadd.f32 %v3756, %v4414
      %v4533 = vadd.f32 %v3761, %v4419
      %v4534 = vadd.f32 %v3764, %v4422
      %v4535 = vadd.f32 %v3769, %v4427
      %v4536 = vadd.f32 %v3772, %v4430
      %v4537 = vadd.f32 %v3777, %v4435
      %v4538 = vadd.f32 %v3780, %v4438
      %v4539 = vadd.f32 %v3785, %v4443
      %v4540 = vadd.f32 %v3788, %v4446
      %v4541 = vadd.f32 %v3793, %v4451
      %v4542 = vadd.f32 %v3796, %v4454
      %v4543 = vadd.f32 %v3801, %v4459
      %v4544 = vadd.f32 %v3804, %v4462
      %v4545 = vadd.f32 %v3809, %v4467
      %v4546 = vadd.f32 %v3812, %v4470
      %v4547 = vadd.f32 %v3817, %v4475
      %v4548 = vadd.f32 %v3820, %v4478
      %v4549 = vadd.f32 %v3825, %v4483
      %v4550 = vadd.f32 %v3828, %v4486
      %v4551 = vadd.f32 %v3833, %v4491
      %v4552 = vadd.f32 %v3836, %v4494
      %v4553 = vadd.f32 %v3841, %v4499
      %v4554 = vadd.f32 %v3844, %v4502
      %v4555 = vadd.f32 %v3849, %v4507
      %v4556 = vadd.f32 %v3852, %v4510
      %v4557 = vadd.f32 %v3857, %v4515
      %v4558 = vadd.f32 %v3860, %v4518
      %v4559 = vadd.f32 %v3865, %v4523
      %v4560 = vadd.f32 %v3868, %v4526
      %v4561 = vld [vmem:[%s4] sm:$0x1]
      %v4563 = vlaneseq
      %v4564 = vshrl.u32 %v4563, 7
      %v4565 = vsub.s32 0, %v4564
      %v4566 = vrot.slane %v4561, %v4565
      %v4568 = vadd.f32 %v4529, %v4566
      %v4569 = vadd.f32 %v4530, %v4566
      %v4570 = vadd.f32 %v4531, %v4566
      %v4571 = vadd.f32 %v4532, %v4566
      %v4572 = vadd.f32 %v4533, %v4566
      %v4573 = vadd.f32 %v4534, %v4566
      %v4574 = vadd.f32 %v4535, %v4566
      %v4575 = vadd.f32 %v4536, %v4566
      %v4576 = vadd.f32 %v4537, %v4566
      %v4577 = vadd.f32 %v4538, %v4566
      %v4578 = vadd.f32 %v4539, %v4566
      %v4579 = vadd.f32 %v4540, %v4566
      %v4580 = vadd.f32 %v4541, %v4566
      %v4581 = vadd.f32 %v4542, %v4566
      %v4582 = vadd.f32 %v4543, %v4566
      %v4583 = vadd.f32 %v4544, %v4566
      %v4584 = vadd.f32 %v4545, %v4566
      %v4585 = vadd.f32 %v4546, %v4566
      %v4586 = vadd.f32 %v4547, %v4566
      %v4587 = vadd.f32 %v4548, %v4566
      %v4588 = vadd.f32 %v4549, %v4566
      %v4589 = vadd.f32 %v4550, %v4566
      %v4590 = vadd.f32 %v4551, %v4566
      %v4591 = vadd.f32 %v4552, %v4566
      %v4592 = vadd.f32 %v4553, %v4566
      %v4593 = vadd.f32 %v4554, %v4566
      %v4594 = vadd.f32 %v4555, %v4566
      %v4595 = vadd.f32 %v4556, %v4566
      %v4596 = vadd.f32 %v4557, %v4566
      %v4597 = vadd.f32 %v4558, %v4566
      %v4598 = vadd.f32 %v4559, %v4566
      %v4599 = vadd.f32 %v4560, %v4566
      %v4600 = vld [vmem:[%s289 + $0x1] sm:$0xff]
      %v4601 = vld [vmem:[%s289 + $0x9] sm:$0xff]
      %v4602 = vld [vmem:[%s289 + $0x19] sm:$0xff]
      %v4603 = vld [vmem:[%s289 + $0x21] sm:$0xff]
      %v4604 = vld [vmem:[%s289 + $0x31] sm:$0xff]
      %v4605 = vld [vmem:[%s289 + $0x39] sm:$0xff]
      %v4606 = vld [vmem:[%s289 + $0x49] sm:$0xff]
      %v4607 = vld [vmem:[%s289 + $0x51] sm:$0xff]
      %v4608 = vld [vmem:[%s289 + $0x61] sm:$0xff]
      %v4609 = vld [vmem:[%s289 + $0x69] sm:$0xff]
      %v4610 = vld [vmem:[%s289 + $0x79] sm:$0xff]
      %v4611 = vld [vmem:[%s289 + $0x81] sm:$0xff]
      %v4612 = vld [vmem:[%s289 + $0x91] sm:$0xff]
      %v4613 = vld [vmem:[%s289 + $0x99] sm:$0xff]
      %v4614 = vld [vmem:[%s289 + $0xa9] sm:$0xff]
      %v4615 = vld [vmem:[%s289 + $0xb1] sm:$0xff]
      %v4616 = vld [vmem:[%s289 + $0xc1] sm:$0xff]
      %v4617 = vld [vmem:[%s289 + $0xc9] sm:$0xff]
      %v4618 = vld [vmem:[%s289 + $0xd9] sm:$0xff]
      %v4619 = vld [vmem:[%s289 + $0xe1] sm:$0xff]
      %v4620 = vld [vmem:[%s289 + $0xf1] sm:$0xff]
      %v4621 = vld [vmem:[%s289 + $0xf9] sm:$0xff]
      %v4622 = vld [vmem:[%s289 + $0x109] sm:$0xff]
      %v4623 = vld [vmem:[%s289 + $0x111] sm:$0xff]
      %v4624 = vld [vmem:[%s289 + $0x121] sm:$0xff]
      %v4625 = vld [vmem:[%s289 + $0x129] sm:$0xff]
      %v4626 = vld [vmem:[%s289 + $0x139] sm:$0xff]
      %v4627 = vld [vmem:[%s289 + $0x141] sm:$0xff]
      %v4628 = vld [vmem:[%s289 + $0x151] sm:$0xff]
      %v4629 = vld [vmem:[%s289 + $0x159] sm:$0xff]
      %v4630 = vld [vmem:[%s289 + $0x169] sm:$0xff]
      %v4631 = vld [vmem:[%s289 + $0x171] sm:$0xff]
      %v4632 = vpack.c.bf16 %v4601, %v4600
      %v4633 = vpack.c.bf16 %v4603, %v4602
      %v4634 = vpack.c.bf16 %v4605, %v4604
      %v4635 = vpack.c.bf16 %v4607, %v4606
      %v4636 = vpack.c.bf16 %v4609, %v4608
      %v4637 = vpack.c.bf16 %v4611, %v4610
      %v4638 = vpack.c.bf16 %v4613, %v4612
      %v4639 = vpack.c.bf16 %v4615, %v4614
      %v4640 = vpack.c.bf16 %v4617, %v4616
      %v4641 = vpack.c.bf16 %v4619, %v4618
      %v4642 = vpack.c.bf16 %v4621, %v4620
      %v4643 = vpack.c.bf16 %v4623, %v4622
      %v4644 = vpack.c.bf16 %v4625, %v4624
      %v4645 = vpack.c.bf16 %v4627, %v4626
      %v4646 = vpack.c.bf16 %v4629, %v4628
      %v4647 = vpack.c.bf16 %v4631, %v4630
      %v4648 = vld [vmem:[%s5] sm:$0x3]
      %v4649 = vld [vmem:[%s6] sm:$0x1]
      %v4651 = vlaneseq
      %v4652 = vshrl.u32 %v4651, 7
      %v4653 = vsub.s32 0, %v4652
      %v4654 = vrot.slane %v4649, %v4653
      %v4657 = vsel %vm280, %v4632, 0
      %v4660 = vsel %vm280, %v4633, 0
      %v4663 = vsel %vm280, %v4634, 0
      %v4666 = vsel %vm280, %v4635, 0
      %v4669 = vsel %vm280, %v4636, 0
      %v4672 = vsel %vm280, %v4637, 0
      %v4675 = vsel %vm280, %v4638, 0
      %v4678 = vsel %vm280, %v4639, 0
      %v4681 = vsel %vm280, %v4640, 0
      %v4684 = vsel %vm280, %v4641, 0
      %v4687 = vsel %vm280, %v4642, 0
      %v4690 = vsel %vm280, %v4643, 0
      %v4693 = vsel %vm280, %v4644, 0
      %v4696 = vsel %vm280, %v4645, 0
      %v4699 = vsel %vm280, %v4646, 0
      %v4702 = vsel %vm280, %v4647, 0
      %vm4704 = vcmask 1041408
      %v4706 = vsel %vm4704, %v4648, 0
      %4708 = vmatprep.subr.bf16.mxu0 0
      %4709 = vmatpush1.bf16.msra.mxu0 %v4706
      %4710 = vmatprep.subr.bf16.mxu0 0
      %4711 = vmatpush1.bf16.msra.mxu0 0
      %4712 = vmatprep.subr.bf16.mxu0 0
      %4713 = vmatpush1.bf16.msra.mxu0 0
      %4714 = vmatprep.subr.bf16.mxu0 0
      %4715 = vmatpush1.bf16.msra.mxu0 0
      %4716 = vmatprep.subr.bf16.mxu0 0
      %4717 = vmatpush1.bf16.msra.mxu0 0
      %4718 = vmatprep.subr.bf16.mxu0 0
      %4719 = vmatpush1.bf16.msra.mxu0 0
      %4720 = vmatprep.subr.bf16.mxu0 0
      %4721 = vmatpush1.bf16.msra.mxu0 0
      %4722 = vmatprep.subr.bf16.mxu0 0
      %4723 = vmatpush1.bf16.msra.mxu0 0
      %4724 = vmatprep.subr.bf16.mxu0 0
      %4725 = vmatpush1.bf16.msra.mxu0 0
      %4726 = vmatprep.subr.bf16.mxu0 0
      %4727 = vmatpush1.bf16.msra.mxu0 0
      %4728 = vmatprep.subr.bf16.mxu0 0
      %4729 = vmatpush1.bf16.msra.mxu0 0
      %4730 = vmatprep.subr.bf16.mxu0 0
      %4731 = vmatpush1.bf16.msra.mxu0 0
      %4732 = vmatprep.subr.bf16.mxu0 0
      %4733 = vmatpush1.bf16.msra.mxu0 0
      %4734 = vmatprep.subr.bf16.mxu0 0
      %4735 = vmatpush1.bf16.msra.mxu0 0
      %4736 = vmatprep.subr.bf16.mxu0 0
      %4737 = vmatpush1.bf16.msra.mxu0 0
      %4738 = vmatprep.subr.bf16.mxu0 0
      %4739 = vmatpush1.bf16.msra.mxu0 0
      %4740 = vmatprep.mubr.bf16.mxu0 0
      %4741 = vmatmul.mubr.bf16.gmra.mrb[0].mxu0 %v4657
      %v4742 = vpop.f32.mrb[0].mxu0
      %v4743 = vadd.f32 %v4654, %v4742
      %v4744 = vpop.f32.mrb[0].mxu0
      %v4745 = vpop.f32.mrb[0].mxu0
      %v4746 = vadd.f32 %v4654, %v4745
      %v4747 = vpop.f32.mrb[0].mxu0
      %4748 = vmatprep.mubr.bf16.mxu0 0
      %4749 = vmatmul.mubr.bf16.gmra.mrb[0].mxu0 %v4660
      %v4750 = vpop.f32.mrb[0].mxu0
      %v4751 = vadd.f32 %v4654, %v4750
      %v4752 = vpop.f32.mrb[0].mxu0
      %v4753 = vpop.f32.mrb[0].mxu0
      %v4754 = vadd.f32 %v4654, %v4753
      %v4755 = vpop.f32.mrb[0].mxu0
      %4756 = vmatprep.mubr.bf16.mxu0 0
      %4757 = vmatmul.mubr.bf16.gmra.mrb[0].mxu0 %v4663
      %v4758 = vpop.f32.mrb[0].mxu0
      %v4759 = vadd.f32 %v4654, %v4758
      %v4760 = vpop.f32.mrb[0].mxu0
      %v4761 = vpop.f32.mrb[0].mxu0
      %v4762 = vadd.f32 %v4654, %v4761
      %v4763 = vpop.f32.mrb[0].mxu0
      %4764 = vmatprep.mubr.bf16.mxu0 0
      %4765 = vmatmul.mubr.bf16.gmra.mrb[0].mxu0 %v4666
      %v4766 = vpop.f32.mrb[0].mxu0
      %v4767 = vadd.f32 %v4654, %v4766
      %v4768 = vpop.f32.mrb[0].mxu0
      %v4769 = vpop.f32.mrb[0].mxu0
      %v4770 = vadd.f32 %v4654, %v4769
      %v4771 = vpop.f32.mrb[0].mxu0
      %4772 = vmatprep.mubr.bf16.mxu0 0
      %4773 = vmatmul.mubr.bf16.gmra.mrb[0].mxu0 %v4669
      %v4774 = vpop.f32.mrb[0].mxu0
      %v4775 = vadd.f32 %v4654, %v4774
      %v4776 = vpop.f32.mrb[0].mxu0
      %v4777 = vpop.f32.mrb[0].mxu0
      %v4778 = vadd.f32 %v4654, %v4777
      %v4779 = vpop.f32.mrb[0].mxu0
      %4780 = vmatprep.mubr.bf16.mxu0 0
      %4781 = vmatmul.mubr.bf16.gmra.mrb[0].mxu0 %v4672
      %v4782 = vpop.f32.mrb[0].mxu0
      %v4783 = vadd.f32 %v4654, %v4782
      %v4784 = vpop.f32.mrb[0].mxu0
      %v4785 = vpop.f32.mrb[0].mxu0
      %v4786 = vadd.f32 %v4654, %v4785
      %v4787 = vpop.f32.mrb[0].mxu0
      %4788 = vmatprep.mubr.bf16.mxu0 0
      %4789 = vmatmul.mubr.bf16.gmra.mrb[0].mxu0 %v4675
      %v4790 = vpop.f32.mrb[0].mxu0
      %v4791 = vadd.f32 %v4654, %v4790
      %v4792 = vpop.f32.mrb[0].mxu0
      %v4793 = vpop.f32.mrb[0].mxu0
      %v4794 = vadd.f32 %v4654, %v4793
      %v4795 = vpop.f32.mrb[0].mxu0
      %4796 = vmatprep.mubr.bf16.mxu0 0
      %4797 = vmatmul.mubr.bf16.gmra.mrb[0].mxu0 %v4678
      %v4798 = vpop.f32.mrb[0].mxu0
      %v4799 = vadd.f32 %v4654, %v4798
      %v4800 = vpop.f32.mrb[0].mxu0
      %v4801 = vpop.f32.mrb[0].mxu0
      %v4802 = vadd.f32 %v4654, %v4801
      %v4803 = vpop.f32.mrb[0].mxu0
      %4804 = vmatprep.mubr.bf16.mxu0 0
      %4805 = vmatmul.mubr.bf16.gmra.mrb[0].mxu0 %v4681
      %v4806 = vpop.f32.mrb[0].mxu0
      %v4807 = vadd.f32 %v4654, %v4806
      %v4808 = vpop.f32.mrb[0].mxu0
      %v4809 = vpop.f32.mrb[0].mxu0
      %v4810 = vadd.f32 %v4654, %v4809
      %v4811 = vpop.f32.mrb[0].mxu0
      %4812 = vmatprep.mubr.bf16.mxu0 0
      %4813 = vmatmul.mubr.bf16.gmra.mrb[0].mxu0 %v4684
      %v4814 = vpop.f32.mrb[0].mxu0
      %v4815 = vadd.f32 %v4654, %v4814
      %v4816 = vpop.f32.mrb[0].mxu0
      %v4817 = vpop.f32.mrb[0].mxu0
      %v4818 = vadd.f32 %v4654, %v4817
      %v4819 = vpop.f32.mrb[0].mxu0
      %4820 = vmatprep.mubr.bf16.mxu0 0
      %4821 = vmatmul.mubr.bf16.gmra.mrb[0].mxu0 %v4687
      %v4822 = vpop.f32.mrb[0].mxu0
      %v4823 = vadd.f32 %v4654, %v4822
      %v4824 = vpop.f32.mrb[0].mxu0
      %v4825 = vpop.f32.mrb[0].mxu0
      %v4826 = vadd.f32 %v4654, %v4825
      %v4827 = vpop.f32.mrb[0].mxu0
      %4828 = vmatprep.mubr.bf16.mxu0 0
      %4829 = vmatmul.mubr.bf16.gmra.mrb[0].mxu0 %v4690
      %v4830 = vpop.f32.mrb[0].mxu0
      %v4831 = vadd.f32 %v4654, %v4830
      %v4832 = vpop.f32.mrb[0].mxu0
      %v4833 = vpop.f32.mrb[0].mxu0
      %v4834 = vadd.f32 %v4654, %v4833
      %v4835 = vpop.f32.mrb[0].mxu0
      %4836 = vmatprep.mubr.bf16.mxu0 0
      %4837 = vmatmul.mubr.bf16.gmra.mrb[0].mxu0 %v4693
      %v4838 = vpop.f32.mrb[0].mxu0
      %v4839 = vadd.f32 %v4654, %v4838
      %v4840 = vpop.f32.mrb[0].mxu0
      %v4841 = vpop.f32.mrb[0].mxu0
      %v4842 = vadd.f32 %v4654, %v4841
      %v4843 = vpop.f32.mrb[0].mxu0
      %4844 = vmatprep.mubr.bf16.mxu0 0
      %4845 = vmatmul.mubr.bf16.gmra.mrb[0].mxu0 %v4696
      %v4846 = vpop.f32.mrb[0].mxu0
      %v4847 = vadd.f32 %v4654, %v4846
      %v4848 = vpop.f32.mrb[0].mxu0
      %v4849 = vpop.f32.mrb[0].mxu0
      %v4850 = vadd.f32 %v4654, %v4849
      %v4851 = vpop.f32.mrb[0].mxu0
      %4852 = vmatprep.mubr.bf16.mxu0 0
      %4853 = vmatmul.mubr.bf16.gmra.mrb[0].mxu0 %v4699
      %v4854 = vpop.f32.mrb[0].mxu0
      %v4855 = vadd.f32 %v4654, %v4854
      %v4856 = vpop.f32.mrb[0].mxu0
      %v4857 = vpop.f32.mrb[0].mxu0
      %v4858 = vadd.f32 %v4654, %v4857
      %v4859 = vpop.f32.mrb[0].mxu0
      %4860 = vmatprep.mubr.bf16.mxu0 0
      %4861 = vmatmul.mubr.bf16.gmra.mrb[0].mxu0 %v4702
      %v4862 = vpop.f32.mrb[0].mxu0
      %v4863 = vadd.f32 %v4654, %v4862
      %v4864 = vpop.f32.mrb[0].mxu0
      %v4865 = vpop.f32.mrb[0].mxu0
      %v4866 = vadd.f32 %v4654, %v4865
      %v4867 = vpop.f32.mrb[0].mxu0
      %4868 = vdwg.mxu0
      %v4869 = vadd.f32 %v4568, %v4743
      %v4870 = vadd.f32 %v4569, %v4746
      %v4871 = vadd.f32 %v4570, %v4751
      %v4872 = vadd.f32 %v4571, %v4754
      %v4873 = vadd.f32 %v4572, %v4759
      %v4874 = vadd.f32 %v4573, %v4762
      %v4875 = vadd.f32 %v4574, %v4767
      %v4876 = vadd.f32 %v4575, %v4770
      %v4877 = vadd.f32 %v4576, %v4775
      %v4878 = vadd.f32 %v4577, %v4778
      %v4879 = vadd.f32 %v4578, %v4783
      %v4880 = vadd.f32 %v4579, %v4786
      %v4881 = vadd.f32 %v4580, %v4791
      %v4882 = vadd.f32 %v4581, %v4794
      %v4883 = vadd.f32 %v4582, %v4799
      %v4884 = vadd.f32 %v4583, %v4802
      %v4885 = vadd.f32 %v4584, %v4807
      %v4886 = vadd.f32 %v4585, %v4810
      %v4887 = vadd.f32 %v4586, %v4815
      %v4888 = vadd.f32 %v4587, %v4818
      %v4889 = vadd.f32 %v4588, %v4823
      %v4890 = vadd.f32 %v4589, %v4826
      %v4891 = vadd.f32 %v4590, %v4831
      %v4892 = vadd.f32 %v4591, %v4834
      %v4893 = vadd.f32 %v4592, %v4839
      %v4894 = vadd.f32 %v4593, %v4842
      %v4895 = vadd.f32 %v4594, %v4847
      %v4896 = vadd.f32 %v4595, %v4850
      %v4897 = vadd.f32 %v4596, %v4855
      %v4898 = vadd.f32 %v4597, %v4858
      %v4899 = vadd.f32 %v4598, %v4863
      %v4900 = vadd.f32 %v4599, %v4866
      %v4901 = vmax.f32 %v4869, 0.0
      %v4902 = vmax.f32 %v4870, 0.0
      %v4903 = vmax.f32 %v4871, 0.0
      %v4904 = vmax.f32 %v4872, 0.0
      %v4905 = vmax.f32 %v4873, 0.0
      %v4906 = vmax.f32 %v4874, 0.0
      %v4907 = vmax.f32 %v4875, 0.0
      %v4908 = vmax.f32 %v4876, 0.0
      %v4909 = vmax.f32 %v4877, 0.0
      %v4910 = vmax.f32 %v4878, 0.0
      %v4911 = vmax.f32 %v4879, 0.0
      %v4912 = vmax.f32 %v4880, 0.0
      %v4913 = vmax.f32 %v4881, 0.0
      %v4914 = vmax.f32 %v4882, 0.0
      %v4915 = vmax.f32 %v4883, 0.0
      %v4916 = vmax.f32 %v4884, 0.0
      %v4917 = vmax.f32 %v4885, 0.0
      %v4918 = vmax.f32 %v4886, 0.0
      %v4919 = vmax.f32 %v4887, 0.0
      %v4920 = vmax.f32 %v4888, 0.0
      %v4921 = vmax.f32 %v4889, 0.0
      %v4922 = vmax.f32 %v4890, 0.0
      %v4923 = vmax.f32 %v4891, 0.0
      %v4924 = vmax.f32 %v4892, 0.0
      %v4925 = vmax.f32 %v4893, 0.0
      %v4926 = vmax.f32 %v4894, 0.0
      %v4927 = vmax.f32 %v4895, 0.0
      %v4928 = vmax.f32 %v4896, 0.0
      %v4929 = vmax.f32 %v4897, 0.0
      %v4930 = vmax.f32 %v4898, 0.0
      %v4931 = vmax.f32 %v4899, 0.0
      %v4932 = vmax.f32 %v4900, 0.0
      %v4933 = vpack.c.bf16 %v4902, %v4901
      %v4934 = vpack.c.bf16 %v4904, %v4903
      %v4935 = vpack.c.bf16 %v4906, %v4905
      %v4936 = vpack.c.bf16 %v4908, %v4907
      %v4937 = vpack.c.bf16 %v4910, %v4909
      %v4938 = vpack.c.bf16 %v4912, %v4911
      %v4939 = vpack.c.bf16 %v4914, %v4913
      %v4940 = vpack.c.bf16 %v4916, %v4915
      %v4941 = vpack.c.bf16 %v4918, %v4917
      %v4942 = vpack.c.bf16 %v4920, %v4919
      %v4943 = vpack.c.bf16 %v4922, %v4921
      %v4944 = vpack.c.bf16 %v4924, %v4923
      %v4945 = vpack.c.bf16 %v4926, %v4925
      %v4946 = vpack.c.bf16 %v4928, %v4927
      %v4947 = vpack.c.bf16 %v4930, %v4929
      %v4948 = vpack.c.bf16 %v4932, %v4931
      %v4965 = vunpack.c.l.b16 %v4933
      %v4966 = vunpack.c.h.b16 %v4933
      %v4967 = vunpack.c.l.b16 %v4934
      %v4968 = vunpack.c.h.b16 %v4934
      %v4969 = vunpack.c.l.b16 %v4935
      %v4970 = vunpack.c.h.b16 %v4935
      %v4971 = vunpack.c.l.b16 %v4936
      %v4972 = vunpack.c.h.b16 %v4936
      %v4973 = vunpack.c.l.b16 %v4937
      %v4974 = vunpack.c.h.b16 %v4937
      %v4975 = vunpack.c.l.b16 %v4938
      %v4976 = vunpack.c.h.b16 %v4938
      %v4977 = vunpack.c.l.b16 %v4939
      %v4978 = vunpack.c.h.b16 %v4939
      %v4979 = vunpack.c.l.b16 %v4940
      %v4980 = vunpack.c.h.b16 %v4940
      %v4981 = vunpack.c.l.b16 %v4941
      %v4982 = vunpack.c.h.b16 %v4941
      %v4983 = vunpack.c.l.b16 %v4942
      %v4984 = vunpack.c.h.b16 %v4942
      %v4985 = vunpack.c.l.b16 %v4943
      %v4986 = vunpack.c.h.b16 %v4943
      %v4987 = vunpack.c.l.b16 %v4944
      %v4988 = vunpack.c.h.b16 %v4944
      %v4989 = vunpack.c.l.b16 %v4945
      %v4990 = vunpack.c.h.b16 %v4945
      %v4991 = vunpack.c.l.b16 %v4946
      %v4992 = vunpack.c.h.b16 %v4946
      %v4993 = vunpack.c.l.b16 %v4947
      %v4994 = vunpack.c.h.b16 %v4947
      %v4995 = vunpack.c.l.b16 %v4948
      %v4996 = vunpack.c.h.b16 %v4948
      %v4997 = vpack.c.b16 %v4965, %v4965
      %v4998 = vpack.c.b16 %v4966, %v4966
      %v4999 = vpack.c.b16 %v4967, %v4967
      %v5000 = vpack.c.b16 %v4968, %v4968
      %v5001 = vpack.c.b16 %v4969, %v4969
      %v5002 = vpack.c.b16 %v4970, %v4970
      %v5003 = vpack.c.b16 %v4971, %v4971
      %v5004 = vpack.c.b16 %v4972, %v4972
      %v5005 = vpack.c.b16 %v4973, %v4973
      %v5006 = vpack.c.b16 %v4974, %v4974
      %v5007 = vpack.c.b16 %v4975, %v4975
      %v5008 = vpack.c.b16 %v4976, %v4976
      %v5009 = vpack.c.b16 %v4977, %v4977
      %v5010 = vpack.c.b16 %v4978, %v4978
      %v5011 = vpack.c.b16 %v4979, %v4979
      %v5012 = vpack.c.b16 %v4980, %v4980
      %v5013 = vpack.c.b16 %v4981, %v4981
      %v5014 = vpack.c.b16 %v4982, %v4982
      %v5015 = vpack.c.b16 %v4983, %v4983
      %v5016 = vpack.c.b16 %v4984, %v4984
      %v5017 = vpack.c.b16 %v4985, %v4985
      %v5018 = vpack.c.b16 %v4986, %v4986
      %v5019 = vpack.c.b16 %v4987, %v4987
      %v5020 = vpack.c.b16 %v4988, %v4988
      %v5021 = vpack.c.b16 %v4989, %v4989
      %v5022 = vpack.c.b16 %v4990, %v4990
      %v5023 = vpack.c.b16 %v4991, %v4991
      %v5024 = vpack.c.b16 %v4992, %v4992
      %v5025 = vpack.c.b16 %v4993, %v4993
      %v5026 = vpack.c.b16 %v4994, %v4994
      %v5027 = vpack.c.b16 %v4995, %v4995
      %v5028 = vpack.c.b16 %v4996, %v4996
      %vm5061 = vcmask 60416
      %5062 = vst.msk [vmem:[%s278] sm:$0xf] %vm5061, %v4997
      %5063 = vst.msk [vmem:[%s278 + $0x4] sm:$0xf] %vm5061, %v4998
      %5064 = vst.msk [vmem:[%s278 + $0x8] sm:$0xf] %vm5061, %v4999
      %5065 = vst.msk [vmem:[%s278 + $0xc] sm:$0xf] %vm5061, %v5000
      %5066 = vst.msk [vmem:[%s278 + $0x10] sm:$0xf] %vm5061, %v5001
      %5067 = vst.msk [vmem:[%s278 + $0x14] sm:$0xf] %vm5061, %v5002
      %5068 = vst.msk [vmem:[%s278 + $0x18] sm:$0xf] %vm5061, %v5003
      %5069 = vst.msk [vmem:[%s278 + $0x1c] sm:$0xf] %vm5061, %v5004
      %5070 = vst.msk [vmem:[%s278 + $0x20] sm:$0xf] %vm5061, %v5005
      %5071 = vst.msk [vmem:[%s278 + $0x24] sm:$0xf] %vm5061, %v5006
      %5072 = vst.msk [vmem:[%s278 + $0x28] sm:$0xf] %vm5061, %v5007
      %5073 = vst.msk [vmem:[%s278 + $0x2c] sm:$0xf] %vm5061, %v5008
      %5074 = vst.msk [vmem:[%s278 + $0x30] sm:$0xf] %vm5061, %v5009
      %5075 = vst.msk [vmem:[%s278 + $0x34] sm:$0xf] %vm5061, %v5010
      %5076 = vst.msk [vmem:[%s278 + $0x38] sm:$0xf] %vm5061, %v5011
      %5077 = vst.msk [vmem:[%s278 + $0x3c] sm:$0xf] %vm5061, %v5012
      %5078 = vst.msk [vmem:[%s278 + $0x40] sm:$0xf] %vm5061, %v5013
      %5079 = vst.msk [vmem:[%s278 + $0x44] sm:$0xf] %vm5061, %v5014
      %5080 = vst.msk [vmem:[%s278 + $0x48] sm:$0xf] %vm5061, %v5015
      %5081 = vst.msk [vmem:[%s278 + $0x4c] sm:$0xf] %vm5061, %v5016
      %5082 = vst.msk [vmem:[%s278 + $0x50] sm:$0xf] %vm5061, %v5017
      %5083 = vst.msk [vmem:[%s278 + $0x54] sm:$0xf] %vm5061, %v5018
      %5084 = vst.msk [vmem:[%s278 + $0x58] sm:$0xf] %vm5061, %v5019
      %5085 = vst.msk [vmem:[%s278 + $0x5c] sm:$0xf] %vm5061, %v5020
      %5086 = vst.msk [vmem:[%s278 + $0x60] sm:$0xf] %vm5061, %v5021
      %5087 = vst.msk [vmem:[%s278 + $0x64] sm:$0xf] %vm5061, %v5022
      %5088 = vst.msk [vmem:[%s278 + $0x68] sm:$0xf] %vm5061, %v5023
      %5089 = vst.msk [vmem:[%s278 + $0x6c] sm:$0xf] %vm5061, %v5024
      %5090 = vst.msk [vmem:[%s278 + $0x70] sm:$0xf] %vm5061, %v5025
      %5091 = vst.msk [vmem:[%s278 + $0x74] sm:$0xf] %vm5061, %v5026
      %5092 = vst.msk [vmem:[%s278 + $0x78] sm:$0xf] %vm5061, %v5027
      %5093 = vst.msk [vmem:[%s278 + $0x7c] sm:$0xf] %vm5061, %v5028
      %p5094 = scmp.lt.s32.totalorder %s18, 1
      %s5095 = scalar_select %p5094, %s18, 1
      %s5096 = smul.addr %s5095, 32
      %s5097 = smul.addr %s5096, 4
      %s5098 = scalar_lea.vmem %s7, %s5097
      // Predicated region
      $region49: #{tpu_custom_call.1} parent=47 // pred_check
        %p5099 = pneg %p188
      $region50: #{tpu_custom_call.1} parent=47 // pred_check_branch
        %5101 = sbr.rel (%p5099) target = $region52
      $region51: #{tpu_custom_call.1} parent=47 // pred_region
        _
      $region52: #{tpu_custom_call.1} parent=47 // pred_fallthru
        _
    $region48: #{tpu_custom_call.1} parent=5 // pred_fallthru
      _
    %p5102 = scmp.le.s32.totalorder 2, %s13
    // Predicated region
    $region53: #{tpu_custom_call.1} parent=5 // pred_check
      %p5103 = pneg %p5102
    $region54: #{tpu_custom_call.1} parent=5 // pred_check_branch
      %5105 = sbr.rel (%p5103) target = $region56
    $region55: #{tpu_custom_call.1} parent=5 // pred_region
      %s5106 = ssub.s32 %s13, 2
      // Predicated region
      $region57: #{tpu_custom_call.1} parent=55 // pred_check
        %p5107 = pneg %p194
      $region58: #{tpu_custom_call.1} parent=55 // pred_check_branch
        %5109 = sbr.rel (%p5107) target = $region60
      $region59: #{tpu_custom_call.1} parent=55 // pred_region
        %p5110 = scmp.lt.s32.totalorder %s19, 1
        %s5111 = scalar_select %p5110, %s19, 1
        %s5112 = smul.addr %s5111, 32
        %s5113 = smul.addr %s5112, 4
        %s5114 = scalar_lea.vmem %s7, %s5113
      $region60: #{tpu_custom_call.1} parent=55 // pred_fallthru
        _
    $region56: #{tpu_custom_call.1} parent=5 // pred_fallthru
      _
  $region6: #{tpu_custom_call.1} parent=0 // loop_footer
    %s17 = sadd.s32 1, %s13
  $region7: #{tpu_custom_call.1} parent=0 // loop_footer_branch
    %12 = sbr.rel target = $region3
  $region8: #{tpu_custom_call.1} parent=0 // loop_exit
    _

</llo_original>
